<compile_context>
chip_gen: v7x
topology: tpu7x:2x2x1
jax: 0.10.0
libtpu: 0.0.40
codegen_flags: <defaults>
</compile_context>

<pallas_src>
import jax
import jax.numpy as jnp
from jax.experimental import pallas as pl
from jax.experimental.pallas import tpu as pltpu

INPUT_SIZE = 28 * 28          # 784 (multiple of 8; used as a full-dim block)
HIDDEN = 1000
NUM_CLASSES = 10

HIDDEN_PAD = 1024             # 1000 -> 8 * 128  (fc1 out / fc2 contraction dim)
HALF_HIDDEN = HIDDEN_PAD // 2 # 512, fc1 split point for MXU/EUP overlap
CLASSES_PAD = 128             # 10 -> 128        (lane-dense output)

MAX_TILE_B = 512              # cap keeps footprint < v5e's 16 MiB scoped VMEM
MIN_SPLIT_ROWS = 256          # don't split into 2 tiles below this much work


def _round_up(x, m):
    return ((x + m - 1) // m) * m


def _pick_tile(batch):
    """Batch tile (multiple of 8). Prefer >=2 tiles once there is enough work
    (v7x: 2 TensorCores), but keep tiles large to amortize ~0.35us/step."""
    batch8 = _round_up(batch, 8)
    if batch8 < 2 * MIN_SPLIT_ROWS:
        return batch8                      # one tile; too little work to split
    return min(MAX_TILE_B, _round_up((batch8 + 1) // 2, 8))


def _mlp_kernel(x_ref, w1_ref, b1_ref, w2_ref, b2_ref, o_ref):
    # In-kernel bf16 cast of the streamed f32 x tile (VPU; no wrapper pre-pass).
    x_bf = x_ref[...].astype(jnp.bfloat16)                      # (TB, 784)

    # fc1 split into two independent hidden-dim chunks: the EUP sigmoid of
    # chunk 0 can overlap with the MXU matmul of chunk 1 (v6e/v7x).
    h0 = jnp.dot(x_bf, w1_ref[:, :HALF_HIDDEN],
                 preferred_element_type=jnp.float32) + b1_ref[:, :HALF_HIDDEN]
    h1 = jnp.dot(x_bf, w1_ref[:, HALF_HIDDEN:],
                 preferred_element_type=jnp.float32) + b1_ref[:, HALF_HIDDEN:]

    # sigmoid(h) = 1 / (1 + exp(-h)); exp on the EUP, approx vrcp is near-free.
    s0 = pl.reciprocal(1.0 + jnp.exp(-h0), approx=True)
    s1 = pl.reciprocal(1.0 + jnp.exp(-h1), approx=True)

    # fc2: two partial MXU contractions, f32 accumulate, + f32 bias.
    out = jnp.dot(s0.astype(jnp.bfloat16), w2_ref[:HALF_HIDDEN, :],
                  preferred_element_type=jnp.float32)
    out = out + jnp.dot(s1.astype(jnp.bfloat16), w2_ref[HALF_HIDDEN:, :],
                        preferred_element_type=jnp.float32)
    o_ref[...] = out + b2_ref[...]


def pack_params(w1, b1, w2, b2):
    """One-time weight packing (do NOT call per forward).

    PyTorch layout (out, in) -> transposed to (in, out), hidden/class dims
    zero-padded to lane-dense sizes, weights cast to bf16, biases kept f32.
    NOTE: padded hidden lanes [1000:1024] give sigmoid(0)=0.5; correctness
    relies on the matching w2 rows being zero — keep that invariant.
    """
    w1p = jnp.zeros((INPUT_SIZE, HIDDEN_PAD), jnp.float32)
    w1p = w1p.at[:, :HIDDEN].set(w1.T).astype(jnp.bfloat16)
    b1p = jnp.zeros((1, HIDDEN_PAD), jnp.float32).at[:, :HIDDEN].set(b1)

    w2p = jnp.zeros((HIDDEN_PAD, CLASSES_PAD), jnp.float32)
    w2p = w2p.at[:HIDDEN, :NUM_CLASSES].set(w2.T).astype(jnp.bfloat16)
    b2p = jnp.zeros((1, CLASSES_PAD), jnp.float32).at[:, :NUM_CLASSES].set(b2)
    return w1p, b1p, w2p, b2p


@jax.jit
def mlp_forward(x, w1p, b1p, w2p, b2p):
    """x: any shape flattening to (-1, 784); params from pack_params()."""
    x2d = x.reshape(-1, INPUT_SIZE)
    batch = x2d.shape[0]

    tile_b = _pick_tile(batch)
    num_tiles = pl.cdiv(batch, tile_b)
    batch_pad = num_tiles * tile_b
    if batch_pad != batch:
        # Pad batch rows only (zero rows -> exact results after slicing).
        x2d = jnp.pad(x2d, ((0, batch_pad - batch), (0, 0)))

    cost = pl.CostEstimate(
        flops=2 * batch_pad * (INPUT_SIZE * HIDDEN_PAD
                               + HIDDEN_PAD * CLASSES_PAD),
        transcendentals=batch_pad * HIDDEN_PAD,
        bytes_accessed=(batch_pad * INPUT_SIZE * 4        # x (f32)
                        + INPUT_SIZE * HIDDEN_PAD * 2     # w1 (bf16)
                        + HIDDEN_PAD * 4                  # b1 (f32)
                        + HIDDEN_PAD * CLASSES_PAD * 2    # w2 (bf16)
                        + CLASSES_PAD * 4                 # b2 (f32)
                        + batch_pad * CLASSES_PAD * 4),   # out (f32)
    )

    out_padded = pl.pallas_call(
        _mlp_kernel,
        out_shape=jax.ShapeDtypeStruct((batch_pad, CLASSES_PAD), jnp.float32),
        grid=(num_tiles,),
        in_specs=[
            # streamed per batch tile; 784 is the full last dim (legal block)
            pl.BlockSpec((tile_b, INPUT_SIZE), lambda i: (i, 0)),
            # weights / biases resident across all grid steps
            pl.BlockSpec((INPUT_SIZE, HIDDEN_PAD), lambda i: (0, 0)),
            pl.BlockSpec((1, HIDDEN_PAD), lambda i: (0, 0)),
            pl.BlockSpec((HIDDEN_PAD, CLASSES_PAD), lambda i: (0, 0)),
            pl.BlockSpec((1, CLASSES_PAD), lambda i: (0, 0)),
        ],
        out_specs=pl.BlockSpec((tile_b, CLASSES_PAD), lambda i: (i, 0)),
        compiler_params=pltpu.CompilerParams(
            dimension_semantics=("parallel",)),
        cost_estimate=cost,
    )(x2d, w1p, b1p, w2p, b2p)

    return out_padded[:batch, :NUM_CLASSES]


def init_params(key):
    """Deterministic init mimicking PyTorch Linear (uniform +/- 1/sqrt(fan_in))."""
    k1, k2, k3, k4 = jax.random.split(key, 4)
    bound1 = 1.0 / jnp.sqrt(jnp.float32(INPUT_SIZE))
    bound2 = 1.0 / jnp.sqrt(jnp.float32(HIDDEN))
    w1 = jax.random.uniform(k1, (HIDDEN, INPUT_SIZE), jnp.float32, -bound1, bound1)
    b1 = jax.random.uniform(k2, (HIDDEN,), jnp.float32, -bound1, bound1)
    w2 = jax.random.uniform(k3, (NUM_CLASSES, HIDDEN), jnp.float32, -bound2, bound2)
    b2 = jax.random.uniform(k4, (NUM_CLASSES,), jnp.float32, -bound2, bound2)
    return w1, b1, w2, b2


if __name__ == "__main__":
    key = jax.random.PRNGKey(0)
    kx, kp = jax.random.split(key)

    # Small MNIST-like batch, NCHW; forward flattens to (B, 784).
    x = jax.random.normal(kx, (2, 1, 28, 28), jnp.float32)
    w1, b1, w2, b2 = init_params(kp)

    # One-time pack (hoisted out of the forward path).
    packed = pack_params(w1, b1, w2, b2)

    out = mlp_forward(x, *packed)
    out = jax.block_until_ready(out)

    # Reference check in plain JAX (same math as the PyTorch forward), f32.
    x2d = x.reshape(-1, INPUT_SIZE)
    ref = jax.nn.sigmoid(x2d @ w1.T + b1) @ w2.T + b2

    assert out.shape == (2, NUM_CLASSES)
    # Tolerance relaxed for bf16 inputs/weights + approx reciprocal
    # (accumulation stays in f32).
    assert jnp.allclose(out, ref, atol=2e-2, rtol=2e-2), (
        f"max abs err = {jnp.max(jnp.abs(out - ref))}")

    print("KERNEL_OK")
</pallas_src>

<mosaic_0001>
module attributes {stable_mosaic.version = 11 : i64} {
  func.func @_mlp_kernel(%arg0: i32, %arg1: memref<8x784xf32, #tpu.memory_space<vmem>>, %arg2: memref<784x1024xbf16, #tpu.memory_space<vmem>>, %arg3: memref<1x1024xf32, #tpu.memory_space<vmem>>, %arg4: memref<1024x128xbf16, #tpu.memory_space<vmem>>, %arg5: memref<1x128xf32, #tpu.memory_space<vmem>>, %arg6: memref<8x128xf32, #tpu.memory_space<vmem>>) attributes {dimension_semantics = [#tpu.dimension_semantics<parallel>], iteration_bounds = array<i64: 1>, scalar_prefetch = 0 : i64, scratch_operands = 0 : i64, tpu.core_type = #tpu.core_type<tc>, window_params = [{transform_indices = @transform_0, window_bounds = array<i64: 8, 784>}, {pipeline_mode = #tpu.pipeline_mode<synchronous>, transform_indices = @transform_1, window_bounds = array<i64: 784, 1024>}, {pipeline_mode = #tpu.pipeline_mode<synchronous>, transform_indices = @transform_2, window_bounds = array<i64: 1, 1024>}, {pipeline_mode = #tpu.pipeline_mode<synchronous>, transform_indices = @transform_3, window_bounds = array<i64: 1024, 128>}, {pipeline_mode = #tpu.pipeline_mode<synchronous>, transform_indices = @transform_4, window_bounds = array<i64: 1, 128>}, {transform_indices = @transform_5, window_bounds = array<i64: 8, 128>}]} {
    %c0 = arith.constant 0 : index
    %c0_0 = arith.constant 0 : index
    %0 = vector.load %arg1[%c0, %c0_0] : memref<8x784xf32, #tpu.memory_space<vmem>>, vector<8x784xf32>
    %1 = arith.truncf %0 : vector<8x784xf32> to vector<8x784xbf16>
    %c0_1 = arith.constant 0 : index
    %c0_2 = arith.constant 0 : index
    %2 = vector.load %arg2[%c0_1, %c0_2] : memref<784x1024xbf16, #tpu.memory_space<vmem>>, vector<784x512xbf16>
    %cst = arith.constant dense<0.000000e+00> : vector<8x512xf32>
    %3 = tpu.matmul %1, %2, %cst {dimension_numbers = #tpu.dot_dimension_numbers<[1], [0], [0], [1], [0, 0, 1, 1], [], []>} : vector<8x784xbf16>, vector<784x512xbf16>, vector<8x512xf32> -> vector<8x512xf32>
    %c0_3 = arith.constant 0 : index
    %c0_4 = arith.constant 0 : index
    %4 = vector.load %arg3[%c0_3, %c0_4] : memref<1x1024xf32, #tpu.memory_space<vmem>>, vector<1x512xf32>
    %5 = vector.broadcast %4 : vector<1x512xf32> to vector<8x512xf32>
    %6 = arith.addf %3, %5 : vector<8x512xf32>
    %c0_5 = arith.constant 0 : index
    %c512 = arith.constant 512 : index
    %7 = vector.load %arg2[%c0_5, %c512] : memref<784x1024xbf16, #tpu.memory_space<vmem>>, vector<784x512xbf16>
    %cst_6 = arith.constant dense<0.000000e+00> : vector<8x512xf32>
    %8 = tpu.matmul %1, %7, %cst_6 {dimension_numbers = #tpu.dot_dimension_numbers<[1], [0], [0], [1], [0, 0, 1, 1], [], []>} : vector<8x784xbf16>, vector<784x512xbf16>, vector<8x512xf32> -> vector<8x512xf32>
    %c0_7 = arith.constant 0 : index
    %c512_8 = arith.constant 512 : index
    %9 = vector.load %arg3[%c0_7, %c512_8] : memref<1x1024xf32, #tpu.memory_space<vmem>>, vector<1x512xf32>
    %10 = vector.broadcast %9 : vector<1x512xf32> to vector<8x512xf32>
    %11 = arith.addf %8, %10 : vector<8x512xf32>
    %cst_9 = arith.constant 0.000000e+00 : f32
    %12 = vector.broadcast %cst_9 : f32 to vector<8x512xf32>
    %13 = arith.subf %12, %6 : vector<8x512xf32>
    %14 = math.exp %13 : vector<8x512xf32>
    %cst_10 = arith.constant 1.000000e+00 : f32
    %15 = vector.broadcast %cst_10 : f32 to vector<8x512xf32>
    %16 = arith.addf %15, %14 : vector<8x512xf32>
    %17 = tpu.reciprocal %16 {approx = true} : vector<8x512xf32> -> vector<8x512xf32>
    %cst_11 = arith.constant 0.000000e+00 : f32
    %18 = vector.broadcast %cst_11 : f32 to vector<8x512xf32>
    %19 = arith.subf %18, %11 : vector<8x512xf32>
    %20 = math.exp %19 : vector<8x512xf32>
    %cst_12 = arith.constant 1.000000e+00 : f32
    %21 = vector.broadcast %cst_12 : f32 to vector<8x512xf32>
    %22 = arith.addf %21, %20 : vector<8x512xf32>
    %23 = tpu.reciprocal %22 {approx = true} : vector<8x512xf32> -> vector<8x512xf32>
    %24 = arith.truncf %17 : vector<8x512xf32> to vector<8x512xbf16>
    %c0_13 = arith.constant 0 : index
    %c0_14 = arith.constant 0 : index
    %25 = vector.load %arg4[%c0_13, %c0_14] : memref<1024x128xbf16, #tpu.memory_space<vmem>>, vector<512x128xbf16>
    %cst_15 = arith.constant dense<0.000000e+00> : vector<8x128xf32>
    %26 = tpu.matmul %24, %25, %cst_15 {dimension_numbers = #tpu.dot_dimension_numbers<[1], [0], [0], [1], [0, 0, 1, 1], [], []>} : vector<8x512xbf16>, vector<512x128xbf16>, vector<8x128xf32> -> vector<8x128xf32>
    %27 = arith.truncf %23 : vector<8x512xf32> to vector<8x512xbf16>
    %c512_16 = arith.constant 512 : index
    %c0_17 = arith.constant 0 : index
    %28 = vector.load %arg4[%c512_16, %c0_17] : memref<1024x128xbf16, #tpu.memory_space<vmem>>, vector<512x128xbf16>
    %cst_18 = arith.constant dense<0.000000e+00> : vector<8x128xf32>
    %29 = tpu.matmul %27, %28, %cst_18 {dimension_numbers = #tpu.dot_dimension_numbers<[1], [0], [0], [1], [0, 0, 1, 1], [], []>} : vector<8x512xbf16>, vector<512x128xbf16>, vector<8x128xf32> -> vector<8x128xf32>
    %30 = arith.addf %26, %29 : vector<8x128xf32>
    %c0_19 = arith.constant 0 : index
    %c0_20 = arith.constant 0 : index
    %31 = vector.load %arg5[%c0_19, %c0_20] : memref<1x128xf32, #tpu.memory_space<vmem>>, vector<1x128xf32>
    %32 = vector.broadcast %31 : vector<1x128xf32> to vector<8x128xf32>
    %33 = arith.addf %30, %32 : vector<8x128xf32>
    %c0_21 = arith.constant 0 : index
    %c0_22 = arith.constant 0 : index
    %34 = vector.load %arg6[%c0_21, %c0_22] : memref<8x128xf32, #tpu.memory_space<vmem>>, vector<8x128xf32>
    tpu.vector_store %arg6[%c0_21, %c0_22], %33 {strides = array<i32>} : memref<8x128xf32, #tpu.memory_space<vmem>>, vector<8x128xf32>,
    return
  }
  func.func @transform_0(%arg0: i32) -> (i32, i32) {
    %c0_i32 = arith.constant 0 : i32
    %c0_i32_0 = arith.constant 0 : i32
    return %arg0, %c0_i32 : i32, i32
  }
  func.func @transform_1(%arg0: i32) -> (i32, i32) {
    %c0_i32 = arith.constant 0 : i32
    %c0_i32_0 = arith.constant 0 : i32
    %c0_i32_1 = arith.constant 0 : i32
    return %c0_i32, %c0_i32_0 : i32, i32
  }
  func.func @transform_2(%arg0: i32) -> (i32, i32) {
    %c0_i32 = arith.constant 0 : i32
    %c0_i32_0 = arith.constant 0 : i32
    %c0_i32_1 = arith.constant 0 : i32
    return %c0_i32, %c0_i32_0 : i32, i32
  }
  func.func @transform_3(%arg0: i32) -> (i32, i32) {
    %c0_i32 = arith.constant 0 : i32
    %c0_i32_0 = arith.constant 0 : i32
    %c0_i32_1 = arith.constant 0 : i32
    return %c0_i32, %c0_i32_0 : i32, i32
  }
  func.func @transform_4(%arg0: i32) -> (i32, i32) {
    %c0_i32 = arith.constant 0 : i32
    %c0_i32_0 = arith.constant 0 : i32
    %c0_i32_1 = arith.constant 0 : i32
    return %c0_i32, %c0_i32_0 : i32, i32
  }
  func.func @transform_5(%arg0: i32) -> (i32, i32) {
    %c0_i32 = arith.constant 0 : i32
    %c0_i32_0 = arith.constant 0 : i32
    return %arg0, %c0_i32 : i32, i32
  }
}

</mosaic_0001>

<llo_original>
// kernel: mlp_forward.1
$region0: #{mlp_forward.1}
  #allocation0 [shape = 'u32[]', space=smem, size = 0x4, offset = 0x4, fixed_abs, tag = 'smem constant byte address 0x4 - core index']
  #allocation1 [shape = 'u32[144,128]{1,0:T(1,128)}', space=vmem, size = 0x12000, scoped, tag = 'internal scratch']
  %s0 = inlined_call_operand.vmem [shape: f32[8,784], index: 0, kind: input, shape index: {}]
  %s1 = inlined_call_operand.hbm [shape: bf16[784,1024], index: 1, kind: input, shape index: {}]
  %s2 = inlined_call_operand.hbm [shape: f32[1,1024], index: 2, kind: input, shape index: {}]
  %s3 = inlined_call_operand.hbm [shape: bf16[1024,128], index: 3, kind: input, shape index: {}]
  %s4 = inlined_call_operand.hbm [shape: f32[1,128], index: 4, kind: input, shape index: {}]
  %s5 = inlined_call_operand.vmem [shape: f32[8,128], index: 5, kind: output, shape index: {}]
  %s6 = sld [smem:[#allocation0]]
  $region46: #{mlp_forward.1} parent=0
    _
  %s8 = ssub.s32 1, %s6
  %s9 = scalar_select 0, %s8, %s6
  $region1: #{mlp_forward.1} parent=0
    #allocation2 [shape = 'u8[1605632]{0}', space=vmem, size = 0x188000, scoped, tag = 'input window, operand 1, single buffered']
    #allocation3 [shape = 's32[1]{0}', space=sflag, size = 0x4, scoped, tag = 'scoped memory for mlp_forward.1']
    #allocation4 [shape = 'u8[4096]{0}', space=vmem, size = 0x1000, scoped, tag = 'input window, operand 2, single buffered']
    #allocation5 [shape = 's32[1]{0}', space=sflag, size = 0x4, scoped, tag = 'scoped memory for mlp_forward.1']
    #allocation6 [shape = 'u8[262144]{0}', space=vmem, size = 0x40000, scoped, tag = 'input window, operand 3, single buffered']
    #allocation7 [shape = 'u8[512]{0}', space=vmem, size = 0x400, scoped, tag = 'input window, operand 4, single buffered']
    #allocation8 [shape = 's32[1]{0}', space=sflag, size = 0x4, scoped, tag = 'scoped memory for mlp_forward.1']
    %10 = vsyncpa [#allocation3], 0
    %11 = vsyncpa [#allocation5], 0
    %12 = vsyncpa [#allocation8], 0
    // Predicated region
    $region2: #{mlp_forward.1} parent=1 // pred_check
      _
    $region3: #{mlp_forward.1} parent=1 // pred_check_branch
      %14 = sbr.rel (0) target = $region5
    $region4: #{mlp_forward.1} parent=1 // pred_region
      _
    $region5: #{mlp_forward.1} parent=1 // pred_fallthru
      _
    // Predicated region
    $region6: #{mlp_forward.1} parent=1 // pred_check
      _
    $region7: #{mlp_forward.1} parent=1 // pred_check_branch
      %16 = sbr.rel (0) target = $region9
    $region8: #{mlp_forward.1} parent=1 // pred_region
      %s18 = ssub.s32 50176, 50176
      %19 = vsyncadd [#allocation3], %s18
      %s20 = sshll.u32 [#allocation2], 4
      %s21 = int_to_ptr.vmem [resolvable:$true] %s20
      %26 = dma.hbm_to_vmem [thread:$0]  %s1, 50176, %s21, [#allocation3], 512, 512, 32
    $region9: #{mlp_forward.1} parent=1 // pred_fallthru
      _
    // Predicated region
    $region10: #{mlp_forward.1} parent=1 // pred_check
      _
    $region11: #{mlp_forward.1} parent=1 // pred_check_branch
      %28 = sbr.rel (0) target = $region13
    $region12: #{mlp_forward.1} parent=1 // pred_region
      %s30 = ssub.s32 128, 128
      %31 = vsyncadd [#allocation5], %s30
      %s33 = sshll.u32 [#allocation4], 4
      %s34 = int_to_ptr.vmem [resolvable:$true] %s33
      %36 = dma.hbm_to_vmem [thread:$0]  %s2, 128, %s34, [#allocation5]
    $region13: #{mlp_forward.1} parent=1 // pred_fallthru
      _
    // Predicated region
    $region14: #{mlp_forward.1} parent=1 // pred_check
      _
    $region15: #{mlp_forward.1} parent=1 // pred_check_branch
      %38 = sbr.rel (0) target = $region17
    $region16: #{mlp_forward.1} parent=1 // pred_region
      %s40 = ssub.s32 8192, 8192
      %41 = vsyncadd [#allocation5], %s40
      %s42 = sshll.u32 [#allocation6], 4
      %s43 = int_to_ptr.vmem [resolvable:$true] %s42
      %48 = dma.hbm_to_vmem [thread:$0]  %s3, 8192, %s43, [#allocation5], 64, 64, 4
    $region17: #{mlp_forward.1} parent=1 // pred_fallthru
      _
    // Predicated region
    $region18: #{mlp_forward.1} parent=1 // pred_check
      _
    $region19: #{mlp_forward.1} parent=1 // pred_check_branch
      %50 = sbr.rel (0) target = $region21
    $region20: #{mlp_forward.1} parent=1 // pred_region
      %s52 = ssub.s32 16, 16
      %53 = vsyncadd [#allocation8], %s52
      %s55 = sshll.u32 [#allocation7], 4
      %s56 = int_to_ptr.vmem [resolvable:$true] %s55
      %58 = dma.hbm_to_vmem [thread:$0]  %s4, 16, %s56, [#allocation8]
    $region21: #{mlp_forward.1} parent=1 // pred_fallthru
      _
    // Predicated region
    $region22: #{mlp_forward.1} parent=1 // pred_check
      _
    $region23: #{mlp_forward.1} parent=1 // pred_check_branch
      %60 = sbr.rel (0) target = $region25
    $region24: #{mlp_forward.1} parent=1 // pred_region
      %61 = dma.done [#allocation3], 50176
    $region25: #{mlp_forward.1} parent=1 // pred_fallthru
      _
    // Predicated region
    $region26: #{mlp_forward.1} parent=1 // pred_check
      _
    $region27: #{mlp_forward.1} parent=1 // pred_check_branch
      %63 = sbr.rel (0) target = $region29
    $region28: #{mlp_forward.1} parent=1 // pred_region
      %64 = dma.done [#allocation5], 128
    $region29: #{mlp_forward.1} parent=1 // pred_fallthru
      _
    // Predicated region
    $region30: #{mlp_forward.1} parent=1 // pred_check
      _
    $region31: #{mlp_forward.1} parent=1 // pred_check_branch
      %66 = sbr.rel (0) target = $region33
    $region32: #{mlp_forward.1} parent=1 // pred_region
      %67 = dma.done [#allocation5], 8192
    $region33: #{mlp_forward.1} parent=1 // pred_fallthru
      _
    // Predicated region
    $region34: #{mlp_forward.1} parent=1 // pred_check
      _
    $region35: #{mlp_forward.1} parent=1 // pred_check_branch
      %69 = sbr.rel (0) target = $region37
    $region36: #{mlp_forward.1} parent=1 // pred_region
      %70 = dma.done [#allocation8], 16
    $region37: #{mlp_forward.1} parent=1 // pred_fallthru
      _
    %v72 = vld [vmem:[%s0] sm:$0xff]
    %v73 = vld [vmem:[%s0 + $0x8] sm:$0xff]
    %v74 = vld [vmem:[%s0 + $0x10] sm:$0xff]
    %v75 = vld [vmem:[%s0 + $0x18] sm:$0xff]
    %v76 = vld [vmem:[%s0 + $0x20] sm:$0xff]
    %v77 = vld [vmem:[%s0 + $0x28] sm:$0xff]
    %v78 = vld [vmem:[%s0 + $0x30] sm:$0xff]
    %v79 = vpack.c.bf16 %v72, %v72
    %v80 = vpack.c.bf16 %v73, %v73
    %v81 = vpack.c.bf16 %v74, %v74
    %v82 = vpack.c.bf16 %v75, %v75
    %v83 = vpack.c.bf16 %v76, %v76
    %v84 = vpack.c.bf16 %v77, %v77
    %v85 = vpack.c.bf16 %v78, %v78
    %v86 = vld [vmem:[#allocation2] sm:$0xff]
    %v87 = vld [vmem:[#allocation2 + $0x8] sm:$0xff]
    %v88 = vld [vmem:[#allocation2 + $0x20] sm:$0xff]
    %v89 = vld [vmem:[#allocation2 + $0x28] sm:$0xff]
    %v90 = vld [vmem:[#allocation2 + $0x40] sm:$0xff]
    %v91 = vld [vmem:[#allocation2 + $0x48] sm:$0xff]
    %v92 = vld [vmem:[#allocation2 + $0x60] sm:$0xff]
    %v93 = vld [vmem:[#allocation2 + $0x68] sm:$0xff]
    %v94 = vld [vmem:[#allocation2 + $0x80] sm:$0xff]
    %v95 = vld [vmem:[#allocation2 + $0x88] sm:$0xff]
    %v96 = vld [vmem:[#allocation2 + $0xa0] sm:$0xff]
    %v97 = vld [vmem:[#allocation2 + $0xa8] sm:$0xff]
    %v98 = vld [vmem:[#allocation2 + $0xc0] sm:$0xff]
    %v99 = vld [vmem:[#allocation2 + $0xc8] sm:$0xff]
    %v100 = vld [vmem:[#allocation2 + $0xe0] sm:$0xff]
    %v101 = vld [vmem:[#allocation2 + $0xe8] sm:$0xff]
    %v102 = vld [vmem:[#allocation2 + $0x100] sm:$0xff]
    %v103 = vld [vmem:[#allocation2 + $0x108] sm:$0xff]
    %v104 = vld [vmem:[#allocation2 + $0x120] sm:$0xff]
    %v105 = vld [vmem:[#allocation2 + $0x128] sm:$0xff]
    %v106 = vld [vmem:[#allocation2 + $0x140] sm:$0xff]
    %v107 = vld [vmem:[#allocation2 + $0x148] sm:$0xff]
    %v108 = vld [vmem:[#allocation2 + $0x160] sm:$0xff]
    %v109 = vld [vmem:[#allocation2 + $0x168] sm:$0xff]
    %v110 = vld [vmem:[#allocation2 + $0x180] sm:$0xff]
    %v111 = vld [vmem:[#allocation2 + $0x188] sm:$0xff]
    %v112 = vld [vmem:[#allocation2 + $0x1a0] sm:$0xff]
    %v113 = vld [vmem:[#allocation2 + $0x1a8] sm:$0xff]
    %v114 = vld [vmem:[#allocation2 + $0x1c0] sm:$0xff]
    %v115 = vld [vmem:[#allocation2 + $0x1c8] sm:$0xff]
    %v116 = vld [vmem:[#allocation2 + $0x1e0] sm:$0xff]
    %v117 = vld [vmem:[#allocation2 + $0x1e8] sm:$0xff]
    %v118 = vld [vmem:[#allocation2 + $0x200] sm:$0xff]
    %v119 = vld [vmem:[#allocation2 + $0x208] sm:$0xff]
    %v120 = vld [vmem:[#allocation2 + $0x220] sm:$0xff]
    %v121 = vld [vmem:[#allocation2 + $0x228] sm:$0xff]
    %v122 = vld [vmem:[#allocation2 + $0x240] sm:$0xff]
    %v123 = vld [vmem:[#allocation2 + $0x248] sm:$0xff]
    %v124 = vld [vmem:[#allocation2 + $0x260] sm:$0xff]
    %v125 = vld [vmem:[#allocation2 + $0x268] sm:$0xff]
    %v126 = vld [vmem:[#allocation2 + $0x280] sm:$0xff]
    %v127 = vld [vmem:[#allocation2 + $0x288] sm:$0xff]
    %v128 = vld [vmem:[#allocation2 + $0x2a0] sm:$0xff]
    %v129 = vld [vmem:[#allocation2 + $0x2a8] sm:$0xff]
    %v130 = vld [vmem:[#allocation2 + $0x2c0] sm:$0xff]
    %v131 = vld [vmem:[#allocation2 + $0x2c8] sm:$0xff]
    %v132 = vld [vmem:[#allocation2 + $0x2e0] sm:$0xff]
    %v133 = vld [vmem:[#allocation2 + $0x2e8] sm:$0xff]
    %v134 = vld [vmem:[#allocation2 + $0x300] sm:$0xff]
    %v135 = vld [vmem:[#allocation2 + $0x308] sm:$0xff]
    %v136 = vld [vmem:[#allocation2 + $0x320] sm:$0xff]
    %v137 = vld [vmem:[#allocation2 + $0x328] sm:$0xff]
    %v138 = vld [vmem:[#allocation2 + $0x340] sm:$0xff]
    %v139 = vld [vmem:[#allocation2 + $0x348] sm:$0xff]
    %v140 = vld [vmem:[#allocation2 + $0x360] sm:$0xff]
    %v141 = vld [vmem:[#allocation2 + $0x368] sm:$0xff]
    %v142 = vld [vmem:[#allocation2 + $0x380] sm:$0xff]
    %v143 = vld [vmem:[#allocation2 + $0x388] sm:$0xff]
    %v144 = vld [vmem:[#allocation2 + $0x3a0] sm:$0xff]
    %v145 = vld [vmem:[#allocation2 + $0x3a8] sm:$0xff]
    %v146 = vld [vmem:[#allocation2 + $0x3c0] sm:$0xff]
    %v147 = vld [vmem:[#allocation2 + $0x3c8] sm:$0xff]
    %v148 = vld [vmem:[#allocation2 + $0x3e0] sm:$0xff]
    %v149 = vld [vmem:[#allocation2 + $0x3e8] sm:$0xff]
    %v150 = vld [vmem:[#allocation2 + $0x400] sm:$0xff]
    %v151 = vld [vmem:[#allocation2 + $0x408] sm:$0xff]
    %v152 = vld [vmem:[#allocation2 + $0x420] sm:$0xff]
    %v153 = vld [vmem:[#allocation2 + $0x428] sm:$0xff]
    %v154 = vld [vmem:[#allocation2 + $0x440] sm:$0xff]
    %v155 = vld [vmem:[#allocation2 + $0x448] sm:$0xff]
    %v156 = vld [vmem:[#allocation2 + $0x460] sm:$0xff]
    %v157 = vld [vmem:[#allocation2 + $0x468] sm:$0xff]
    %v158 = vld [vmem:[#allocation2 + $0x480] sm:$0xff]
    %v159 = vld [vmem:[#allocation2 + $0x488] sm:$0xff]
    %v160 = vld [vmem:[#allocation2 + $0x4a0] sm:$0xff]
    %v161 = vld [vmem:[#allocation2 + $0x4a8] sm:$0xff]
    %v162 = vld [vmem:[#allocation2 + $0x4c0] sm:$0xff]
    %v163 = vld [vmem:[#allocation2 + $0x4c8] sm:$0xff]
    %v164 = vld [vmem:[#allocation2 + $0x4e0] sm:$0xff]
    %v165 = vld [vmem:[#allocation2 + $0x4e8] sm:$0xff]
    %v166 = vld [vmem:[#allocation2 + $0x500] sm:$0xff]
    %v167 = vld [vmem:[#allocation2 + $0x508] sm:$0xff]
    %v168 = vld [vmem:[#allocation2 + $0x520] sm:$0xff]
    %v169 = vld [vmem:[#allocation2 + $0x528] sm:$0xff]
    %v170 = vld [vmem:[#allocation2 + $0x540] sm:$0xff]
    %v171 = vld [vmem:[#allocation2 + $0x548] sm:$0xff]
    %v172 = vld [vmem:[#allocation2 + $0x560] sm:$0xff]
    %v173 = vld [vmem:[#allocation2 + $0x568] sm:$0xff]
    %v174 = vld [vmem:[#allocation2 + $0x580] sm:$0xff]
    %v175 = vld [vmem:[#allocation2 + $0x588] sm:$0xff]
    %v176 = vld [vmem:[#allocation2 + $0x5a0] sm:$0xff]
    %v177 = vld [vmem:[#allocation2 + $0x5a8] sm:$0xff]
    %v178 = vld [vmem:[#allocation2 + $0x5c0] sm:$0xff]
    %v179 = vld [vmem:[#allocation2 + $0x5c8] sm:$0xff]
    %v180 = vld [vmem:[#allocation2 + $0x5e0] sm:$0xff]
    %v181 = vld [vmem:[#allocation2 + $0x5e8] sm:$0xff]
    %v182 = vld [vmem:[#allocation2 + $0x600] sm:$0xff]
    %v183 = vld [vmem:[#allocation2 + $0x608] sm:$0xff]
    %v184 = vld [vmem:[#allocation2 + $0x620] sm:$0xff]
    %v185 = vld [vmem:[#allocation2 + $0x628] sm:$0xff]
    %v186 = vld [vmem:[#allocation2 + $0x640] sm:$0xff]
    %v187 = vld [vmem:[#allocation2 + $0x648] sm:$0xff]
    %v188 = vld [vmem:[#allocation2 + $0x660] sm:$0xff]
    %v189 = vld [vmem:[#allocation2 + $0x668] sm:$0xff]
    %v190 = vld [vmem:[#allocation2 + $0x680] sm:$0xff]
    %v191 = vld [vmem:[#allocation2 + $0x688] sm:$0xff]
    %v192 = vld [vmem:[#allocation2 + $0x6a0] sm:$0xff]
    %v193 = vld [vmem:[#allocation2 + $0x6a8] sm:$0xff]
    %v194 = vld [vmem:[#allocation2 + $0x6c0] sm:$0xff]
    %v195 = vld [vmem:[#allocation2 + $0x6c8] sm:$0xff]
    %v196 = vld [vmem:[#allocation2 + $0x6e0] sm:$0xff]
    %v197 = vld [vmem:[#allocation2 + $0x6e8] sm:$0xff]
    %v198 = vld [vmem:[#allocation2 + $0x700] sm:$0xff]
    %v199 = vld [vmem:[#allocation2 + $0x708] sm:$0xff]
    %v200 = vld [vmem:[#allocation2 + $0x720] sm:$0xff]
    %v201 = vld [vmem:[#allocation2 + $0x728] sm:$0xff]
    %v202 = vld [vmem:[#allocation2 + $0x740] sm:$0xff]
    %v203 = vld [vmem:[#allocation2 + $0x748] sm:$0xff]
    %v204 = vld [vmem:[#allocation2 + $0x760] sm:$0xff]
    %v205 = vld [vmem:[#allocation2 + $0x768] sm:$0xff]
    %v206 = vld [vmem:[#allocation2 + $0x780] sm:$0xff]
    %v207 = vld [vmem:[#allocation2 + $0x788] sm:$0xff]
    %v208 = vld [vmem:[#allocation2 + $0x7a0] sm:$0xff]
    %v209 = vld [vmem:[#allocation2 + $0x7a8] sm:$0xff]
    %v210 = vld [vmem:[#allocation2 + $0x7c0] sm:$0xff]
    %v211 = vld [vmem:[#allocation2 + $0x7c8] sm:$0xff]
    %v212 = vld [vmem:[#allocation2 + $0x7e0] sm:$0xff]
    %v213 = vld [vmem:[#allocation2 + $0x7e8] sm:$0xff]
    %v214 = vld [vmem:[#allocation2 + $0x800] sm:$0xff]
    %v215 = vld [vmem:[#allocation2 + $0x808] sm:$0xff]
    %v216 = vld [vmem:[#allocation2 + $0x820] sm:$0xff]
    %v217 = vld [vmem:[#allocation2 + $0x828] sm:$0xff]
    %v218 = vld [vmem:[#allocation2 + $0x840] sm:$0xff]
    %v219 = vld [vmem:[#allocation2 + $0x848] sm:$0xff]
    %v220 = vld [vmem:[#allocation2 + $0x860] sm:$0xff]
    %v221 = vld [vmem:[#allocation2 + $0x868] sm:$0xff]
    %v222 = vld [vmem:[#allocation2 + $0x880] sm:$0xff]
    %v223 = vld [vmem:[#allocation2 + $0x888] sm:$0xff]
    %v224 = vld [vmem:[#allocation2 + $0x8a0] sm:$0xff]
    %v225 = vld [vmem:[#allocation2 + $0x8a8] sm:$0xff]
    %v226 = vld [vmem:[#allocation2 + $0x8c0] sm:$0xff]
    %v227 = vld [vmem:[#allocation2 + $0x8c8] sm:$0xff]
    %v228 = vld [vmem:[#allocation2 + $0x8e0] sm:$0xff]
    %v229 = vld [vmem:[#allocation2 + $0x8e8] sm:$0xff]
    %v230 = vld [vmem:[#allocation2 + $0x900] sm:$0xff]
    %v231 = vld [vmem:[#allocation2 + $0x908] sm:$0xff]
    %v232 = vld [vmem:[#allocation2 + $0x920] sm:$0xff]
    %v233 = vld [vmem:[#allocation2 + $0x928] sm:$0xff]
    %v234 = vld [vmem:[#allocation2 + $0x940] sm:$0xff]
    %v235 = vld [vmem:[#allocation2 + $0x948] sm:$0xff]
    %v236 = vld [vmem:[#allocation2 + $0x960] sm:$0xff]
    %v237 = vld [vmem:[#allocation2 + $0x968] sm:$0xff]
    %v238 = vld [vmem:[#allocation2 + $0x980] sm:$0xff]
    %v239 = vld [vmem:[#allocation2 + $0x988] sm:$0xff]
    %v240 = vld [vmem:[#allocation2 + $0x9a0] sm:$0xff]
    %v241 = vld [vmem:[#allocation2 + $0x9a8] sm:$0xff]
    %v242 = vld [vmem:[#allocation2 + $0x9c0] sm:$0xff]
    %v243 = vld [vmem:[#allocation2 + $0x9c8] sm:$0xff]
    %v244 = vld [vmem:[#allocation2 + $0x9e0] sm:$0xff]
    %v245 = vld [vmem:[#allocation2 + $0x9e8] sm:$0xff]
    %v246 = vld [vmem:[#allocation2 + $0xa00] sm:$0xff]
    %v247 = vld [vmem:[#allocation2 + $0xa08] sm:$0xff]
    %v248 = vld [vmem:[#allocation2 + $0xa20] sm:$0xff]
    %v249 = vld [vmem:[#allocation2 + $0xa28] sm:$0xff]
    %v250 = vld [vmem:[#allocation2 + $0xa40] sm:$0xff]
    %v251 = vld [vmem:[#allocation2 + $0xa48] sm:$0xff]
    %v252 = vld [vmem:[#allocation2 + $0xa60] sm:$0xff]
    %v253 = vld [vmem:[#allocation2 + $0xa68] sm:$0xff]
    %v254 = vld [vmem:[#allocation2 + $0xa80] sm:$0xff]
    %v255 = vld [vmem:[#allocation2 + $0xa88] sm:$0xff]
    %v256 = vld [vmem:[#allocation2 + $0xaa0] sm:$0xff]
    %v257 = vld [vmem:[#allocation2 + $0xaa8] sm:$0xff]
    %v258 = vld [vmem:[#allocation2 + $0xac0] sm:$0xff]
    %v259 = vld [vmem:[#allocation2 + $0xac8] sm:$0xff]
    %v260 = vld [vmem:[#allocation2 + $0xae0] sm:$0xff]
    %v261 = vld [vmem:[#allocation2 + $0xae8] sm:$0xff]
    %v262 = vld [vmem:[#allocation2 + $0xb00] sm:$0xff]
    %v263 = vld [vmem:[#allocation2 + $0xb08] sm:$0xff]
    %v264 = vld [vmem:[#allocation2 + $0xb20] sm:$0xff]
    %v265 = vld [vmem:[#allocation2 + $0xb28] sm:$0xff]
    %v266 = vld [vmem:[#allocation2 + $0xb40] sm:$0xff]
    %v267 = vld [vmem:[#allocation2 + $0xb48] sm:$0xff]
    %v268 = vld [vmem:[#allocation2 + $0xb60] sm:$0xff]
    %v269 = vld [vmem:[#allocation2 + $0xb68] sm:$0xff]
    %v270 = vld [vmem:[#allocation2 + $0xb80] sm:$0xff]
    %v271 = vld [vmem:[#allocation2 + $0xb88] sm:$0xff]
    %v272 = vld [vmem:[#allocation2 + $0xba0] sm:$0xff]
    %v273 = vld [vmem:[#allocation2 + $0xba8] sm:$0xff]
    %v274 = vld [vmem:[#allocation2 + $0xbc0] sm:$0xff]
    %v275 = vld [vmem:[#allocation2 + $0xbc8] sm:$0xff]
    %v276 = vld [vmem:[#allocation2 + $0xbe0] sm:$0xff]
    %v277 = vld [vmem:[#allocation2 + $0xbe8] sm:$0xff]
    %v278 = vld [vmem:[#allocation2 + $0xc00] sm:$0xff]
    %v279 = vld [vmem:[#allocation2 + $0xc08] sm:$0xff]
    %v280 = vld [vmem:[#allocation2 + $0xc20] sm:$0xff]
    %v281 = vld [vmem:[#allocation2 + $0xc28] sm:$0xff]
    %v282 = vld [vmem:[#allocation4] sm:$0xf]
    %v284 = vlaneseq
    %v285 = vshrl.u32 %v284, 7
    %v286 = vsub.s32 0, %v285
    %v287 = vrot.slane %v282, %v286
    %v288 = vlaneseq
    %v289 = vshrl.u32 %v288, 7
    %v290 = vsub.s32 1, %v289
    %v291 = vrot.slane %v282, %v290
    %v292 = vlaneseq
    %v293 = vshrl.u32 %v292, 7
    %v294 = vsub.s32 2, %v293
    %v295 = vrot.slane %v282, %v294
    %v296 = vlaneseq
    %v297 = vshrl.u32 %v296, 7
    %v298 = vsub.s32 3, %v297
    %v299 = vrot.slane %v282, %v298
    %v500 = vunpack.c.l.b16 %v86
    %v501 = vunpack.c.h.b16 %v86
    %v502 = vunpack.c.l.b16 %v87
    %v503 = vunpack.c.h.b16 %v87
    %v504 = vunpack.c.l.b16 %v88
    %v505 = vunpack.c.h.b16 %v88
    %v506 = vunpack.c.l.b16 %v89
    %v507 = vunpack.c.h.b16 %v89
    %v508 = vunpack.c.l.b16 %v90
    %v509 = vunpack.c.h.b16 %v90
    %v510 = vunpack.c.l.b16 %v91
    %v511 = vunpack.c.h.b16 %v91
    %v512 = vunpack.c.l.b16 %v92
    %v513 = vunpack.c.h.b16 %v92
    %v514 = vunpack.c.l.b16 %v93
    %v515 = vunpack.c.h.b16 %v93
    %v516 = vunpack.c.l.b16 %v94
    %v517 = vunpack.c.h.b16 %v94
    %v518 = vunpack.c.l.b16 %v95
    %v519 = vunpack.c.h.b16 %v95
    %v520 = vunpack.c.l.b16 %v96
    %v521 = vunpack.c.h.b16 %v96
    %v522 = vunpack.c.l.b16 %v97
    %v523 = vunpack.c.h.b16 %v97
    %v524 = vunpack.c.l.b16 %v98
    %v525 = vunpack.c.h.b16 %v98
    %v526 = vunpack.c.l.b16 %v99
    %v527 = vunpack.c.h.b16 %v99
    %v528 = vunpack.c.l.b16 %v100
    %v529 = vunpack.c.h.b16 %v100
    %v530 = vunpack.c.l.b16 %v101
    %v531 = vunpack.c.h.b16 %v101
    %v532 = vunpack.c.l.b16 %v102
    %v533 = vunpack.c.h.b16 %v102
    %v534 = vunpack.c.l.b16 %v103
    %v535 = vunpack.c.h.b16 %v103
    %v536 = vunpack.c.l.b16 %v104
    %v537 = vunpack.c.h.b16 %v104
    %v538 = vunpack.c.l.b16 %v105
    %v539 = vunpack.c.h.b16 %v105
    %v540 = vunpack.c.l.b16 %v106
    %v541 = vunpack.c.h.b16 %v106
    %v542 = vunpack.c.l.b16 %v107
    %v543 = vunpack.c.h.b16 %v107
    %v544 = vunpack.c.l.b16 %v108
    %v545 = vunpack.c.h.b16 %v108
    %v546 = vunpack.c.l.b16 %v109
    %v547 = vunpack.c.h.b16 %v109
    %v548 = vunpack.c.l.b16 %v110
    %v549 = vunpack.c.h.b16 %v110
    %v550 = vunpack.c.l.b16 %v111
    %v551 = vunpack.c.h.b16 %v111
    %v552 = vunpack.c.l.b16 %v112
    %v553 = vunpack.c.h.b16 %v112
    %v554 = vunpack.c.l.b16 %v113
    %v555 = vunpack.c.h.b16 %v113
    %v556 = vunpack.c.l.b16 %v114
    %v557 = vunpack.c.h.b16 %v114
    %v558 = vunpack.c.l.b16 %v115
    %v559 = vunpack.c.h.b16 %v115
    %v560 = vunpack.c.l.b16 %v116
    %v561 = vunpack.c.h.b16 %v116
    %v562 = vunpack.c.l.b16 %v117
    %v563 = vunpack.c.h.b16 %v117
    %v564 = vunpack.c.l.b16 %v118
    %v565 = vunpack.c.h.b16 %v118
    %v566 = vunpack.c.l.b16 %v119
    %v567 = vunpack.c.h.b16 %v119
    %v568 = vunpack.c.l.b16 %v120
    %v569 = vunpack.c.h.b16 %v120
    %v570 = vunpack.c.l.b16 %v121
    %v571 = vunpack.c.h.b16 %v121
    %v572 = vunpack.c.l.b16 %v122
    %v573 = vunpack.c.h.b16 %v122
    %v574 = vunpack.c.l.b16 %v123
    %v575 = vunpack.c.h.b16 %v123
    %v576 = vunpack.c.l.b16 %v124
    %v577 = vunpack.c.h.b16 %v124
    %v578 = vunpack.c.l.b16 %v125
    %v579 = vunpack.c.h.b16 %v125
    %v580 = vunpack.c.l.b16 %v126
    %v581 = vunpack.c.h.b16 %v126
    %v582 = vunpack.c.l.b16 %v127
    %v583 = vunpack.c.h.b16 %v127
    %v584 = vunpack.c.l.b16 %v128
    %v585 = vunpack.c.h.b16 %v128
    %v586 = vunpack.c.l.b16 %v129
    %v587 = vunpack.c.h.b16 %v129
    %v588 = vunpack.c.l.b16 %v130
    %v589 = vunpack.c.h.b16 %v130
    %v590 = vunpack.c.l.b16 %v131
    %v591 = vunpack.c.h.b16 %v131
    %v592 = vunpack.c.l.b16 %v132
    %v593 = vunpack.c.h.b16 %v132
    %v594 = vunpack.c.l.b16 %v133
    %v595 = vunpack.c.h.b16 %v133
    %v596 = vunpack.c.l.b16 %v134
    %v597 = vunpack.c.h.b16 %v134
    %v598 = vunpack.c.l.b16 %v135
    %v599 = vunpack.c.h.b16 %v135
    %v600 = vunpack.c.l.b16 %v136
    %v601 = vunpack.c.h.b16 %v136
    %v602 = vunpack.c.l.b16 %v137
    %v603 = vunpack.c.h.b16 %v137
    %v604 = vunpack.c.l.b16 %v138
    %v605 = vunpack.c.h.b16 %v138
    %v606 = vunpack.c.l.b16 %v139
    %v607 = vunpack.c.h.b16 %v139
    %v608 = vunpack.c.l.b16 %v140
    %v609 = vunpack.c.h.b16 %v140
    %v610 = vunpack.c.l.b16 %v141
    %v611 = vunpack.c.h.b16 %v141
    %v612 = vunpack.c.l.b16 %v142
    %v613 = vunpack.c.h.b16 %v142
    %v614 = vunpack.c.l.b16 %v143
    %v615 = vunpack.c.h.b16 %v143
    %v616 = vunpack.c.l.b16 %v144
    %v617 = vunpack.c.h.b16 %v144
    %v618 = vunpack.c.l.b16 %v145
    %v619 = vunpack.c.h.b16 %v145
    %v620 = vunpack.c.l.b16 %v146
    %v621 = vunpack.c.h.b16 %v146
    %v622 = vunpack.c.l.b16 %v147
    %v623 = vunpack.c.h.b16 %v147
    %v624 = vunpack.c.l.b16 %v148
    %v625 = vunpack.c.h.b16 %v148
    %v626 = vunpack.c.l.b16 %v149
    %v627 = vunpack.c.h.b16 %v149
    %v628 = vunpack.c.l.b16 %v150
    %v629 = vunpack.c.h.b16 %v150
    %v630 = vunpack.c.l.b16 %v151
    %v631 = vunpack.c.h.b16 %v151
    %v632 = vunpack.c.l.b16 %v152
    %v633 = vunpack.c.h.b16 %v152
    %v634 = vunpack.c.l.b16 %v153
    %v635 = vunpack.c.h.b16 %v153
    %v636 = vunpack.c.l.b16 %v154
    %v637 = vunpack.c.h.b16 %v154
    %v638 = vunpack.c.l.b16 %v155
    %v639 = vunpack.c.h.b16 %v155
    %v640 = vunpack.c.l.b16 %v156
    %v641 = vunpack.c.h.b16 %v156
    %v642 = vunpack.c.l.b16 %v157
    %v643 = vunpack.c.h.b16 %v157
    %v644 = vunpack.c.l.b16 %v158
    %v645 = vunpack.c.h.b16 %v158
    %v646 = vunpack.c.l.b16 %v159
    %v647 = vunpack.c.h.b16 %v159
    %v648 = vunpack.c.l.b16 %v160
    %v649 = vunpack.c.h.b16 %v160
    %v650 = vunpack.c.l.b16 %v161
    %v651 = vunpack.c.h.b16 %v161
    %v652 = vunpack.c.l.b16 %v162
    %v653 = vunpack.c.h.b16 %v162
    %v654 = vunpack.c.l.b16 %v163
    %v655 = vunpack.c.h.b16 %v163
    %v656 = vunpack.c.l.b16 %v164
    %v657 = vunpack.c.h.b16 %v164
    %v658 = vunpack.c.l.b16 %v165
    %v659 = vunpack.c.h.b16 %v165
    %v660 = vunpack.c.l.b16 %v166
    %v661 = vunpack.c.h.b16 %v166
    %v662 = vunpack.c.l.b16 %v167
    %v663 = vunpack.c.h.b16 %v167
    %v664 = vunpack.c.l.b16 %v168
    %v665 = vunpack.c.h.b16 %v168
    %v666 = vunpack.c.l.b16 %v169
    %v667 = vunpack.c.h.b16 %v169
    %v668 = vunpack.c.l.b16 %v170
    %v669 = vunpack.c.h.b16 %v170
    %v670 = vunpack.c.l.b16 %v171
    %v671 = vunpack.c.h.b16 %v171
    %v672 = vunpack.c.l.b16 %v172
    %v673 = vunpack.c.h.b16 %v172
    %v674 = vunpack.c.l.b16 %v173
    %v675 = vunpack.c.h.b16 %v173
    %v676 = vunpack.c.l.b16 %v174
    %v677 = vunpack.c.h.b16 %v174
    %v678 = vunpack.c.l.b16 %v175
    %v679 = vunpack.c.h.b16 %v175
    %v680 = vunpack.c.l.b16 %v176
    %v681 = vunpack.c.h.b16 %v176
    %v682 = vunpack.c.l.b16 %v177
    %v683 = vunpack.c.h.b16 %v177
    %v684 = vunpack.c.l.b16 %v178
    %v685 = vunpack.c.h.b16 %v178
    %v686 = vunpack.c.l.b16 %v179
    %v687 = vunpack.c.h.b16 %v179
    %v688 = vunpack.c.l.b16 %v180
    %v689 = vunpack.c.h.b16 %v180
    %v690 = vunpack.c.l.b16 %v181
    %v691 = vunpack.c.h.b16 %v181
    %v692 = vunpack.c.l.b16 %v182
    %v693 = vunpack.c.h.b16 %v182
    %v694 = vunpack.c.l.b16 %v183
    %v695 = vunpack.c.h.b16 %v183
    %v696 = vunpack.c.l.b16 %v184
    %v697 = vunpack.c.h.b16 %v184
    %v698 = vunpack.c.l.b16 %v185
    %v699 = vunpack.c.h.b16 %v185
    %v700 = vunpack.c.l.b16 %v186
    %v701 = vunpack.c.h.b16 %v186
    %v702 = vunpack.c.l.b16 %v187
    %v703 = vunpack.c.h.b16 %v187
    %v704 = vunpack.c.l.b16 %v188
    %v705 = vunpack.c.h.b16 %v188
    %v706 = vunpack.c.l.b16 %v189
    %v707 = vunpack.c.h.b16 %v189
    %v708 = vunpack.c.l.b16 %v190
    %v709 = vunpack.c.h.b16 %v190
    %v710 = vunpack.c.l.b16 %v191
    %v711 = vunpack.c.h.b16 %v191
    %v712 = vunpack.c.l.b16 %v192
    %v713 = vunpack.c.h.b16 %v192
    %v714 = vunpack.c.l.b16 %v193
    %v715 = vunpack.c.h.b16 %v193
    %v716 = vunpack.c.l.b16 %v194
    %v717 = vunpack.c.h.b16 %v194
    %v718 = vunpack.c.l.b16 %v195
    %v719 = vunpack.c.h.b16 %v195
    %v720 = vunpack.c.l.b16 %v196
    %v721 = vunpack.c.h.b16 %v196
    %v722 = vunpack.c.l.b16 %v197
    %v723 = vunpack.c.h.b16 %v197
    %v724 = vunpack.c.l.b16 %v198
    %v725 = vunpack.c.h.b16 %v198
    %v726 = vunpack.c.l.b16 %v199
    %v727 = vunpack.c.h.b16 %v199
    %v728 = vunpack.c.l.b16 %v200
    %v729 = vunpack.c.h.b16 %v200
    %v730 = vunpack.c.l.b16 %v201
    %v731 = vunpack.c.h.b16 %v201
    %v732 = vunpack.c.l.b16 %v202
    %v733 = vunpack.c.h.b16 %v202
    %v734 = vunpack.c.l.b16 %v203
    %v735 = vunpack.c.h.b16 %v203
    %v736 = vunpack.c.l.b16 %v204
    %v737 = vunpack.c.h.b16 %v204
    %v738 = vunpack.c.l.b16 %v205
    %v739 = vunpack.c.h.b16 %v205
    %v740 = vunpack.c.l.b16 %v206
    %v741 = vunpack.c.h.b16 %v206
    %v742 = vunpack.c.l.b16 %v207
    %v743 = vunpack.c.h.b16 %v207
    %v744 = vunpack.c.l.b16 %v208
    %v745 = vunpack.c.h.b16 %v208
    %v746 = vunpack.c.l.b16 %v209
    %v747 = vunpack.c.h.b16 %v209
    %v748 = vunpack.c.l.b16 %v210
    %v749 = vunpack.c.h.b16 %v210
    %v750 = vunpack.c.l.b16 %v211
    %v751 = vunpack.c.h.b16 %v211
    %v752 = vunpack.c.l.b16 %v212
    %v753 = vunpack.c.h.b16 %v212
    %v754 = vunpack.c.l.b16 %v213
    %v755 = vunpack.c.h.b16 %v213
    %v756 = vunpack.c.l.b16 %v214
    %v757 = vunpack.c.h.b16 %v214
    %v758 = vunpack.c.l.b16 %v215
    %v759 = vunpack.c.h.b16 %v215
    %v760 = vunpack.c.l.b16 %v216
    %v761 = vunpack.c.h.b16 %v216
    %v762 = vunpack.c.l.b16 %v217
    %v763 = vunpack.c.h.b16 %v217
    %v764 = vunpack.c.l.b16 %v218
    %v765 = vunpack.c.h.b16 %v218
    %v766 = vunpack.c.l.b16 %v219
    %v767 = vunpack.c.h.b16 %v219
    %v768 = vunpack.c.l.b16 %v220
    %v769 = vunpack.c.h.b16 %v220
    %v770 = vunpack.c.l.b16 %v221
    %v771 = vunpack.c.h.b16 %v221
    %v772 = vunpack.c.l.b16 %v222
    %v773 = vunpack.c.h.b16 %v222
    %v774 = vunpack.c.l.b16 %v223
    %v775 = vunpack.c.h.b16 %v223
    %v776 = vunpack.c.l.b16 %v224
    %v777 = vunpack.c.h.b16 %v224
    %v778 = vunpack.c.l.b16 %v225
    %v779 = vunpack.c.h.b16 %v225
    %v780 = vunpack.c.l.b16 %v226
    %v781 = vunpack.c.h.b16 %v226
    %v782 = vunpack.c.l.b16 %v227
    %v783 = vunpack.c.h.b16 %v227
    %v784 = vunpack.c.l.b16 %v228
    %v785 = vunpack.c.h.b16 %v228
    %v786 = vunpack.c.l.b16 %v229
    %v787 = vunpack.c.h.b16 %v229
    %v788 = vunpack.c.l.b16 %v230
    %v789 = vunpack.c.h.b16 %v230
    %v790 = vunpack.c.l.b16 %v231
    %v791 = vunpack.c.h.b16 %v231
    %v792 = vunpack.c.l.b16 %v232
    %v793 = vunpack.c.h.b16 %v232
    %v794 = vunpack.c.l.b16 %v233
    %v795 = vunpack.c.h.b16 %v233
    %v796 = vunpack.c.l.b16 %v234
    %v797 = vunpack.c.h.b16 %v234
    %v798 = vunpack.c.l.b16 %v235
    %v799 = vunpack.c.h.b16 %v235
    %v800 = vunpack.c.l.b16 %v236
    %v801 = vunpack.c.h.b16 %v236
    %v802 = vunpack.c.l.b16 %v237
    %v803 = vunpack.c.h.b16 %v237
    %v804 = vunpack.c.l.b16 %v238
    %v805 = vunpack.c.h.b16 %v238
    %v806 = vunpack.c.l.b16 %v239
    %v807 = vunpack.c.h.b16 %v239
    %v808 = vunpack.c.l.b16 %v240
    %v809 = vunpack.c.h.b16 %v240
    %v810 = vunpack.c.l.b16 %v241
    %v811 = vunpack.c.h.b16 %v241
    %v812 = vunpack.c.l.b16 %v242
    %v813 = vunpack.c.h.b16 %v242
    %v814 = vunpack.c.l.b16 %v243
    %v815 = vunpack.c.h.b16 %v243
    %v816 = vunpack.c.l.b16 %v244
    %v817 = vunpack.c.h.b16 %v244
    %v818 = vunpack.c.l.b16 %v245
    %v819 = vunpack.c.h.b16 %v245
    %v820 = vunpack.c.l.b16 %v246
    %v821 = vunpack.c.h.b16 %v246
    %v822 = vunpack.c.l.b16 %v247
    %v823 = vunpack.c.h.b16 %v247
    %v824 = vunpack.c.l.b16 %v248
    %v825 = vunpack.c.h.b16 %v248
    %v826 = vunpack.c.l.b16 %v249
    %v827 = vunpack.c.h.b16 %v249
    %v828 = vunpack.c.l.b16 %v250
    %v829 = vunpack.c.h.b16 %v250
    %v830 = vunpack.c.l.b16 %v251
    %v831 = vunpack.c.h.b16 %v251
    %v832 = vunpack.c.l.b16 %v252
    %v833 = vunpack.c.h.b16 %v252
    %v834 = vunpack.c.l.b16 %v253
    %v835 = vunpack.c.h.b16 %v253
    %v836 = vunpack.c.l.b16 %v254
    %v837 = vunpack.c.h.b16 %v254
    %v838 = vunpack.c.l.b16 %v255
    %v839 = vunpack.c.h.b16 %v255
    %v840 = vunpack.c.l.b16 %v256
    %v841 = vunpack.c.h.b16 %v256
    %v842 = vunpack.c.l.b16 %v257
    %v843 = vunpack.c.h.b16 %v257
    %v844 = vunpack.c.l.b16 %v258
    %v845 = vunpack.c.h.b16 %v258
    %v846 = vunpack.c.l.b16 %v259
    %v847 = vunpack.c.h.b16 %v259
    %v848 = vunpack.c.l.b16 %v260
    %v849 = vunpack.c.h.b16 %v260
    %v850 = vunpack.c.l.b16 %v261
    %v851 = vunpack.c.h.b16 %v261
    %v852 = vunpack.c.l.b16 %v262
    %v853 = vunpack.c.h.b16 %v262
    %v854 = vunpack.c.l.b16 %v263
    %v855 = vunpack.c.h.b16 %v263
    %v856 = vunpack.c.l.b16 %v264
    %v857 = vunpack.c.h.b16 %v264
    %v858 = vunpack.c.l.b16 %v265
    %v859 = vunpack.c.h.b16 %v265
    %v860 = vunpack.c.l.b16 %v266
    %v861 = vunpack.c.h.b16 %v266
    %v862 = vunpack.c.l.b16 %v267
    %v863 = vunpack.c.h.b16 %v267
    %v864 = vunpack.c.l.b16 %v268
    %v865 = vunpack.c.h.b16 %v268
    %v866 = vunpack.c.l.b16 %v269
    %v867 = vunpack.c.h.b16 %v269
    %v868 = vunpack.c.l.b16 %v270
    %v869 = vunpack.c.h.b16 %v270
    %v870 = vunpack.c.l.b16 %v271
    %v871 = vunpack.c.h.b16 %v271
    %v872 = vunpack.c.l.b16 %v272
    %v873 = vunpack.c.h.b16 %v272
    %v874 = vunpack.c.l.b16 %v273
    %v875 = vunpack.c.h.b16 %v273
    %v876 = vunpack.c.l.b16 %v274
    %v877 = vunpack.c.h.b16 %v274
    %v878 = vunpack.c.l.b16 %v275
    %v879 = vunpack.c.h.b16 %v275
    %v880 = vunpack.c.l.b16 %v276
    %v881 = vunpack.c.h.b16 %v276
    %v882 = vunpack.c.l.b16 %v277
    %v883 = vunpack.c.h.b16 %v277
    %v884 = vunpack.c.l.b16 %v278
    %v885 = vunpack.c.h.b16 %v278
    %v886 = vunpack.c.l.b16 %v279
    %v887 = vunpack.c.h.b16 %v279
    %v888 = vunpack.c.l.b16 %v280
    %v889 = vunpack.c.h.b16 %v280
    %v890 = vunpack.c.l.b16 %v281
    %v891 = vunpack.c.h.b16 %v281
    %v892 = vpack.c.b16 %v504, %v500
    %v893 = vpack.c.b16 %v505, %v501
    %v894 = vpack.c.b16 %v506, %v502
    %v895 = vpack.c.b16 %v507, %v503
    %v896 = vpack.c.b16 %v512, %v508
    %v897 = vpack.c.b16 %v513, %v509
    %v898 = vpack.c.b16 %v514, %v510
    %v899 = vpack.c.b16 %v515, %v511
    %v900 = vpack.c.b16 %v520, %v516
    %v901 = vpack.c.b16 %v521, %v517
    %v902 = vpack.c.b16 %v522, %v518
    %v903 = vpack.c.b16 %v523, %v519
    %v904 = vpack.c.b16 %v528, %v524
    %v905 = vpack.c.b16 %v529, %v525
    %v906 = vpack.c.b16 %v530, %v526
    %v907 = vpack.c.b16 %v531, %v527
    %v908 = vpack.c.b16 %v536, %v532
    %v909 = vpack.c.b16 %v537, %v533
    %v910 = vpack.c.b16 %v538, %v534
    %v911 = vpack.c.b16 %v539, %v535
    %v912 = vpack.c.b16 %v544, %v540
    %v913 = vpack.c.b16 %v545, %v541
    %v914 = vpack.c.b16 %v546, %v542
    %v915 = vpack.c.b16 %v547, %v543
    %v916 = vpack.c.b16 %v552, %v548
    %v917 = vpack.c.b16 %v553, %v549
    %v918 = vpack.c.b16 %v554, %v550
    %v919 = vpack.c.b16 %v555, %v551
    %v920 = vpack.c.b16 %v560, %v556
    %v921 = vpack.c.b16 %v561, %v557
    %v922 = vpack.c.b16 %v562, %v558
    %v923 = vpack.c.b16 %v563, %v559
    %v924 = vpack.c.b16 %v568, %v564
    %v925 = vpack.c.b16 %v569, %v565
    %v926 = vpack.c.b16 %v570, %v566
    %v927 = vpack.c.b16 %v571, %v567
    %v928 = vpack.c.b16 %v576, %v572
    %v929 = vpack.c.b16 %v577, %v573
    %v930 = vpack.c.b16 %v578, %v574
    %v931 = vpack.c.b16 %v579, %v575
    %v932 = vpack.c.b16 %v584, %v580
    %v933 = vpack.c.b16 %v585, %v581
    %v934 = vpack.c.b16 %v586, %v582
    %v935 = vpack.c.b16 %v587, %v583
    %v936 = vpack.c.b16 %v592, %v588
    %v937 = vpack.c.b16 %v593, %v589
    %v938 = vpack.c.b16 %v594, %v590
    %v939 = vpack.c.b16 %v595, %v591
    %v940 = vpack.c.b16 %v600, %v596
    %v941 = vpack.c.b16 %v601, %v597
    %v942 = vpack.c.b16 %v602, %v598
    %v943 = vpack.c.b16 %v603, %v599
    %v944 = vpack.c.b16 %v608, %v604
    %v945 = vpack.c.b16 %v609, %v605
    %v946 = vpack.c.b16 %v610, %v606
    %v947 = vpack.c.b16 %v611, %v607
    %v948 = vpack.c.b16 %v616, %v612
    %v949 = vpack.c.b16 %v617, %v613
    %v950 = vpack.c.b16 %v618, %v614
    %v951 = vpack.c.b16 %v619, %v615
    %v952 = vpack.c.b16 %v624, %v620
    %v953 = vpack.c.b16 %v625, %v621
    %v954 = vpack.c.b16 %v626, %v622
    %v955 = vpack.c.b16 %v627, %v623
    %v956 = vpack.c.b16 %v632, %v628
    %v957 = vpack.c.b16 %v633, %v629
    %v958 = vpack.c.b16 %v634, %v630
    %v959 = vpack.c.b16 %v635, %v631
    %v960 = vpack.c.b16 %v640, %v636
    %v961 = vpack.c.b16 %v641, %v637
    %v962 = vpack.c.b16 %v642, %v638
    %v963 = vpack.c.b16 %v643, %v639
    %v964 = vpack.c.b16 %v648, %v644
    %v965 = vpack.c.b16 %v649, %v645
    %v966 = vpack.c.b16 %v650, %v646
    %v967 = vpack.c.b16 %v651, %v647
    %v968 = vpack.c.b16 %v656, %v652
    %v969 = vpack.c.b16 %v657, %v653
    %v970 = vpack.c.b16 %v658, %v654
    %v971 = vpack.c.b16 %v659, %v655
    %v972 = vpack.c.b16 %v664, %v660
    %v973 = vpack.c.b16 %v665, %v661
    %v974 = vpack.c.b16 %v666, %v662
    %v975 = vpack.c.b16 %v667, %v663
    %v976 = vpack.c.b16 %v672, %v668
    %v977 = vpack.c.b16 %v673, %v669
    %v978 = vpack.c.b16 %v674, %v670
    %v979 = vpack.c.b16 %v675, %v671
    %v980 = vpack.c.b16 %v680, %v676
    %v981 = vpack.c.b16 %v681, %v677
    %v982 = vpack.c.b16 %v682, %v678
    %v983 = vpack.c.b16 %v683, %v679
    %v984 = vpack.c.b16 %v688, %v684
    %v985 = vpack.c.b16 %v689, %v685
    %v986 = vpack.c.b16 %v690, %v686
    %v987 = vpack.c.b16 %v691, %v687
    %v988 = vpack.c.b16 %v696, %v692
    %v989 = vpack.c.b16 %v697, %v693
    %v990 = vpack.c.b16 %v698, %v694
    %v991 = vpack.c.b16 %v699, %v695
    %v992 = vpack.c.b16 %v704, %v700
    %v993 = vpack.c.b16 %v705, %v701
    %v994 = vpack.c.b16 %v706, %v702
    %v995 = vpack.c.b16 %v707, %v703
    %v996 = vpack.c.b16 %v712, %v708
    %v997 = vpack.c.b16 %v713, %v709
    %v998 = vpack.c.b16 %v714, %v710
    %v999 = vpack.c.b16 %v715, %v711
    %v1000 = vpack.c.b16 %v720, %v716
    %v1001 = vpack.c.b16 %v721, %v717
    %v1002 = vpack.c.b16 %v722, %v718
    %v1003 = vpack.c.b16 %v723, %v719
    %v1004 = vpack.c.b16 %v728, %v724
    %v1005 = vpack.c.b16 %v729, %v725
    %v1006 = vpack.c.b16 %v730, %v726
    %v1007 = vpack.c.b16 %v731, %v727
    %v1008 = vpack.c.b16 %v736, %v732
    %v1009 = vpack.c.b16 %v737, %v733
    %v1010 = vpack.c.b16 %v738, %v734
    %v1011 = vpack.c.b16 %v739, %v735
    %v1012 = vpack.c.b16 %v744, %v740
    %v1013 = vpack.c.b16 %v745, %v741
    %v1014 = vpack.c.b16 %v746, %v742
    %v1015 = vpack.c.b16 %v747, %v743
    %v1016 = vpack.c.b16 %v752, %v748
    %v1017 = vpack.c.b16 %v753, %v749
    %v1018 = vpack.c.b16 %v754, %v750
    %v1019 = vpack.c.b16 %v755, %v751
    %v1020 = vpack.c.b16 %v760, %v756
    %v1021 = vpack.c.b16 %v761, %v757
    %v1022 = vpack.c.b16 %v762, %v758
    %v1023 = vpack.c.b16 %v763, %v759
    %v1024 = vpack.c.b16 %v768, %v764
    %v1025 = vpack.c.b16 %v769, %v765
    %v1026 = vpack.c.b16 %v770, %v766
    %v1027 = vpack.c.b16 %v771, %v767
    %v1028 = vpack.c.b16 %v776, %v772
    %v1029 = vpack.c.b16 %v777, %v773
    %v1030 = vpack.c.b16 %v778, %v774
    %v1031 = vpack.c.b16 %v779, %v775
    %v1032 = vpack.c.b16 %v784, %v780
    %v1033 = vpack.c.b16 %v785, %v781
    %v1034 = vpack.c.b16 %v786, %v782
    %v1035 = vpack.c.b16 %v787, %v783
    %v1036 = vpack.c.b16 %v792, %v788
    %v1037 = vpack.c.b16 %v793, %v789
    %v1038 = vpack.c.b16 %v794, %v790
    %v1039 = vpack.c.b16 %v795, %v791
    %v1040 = vpack.c.b16 %v800, %v796
    %v1041 = vpack.c.b16 %v801, %v797
    %v1042 = vpack.c.b16 %v802, %v798
    %v1043 = vpack.c.b16 %v803, %v799
    %v1044 = vpack.c.b16 %v808, %v804
    %v1045 = vpack.c.b16 %v809, %v805
    %v1046 = vpack.c.b16 %v810, %v806
    %v1047 = vpack.c.b16 %v811, %v807
    %v1048 = vpack.c.b16 %v816, %v812
    %v1049 = vpack.c.b16 %v817, %v813
    %v1050 = vpack.c.b16 %v818, %v814
    %v1051 = vpack.c.b16 %v819, %v815
    %v1052 = vpack.c.b16 %v824, %v820
    %v1053 = vpack.c.b16 %v825, %v821
    %v1054 = vpack.c.b16 %v826, %v822
    %v1055 = vpack.c.b16 %v827, %v823
    %v1056 = vpack.c.b16 %v832, %v828
    %v1057 = vpack.c.b16 %v833, %v829
    %v1058 = vpack.c.b16 %v834, %v830
    %v1059 = vpack.c.b16 %v835, %v831
    %v1060 = vpack.c.b16 %v840, %v836
    %v1061 = vpack.c.b16 %v841, %v837
    %v1062 = vpack.c.b16 %v842, %v838
    %v1063 = vpack.c.b16 %v843, %v839
    %v1064 = vpack.c.b16 %v848, %v844
    %v1065 = vpack.c.b16 %v849, %v845
    %v1066 = vpack.c.b16 %v850, %v846
    %v1067 = vpack.c.b16 %v851, %v847
    %v1068 = vpack.c.b16 %v856, %v852
    %v1069 = vpack.c.b16 %v857, %v853
    %v1070 = vpack.c.b16 %v858, %v854
    %v1071 = vpack.c.b16 %v859, %v855
    %v1072 = vpack.c.b16 %v864, %v860
    %v1073 = vpack.c.b16 %v865, %v861
    %v1074 = vpack.c.b16 %v866, %v862
    %v1075 = vpack.c.b16 %v867, %v863
    %v1076 = vpack.c.b16 %v872, %v868
    %v1077 = vpack.c.b16 %v873, %v869
    %v1078 = vpack.c.b16 %v874, %v870
    %v1079 = vpack.c.b16 %v875, %v871
    %v1080 = vpack.c.b16 %v880, %v876
    %v1081 = vpack.c.b16 %v881, %v877
    %v1082 = vpack.c.b16 %v882, %v878
    %v1083 = vpack.c.b16 %v883, %v879
    %v1084 = vpack.c.b16 %v888, %v884
    %v1085 = vpack.c.b16 %v889, %v885
    %v1086 = vpack.c.b16 %v890, %v886
    %v1087 = vpack.c.b16 %v891, %v887
    %vm1284 = vcmask 130048
    %v1286 = vsel %vm1284, %v85, 0
    %1288 = vmatprep.subr.bf16.mxu0 %v893
    %1289 = vmatpush1.bf16.msra.mxu0 %v892
    %1290 = vmatprep.subr.bf16.mxu0 %v897
    %1291 = vmatpush1.bf16.msra.mxu0 %v896
    %1292 = vmatprep.subr.bf16.mxu0 %v901
    %1293 = vmatpush1.bf16.msra.mxu0 %v900
    %1294 = vmatprep.subr.bf16.mxu0 %v905
    %1295 = vmatpush1.bf16.msra.mxu0 %v904
    %1296 = vmatprep.subr.bf16.mxu0 %v909
    %1297 = vmatpush1.bf16.msra.mxu0 %v908
    %1298 = vmatprep.subr.bf16.mxu0 %v913
    %1299 = vmatpush1.bf16.msra.mxu0 %v912
    %1300 = vmatprep.subr.bf16.mxu0 %v917
    %1301 = vmatpush1.bf16.msra.mxu0 %v916
    %1302 = vmatprep.subr.bf16.mxu0 %v921
    %1303 = vmatpush1.bf16.msra.mxu0 %v920
    %1304 = vmatprep.subr.bf16.mxu0 %v925
    %1305 = vmatpush1.bf16.msra.mxu0 %v924
    %1306 = vmatprep.subr.bf16.mxu0 %v929
    %1307 = vmatpush1.bf16.msra.mxu0 %v928
    %1308 = vmatprep.subr.bf16.mxu0 %v933
    %1309 = vmatpush1.bf16.msra.mxu0 %v932
    %1310 = vmatprep.subr.bf16.mxu0 %v937
    %1311 = vmatpush1.bf16.msra.mxu0 %v936
    %1312 = vmatprep.subr.bf16.mxu0 %v941
    %1313 = vmatpush1.bf16.msra.mxu0 %v940
    %1314 = vmatprep.subr.bf16.mxu0 %v945
    %1315 = vmatpush1.bf16.msra.mxu0 %v944
    %1316 = vmatprep.subr.bf16.mxu0 %v949
    %1317 = vmatpush1.bf16.msra.mxu0 %v948
    %1318 = vmatprep.subr.bf16.mxu0 %v953
    %1319 = vmatpush1.bf16.msra.mxu0 %v952
    %1320 = vmatprep.mubr.bf16.mxu0 %v80
    %1321 = vmatmul.mubr.bf16.gmra.mrb[0].mxu0 %v79
    %v1322 = vpop.f32.mrb[0].mxu0
    %v1323 = vadd.f32 %v287, %v1322
    %v1324 = vpop.f32.mrb[0].mxu0
    %v1325 = vadd.f32 %v291, %v1324
    %v1326 = vpop.f32.mrb[0].mxu0
    %v1327 = vpop.f32.mrb[0].mxu0
    %1328 = vdwg.mxu0
    %1329 = vmatprep.subr.bf16.mxu0 %v957
    %1330 = vmatpush1.bf16.msra.mxu0 %v956
    %1331 = vmatprep.subr.bf16.mxu0 %v961
    %1332 = vmatpush1.bf16.msra.mxu0 %v960
    %1333 = vmatprep.subr.bf16.mxu0 %v965
    %1334 = vmatpush1.bf16.msra.mxu0 %v964
    %1335 = vmatprep.subr.bf16.mxu0 %v969
    %1336 = vmatpush1.bf16.msra.mxu0 %v968
    %1337 = vmatprep.subr.bf16.mxu0 %v973
    %1338 = vmatpush1.bf16.msra.mxu0 %v972
    %1339 = vmatprep.subr.bf16.mxu0 %v977
    %1340 = vmatpush1.bf16.msra.mxu0 %v976
    %1341 = vmatprep.subr.bf16.mxu0 %v981
    %1342 = vmatpush1.bf16.msra.mxu0 %v980
    %1343 = vmatprep.subr.bf16.mxu0 %v985
    %1344 = vmatpush1.bf16.msra.mxu0 %v984
    %1345 = vmatprep.subr.bf16.mxu0 %v989
    %1346 = vmatpush1.bf16.msra.mxu0 %v988
    %1347 = vmatprep.subr.bf16.mxu0 %v993
    %1348 = vmatpush1.bf16.msra.mxu0 %v992
    %1349 = vmatprep.subr.bf16.mxu0 %v997
    %1350 = vmatpush1.bf16.msra.mxu0 %v996
    %1351 = vmatprep.subr.bf16.mxu0 %v1001
    %1352 = vmatpush1.bf16.msra.mxu0 %v1000
    %1353 = vmatprep.subr.bf16.mxu0 %v1005
    %1354 = vmatpush1.bf16.msra.mxu0 %v1004
    %1355 = vmatprep.subr.bf16.mxu0 %v1009
    %1356 = vmatpush1.bf16.msra.mxu0 %v1008
    %1357 = vmatprep.subr.bf16.mxu0 %v1013
    %1358 = vmatpush1.bf16.msra.mxu0 %v1012
    %1359 = vmatprep.subr.bf16.mxu0 %v1017
    %1360 = vmatpush1.bf16.msra.mxu0 %v1016
    %1361 = vmatprep.mubr.bf16.mxu0 %v82
    %1362 = vmatmul.mubr.bf16.gmra.mrb[0].mxu0 %v81
    %v1363 = vpop.f32.mrb[0].mxu0
    %v1364 = vadd.f32 %v1323, %v1363
    %v1365 = vpop.f32.mrb[0].mxu0
    %v1366 = vadd.f32 %v1325, %v1365
    %v1367 = vpop.f32.mrb[0].mxu0
    %v1368 = vpop.f32.mrb[0].mxu0
    %1369 = vdwg.mxu0
    %1370 = vmatprep.subr.bf16.mxu0 %v1021
    %1371 = vmatpush1.bf16.msra.mxu0 %v1020
    %1372 = vmatprep.subr.bf16.mxu0 %v1025
    %1373 = vmatpush1.bf16.msra.mxu0 %v1024
    %1374 = vmatprep.subr.bf16.mxu0 %v1029
    %1375 = vmatpush1.bf16.msra.mxu0 %v1028
    %1376 = vmatprep.subr.bf16.mxu0 %v1033
    %1377 = vmatpush1.bf16.msra.mxu0 %v1032
    %1378 = vmatprep.subr.bf16.mxu0 %v1037
    %1379 = vmatpush1.bf16.msra.mxu0 %v1036
    %1380 = vmatprep.subr.bf16.mxu0 %v1041
    %1381 = vmatpush1.bf16.msra.mxu0 %v1040
    %1382 = vmatprep.subr.bf16.mxu0 %v1045
    %1383 = vmatpush1.bf16.msra.mxu0 %v1044
    %1384 = vmatprep.subr.bf16.mxu0 %v1049
    %1385 = vmatpush1.bf16.msra.mxu0 %v1048
    %1386 = vmatprep.subr.bf16.mxu0 %v1053
    %1387 = vmatpush1.bf16.msra.mxu0 %v1052
    %1388 = vmatprep.subr.bf16.mxu0 %v1057
    %1389 = vmatpush1.bf16.msra.mxu0 %v1056
    %1390 = vmatprep.subr.bf16.mxu0 %v1061
    %1391 = vmatpush1.bf16.msra.mxu0 %v1060
    %1392 = vmatprep.subr.bf16.mxu0 %v1065
    %1393 = vmatpush1.bf16.msra.mxu0 %v1064
    %1394 = vmatprep.subr.bf16.mxu0 %v1069
    %1395 = vmatpush1.bf16.msra.mxu0 %v1068
    %1396 = vmatprep.subr.bf16.mxu0 %v1073
    %1397 = vmatpush1.bf16.msra.mxu0 %v1072
    %1398 = vmatprep.subr.bf16.mxu0 %v1077
    %1399 = vmatpush1.bf16.msra.mxu0 %v1076
    %1400 = vmatprep.subr.bf16.mxu0 %v1081
    %1401 = vmatpush1.bf16.msra.mxu0 %v1080
    %1402 = vmatprep.mubr.bf16.mxu0 %v84
    %1403 = vmatmul.mubr.bf16.gmra.mrb[0].mxu0 %v83
    %v1404 = vpop.f32.mrb[0].mxu0
    %v1405 = vadd.f32 %v1364, %v1404
    %v1406 = vpop.f32.mrb[0].mxu0
    %v1407 = vadd.f32 %v1366, %v1406
    %v1408 = vpop.f32.mrb[0].mxu0
    %v1409 = vpop.f32.mrb[0].mxu0
    %1410 = vdwg.mxu0
    %1411 = vmatprep.subr.bf16.mxu0 %v1085
    %1412 = vmatpush1.bf16.msra.mxu0 %v1084
    %1413 = vmatprep.subr.bf16.mxu0 0
    %1414 = vmatpush1.bf16.msra.mxu0 0
    %1415 = vmatprep.subr.bf16.mxu0 0
    %1416 = vmatpush1.bf16.msra.mxu0 0
    %1417 = vmatprep.subr.bf16.mxu0 0
    %1418 = vmatpush1.bf16.msra.mxu0 0
    %1419 = vmatprep.subr.bf16.mxu0 0
    %1420 = vmatpush1.bf16.msra.mxu0 0
    %1421 = vmatprep.subr.bf16.mxu0 0
    %1422 = vmatpush1.bf16.msra.mxu0 0
    %1423 = vmatprep.subr.bf16.mxu0 0
    %1424 = vmatpush1.bf16.msra.mxu0 0
    %1425 = vmatprep.subr.bf16.mxu0 0
    %1426 = vmatpush1.bf16.msra.mxu0 0
    %1427 = vmatprep.subr.bf16.mxu0 0
    %1428 = vmatpush1.bf16.msra.mxu0 0
    %1429 = vmatprep.subr.bf16.mxu0 0
    %1430 = vmatpush1.bf16.msra.mxu0 0
    %1431 = vmatprep.subr.bf16.mxu0 0
    %1432 = vmatpush1.bf16.msra.mxu0 0
    %1433 = vmatprep.subr.bf16.mxu0 0
    %1434 = vmatpush1.bf16.msra.mxu0 0
    %1435 = vmatprep.subr.bf16.mxu0 0
    %1436 = vmatpush1.bf16.msra.mxu0 0
    %1437 = vmatprep.subr.bf16.mxu0 0
    %1438 = vmatpush1.bf16.msra.mxu0 0
    %1439 = vmatprep.subr.bf16.mxu0 0
    %1440 = vmatpush1.bf16.msra.mxu0 0
    %1441 = vmatprep.subr.bf16.mxu0 0
    %1442 = vmatpush1.bf16.msra.mxu0 0
    %1443 = vmatprep.mubr.bf16.mxu0 0
    %1444 = vmatmul.mubr.bf16.gmra.mrb[0].mxu0 %v1286
    %v1445 = vpop.f32.mrb[0].mxu0
    %v1446 = vadd.f32 %v1405, %v1445
    %v1447 = vpop.f32.mrb[0].mxu0
    %v1448 = vadd.f32 %v1407, %v1447
    %v1449 = vpop.f32.mrb[0].mxu0
    %v1450 = vpop.f32.mrb[0].mxu0
    %1451 = vdwg.mxu0
    %1452 = vmatprep.subr.bf16.mxu0 %v895
    %1453 = vmatpush1.bf16.msra.mxu0 %v894
    %1454 = vmatprep.subr.bf16.mxu0 %v899
    %1455 = vmatpush1.bf16.msra.mxu0 %v898
    %1456 = vmatprep.subr.bf16.mxu0 %v903
    %1457 = vmatpush1.bf16.msra.mxu0 %v902
    %1458 = vmatprep.subr.bf16.mxu0 %v907
    %1459 = vmatpush1.bf16.msra.mxu0 %v906
    %1460 = vmatprep.subr.bf16.mxu0 %v911
    %1461 = vmatpush1.bf16.msra.mxu0 %v910
    %1462 = vmatprep.subr.bf16.mxu0 %v915
    %1463 = vmatpush1.bf16.msra.mxu0 %v914
    %1464 = vmatprep.subr.bf16.mxu0 %v919
    %1465 = vmatpush1.bf16.msra.mxu0 %v918
    %1466 = vmatprep.subr.bf16.mxu0 %v923
    %1467 = vmatpush1.bf16.msra.mxu0 %v922
    %1468 = vmatprep.subr.bf16.mxu0 %v927
    %1469 = vmatpush1.bf16.msra.mxu0 %v926
    %1470 = vmatprep.subr.bf16.mxu0 %v931
    %1471 = vmatpush1.bf16.msra.mxu0 %v930
    %1472 = vmatprep.subr.bf16.mxu0 %v935
    %1473 = vmatpush1.bf16.msra.mxu0 %v934
    %1474 = vmatprep.subr.bf16.mxu0 %v939
    %1475 = vmatpush1.bf16.msra.mxu0 %v938
    %1476 = vmatprep.subr.bf16.mxu0 %v943
    %1477 = vmatpush1.bf16.msra.mxu0 %v942
    %1478 = vmatprep.subr.bf16.mxu0 %v947
    %1479 = vmatpush1.bf16.msra.mxu0 %v946
    %1480 = vmatprep.subr.bf16.mxu0 %v951
    %1481 = vmatpush1.bf16.msra.mxu0 %v950
    %1482 = vmatprep.subr.bf16.mxu0 %v955
    %1483 = vmatpush1.bf16.msra.mxu0 %v954
    %1484 = vmatprep.mubr.bf16.mxu0 %v80
    %1485 = vmatmul.mubr.bf16.gmra.mrb[0].mxu0 %v79
    %v1486 = vpop.f32.mrb[0].mxu0
    %v1487 = vadd.f32 %v295, %v1486
    %v1488 = vpop.f32.mrb[0].mxu0
    %v1489 = vadd.f32 %v299, %v1488
    %v1490 = vpop.f32.mrb[0].mxu0
    %v1491 = vpop.f32.mrb[0].mxu0
    %1492 = vdwg.mxu0
    %1493 = vmatprep.subr.bf16.mxu0 %v959
    %1494 = vmatpush1.bf16.msra.mxu0 %v958
    %1495 = vmatprep.subr.bf16.mxu0 %v963
    %1496 = vmatpush1.bf16.msra.mxu0 %v962
    %1497 = vmatprep.subr.bf16.mxu0 %v967
    %1498 = vmatpush1.bf16.msra.mxu0 %v966
    %1499 = vmatprep.subr.bf16.mxu0 %v971
    %1500 = vmatpush1.bf16.msra.mxu0 %v970
    %1501 = vmatprep.subr.bf16.mxu0 %v975
    %1502 = vmatpush1.bf16.msra.mxu0 %v974
    %1503 = vmatprep.subr.bf16.mxu0 %v979
    %1504 = vmatpush1.bf16.msra.mxu0 %v978
    %1505 = vmatprep.subr.bf16.mxu0 %v983
    %1506 = vmatpush1.bf16.msra.mxu0 %v982
    %1507 = vmatprep.subr.bf16.mxu0 %v987
    %1508 = vmatpush1.bf16.msra.mxu0 %v986
    %1509 = vmatprep.subr.bf16.mxu0 %v991
    %1510 = vmatpush1.bf16.msra.mxu0 %v990
    %1511 = vmatprep.subr.bf16.mxu0 %v995
    %1512 = vmatpush1.bf16.msra.mxu0 %v994
    %1513 = vmatprep.subr.bf16.mxu0 %v999
    %1514 = vmatpush1.bf16.msra.mxu0 %v998
    %1515 = vmatprep.subr.bf16.mxu0 %v1003
    %1516 = vmatpush1.bf16.msra.mxu0 %v1002
    %1517 = vmatprep.subr.bf16.mxu0 %v1007
    %1518 = vmatpush1.bf16.msra.mxu0 %v1006
    %1519 = vmatprep.subr.bf16.mxu0 %v1011
    %1520 = vmatpush1.bf16.msra.mxu0 %v1010
    %1521 = vmatprep.subr.bf16.mxu0 %v1015
    %1522 = vmatpush1.bf16.msra.mxu0 %v1014
    %1523 = vmatprep.subr.bf16.mxu0 %v1019
    %1524 = vmatpush1.bf16.msra.mxu0 %v1018
    %1525 = vmatprep.mubr.bf16.mxu0 %v82
    %1526 = vmatmul.mubr.bf16.gmra.mrb[0].mxu0 %v81
    %v1527 = vpop.f32.mrb[0].mxu0
    %v1528 = vadd.f32 %v1487, %v1527
    %v1529 = vpop.f32.mrb[0].mxu0
    %v1530 = vadd.f32 %v1489, %v1529
    %v1531 = vpop.f32.mrb[0].mxu0
    %v1532 = vpop.f32.mrb[0].mxu0
    %1533 = vdwg.mxu0
    %1534 = vmatprep.subr.bf16.mxu0 %v1023
    %1535 = vmatpush1.bf16.msra.mxu0 %v1022
    %1536 = vmatprep.subr.bf16.mxu0 %v1027
    %1537 = vmatpush1.bf16.msra.mxu0 %v1026
    %1538 = vmatprep.subr.bf16.mxu0 %v1031
    %1539 = vmatpush1.bf16.msra.mxu0 %v1030
    %1540 = vmatprep.subr.bf16.mxu0 %v1035
    %1541 = vmatpush1.bf16.msra.mxu0 %v1034
    %1542 = vmatprep.subr.bf16.mxu0 %v1039
    %1543 = vmatpush1.bf16.msra.mxu0 %v1038
    %1544 = vmatprep.subr.bf16.mxu0 %v1043
    %1545 = vmatpush1.bf16.msra.mxu0 %v1042
    %1546 = vmatprep.subr.bf16.mxu0 %v1047
    %1547 = vmatpush1.bf16.msra.mxu0 %v1046
    %1548 = vmatprep.subr.bf16.mxu0 %v1051
    %1549 = vmatpush1.bf16.msra.mxu0 %v1050
    %1550 = vmatprep.subr.bf16.mxu0 %v1055
    %1551 = vmatpush1.bf16.msra.mxu0 %v1054
    %1552 = vmatprep.subr.bf16.mxu0 %v1059
    %1553 = vmatpush1.bf16.msra.mxu0 %v1058
    %1554 = vmatprep.subr.bf16.mxu0 %v1063
    %1555 = vmatpush1.bf16.msra.mxu0 %v1062
    %1556 = vmatprep.subr.bf16.mxu0 %v1067
    %1557 = vmatpush1.bf16.msra.mxu0 %v1066
    %1558 = vmatprep.subr.bf16.mxu0 %v1071
    %1559 = vmatpush1.bf16.msra.mxu0 %v1070
    %1560 = vmatprep.subr.bf16.mxu0 %v1075
    %1561 = vmatpush1.bf16.msra.mxu0 %v1074
    %1562 = vmatprep.subr.bf16.mxu0 %v1079
    %1563 = vmatpush1.bf16.msra.mxu0 %v1078
    %1564 = vmatprep.subr.bf16.mxu0 %v1083
    %1565 = vmatpush1.bf16.msra.mxu0 %v1082
    %1566 = vmatprep.mubr.bf16.mxu0 %v84
    %1567 = vmatmul.mubr.bf16.gmra.mrb[0].mxu0 %v83
    %v1568 = vpop.f32.mrb[0].mxu0
    %v1569 = vadd.f32 %v1528, %v1568
    %v1570 = vpop.f32.mrb[0].mxu0
    %v1571 = vadd.f32 %v1530, %v1570
    %v1572 = vpop.f32.mrb[0].mxu0
    %v1573 = vpop.f32.mrb[0].mxu0
    %1574 = vdwg.mxu0
    %1575 = vmatprep.subr.bf16.mxu0 %v1087
    %1576 = vmatpush1.bf16.msra.mxu0 %v1086
    %1577 = vmatprep.subr.bf16.mxu0 0
    %1578 = vmatpush1.bf16.msra.mxu0 0
    %1579 = vmatprep.subr.bf16.mxu0 0
    %1580 = vmatpush1.bf16.msra.mxu0 0
    %1581 = vmatprep.subr.bf16.mxu0 0
    %1582 = vmatpush1.bf16.msra.mxu0 0
    %1583 = vmatprep.subr.bf16.mxu0 0
    %1584 = vmatpush1.bf16.msra.mxu0 0
    %1585 = vmatprep.subr.bf16.mxu0 0
    %1586 = vmatpush1.bf16.msra.mxu0 0
    %1587 = vmatprep.subr.bf16.mxu0 0
    %1588 = vmatpush1.bf16.msra.mxu0 0
    %1589 = vmatprep.subr.bf16.mxu0 0
    %1590 = vmatpush1.bf16.msra.mxu0 0
    %1591 = vmatprep.subr.bf16.mxu0 0
    %1592 = vmatpush1.bf16.msra.mxu0 0
    %1593 = vmatprep.subr.bf16.mxu0 0
    %1594 = vmatpush1.bf16.msra.mxu0 0
    %1595 = vmatprep.subr.bf16.mxu0 0
    %1596 = vmatpush1.bf16.msra.mxu0 0
    %1597 = vmatprep.subr.bf16.mxu0 0
    %1598 = vmatpush1.bf16.msra.mxu0 0
    %1599 = vmatprep.subr.bf16.mxu0 0
    %1600 = vmatpush1.bf16.msra.mxu0 0
    %1601 = vmatprep.subr.bf16.mxu0 0
    %1602 = vmatpush1.bf16.msra.mxu0 0
    %1603 = vmatprep.subr.bf16.mxu0 0
    %1604 = vmatpush1.bf16.msra.mxu0 0
    %1605 = vmatprep.subr.bf16.mxu0 0
    %1606 = vmatpush1.bf16.msra.mxu0 0
    %1607 = vmatprep.mubr.bf16.mxu0 0
    %1608 = vmatmul.mubr.bf16.gmra.mrb[0].mxu0 %v1286
    %v1609 = vpop.f32.mrb[0].mxu0
    %v1610 = vadd.f32 %v1569, %v1609
    %v1611 = vpop.f32.mrb[0].mxu0
    %v1612 = vadd.f32 %v1571, %v1611
    %v1613 = vpop.f32.mrb[0].mxu0
    %v1614 = vpop.f32.mrb[0].mxu0
    %1615 = vdwg.mxu0
    %v1616 = vld [vmem:[#allocation2 + $0x10] sm:$0xff]
    %v1617 = vld [vmem:[#allocation2 + $0x18] sm:$0xff]
    %v1618 = vld [vmem:[#allocation2 + $0x30] sm:$0xff]
    %v1619 = vld [vmem:[#allocation2 + $0x38] sm:$0xff]
    %v1620 = vld [vmem:[#allocation2 + $0x50] sm:$0xff]
    %v1621 = vld [vmem:[#allocation2 + $0x58] sm:$0xff]
    %v1622 = vld [vmem:[#allocation2 + $0x70] sm:$0xff]
    %v1623 = vld [vmem:[#allocation2 + $0x78] sm:$0xff]
    %v1624 = vld [vmem:[#allocation2 + $0x90] sm:$0xff]
    %v1625 = vld [vmem:[#allocation2 + $0x98] sm:$0xff]
    %v1626 = vld [vmem:[#allocation2 + $0xb0] sm:$0xff]
    %v1627 = vld [vmem:[#allocation2 + $0xb8] sm:$0xff]
    %v1628 = vld [vmem:[#allocation2 + $0xd0] sm:$0xff]
    %v1629 = vld [vmem:[#allocation2 + $0xd8] sm:$0xff]
    %v1630 = vld [vmem:[#allocation2 + $0xf0] sm:$0xff]
    %v1631 = vld [vmem:[#allocation2 + $0xf8] sm:$0xff]
    %v1632 = vld [vmem:[#allocation2 + $0x110] sm:$0xff]
    %v1633 = vld [vmem:[#allocation2 + $0x118] sm:$0xff]
    %v1634 = vld [vmem:[#allocation2 + $0x130] sm:$0xff]
    %v1635 = vld [vmem:[#allocation2 + $0x138] sm:$0xff]
    %v1636 = vld [vmem:[#allocation2 + $0x150] sm:$0xff]
    %v1637 = vld [vmem:[#allocation2 + $0x158] sm:$0xff]
    %v1638 = vld [vmem:[#allocation2 + $0x170] sm:$0xff]
    %v1639 = vld [vmem:[#allocation2 + $0x178] sm:$0xff]
    %v1640 = vld [vmem:[#allocation2 + $0x190] sm:$0xff]
    %v1641 = vld [vmem:[#allocation2 + $0x198] sm:$0xff]
    %v1642 = vld [vmem:[#allocation2 + $0x1b0] sm:$0xff]
    %v1643 = vld [vmem:[#allocation2 + $0x1b8] sm:$0xff]
    %v1644 = vld [vmem:[#allocation2 + $0x1d0] sm:$0xff]
    %v1645 = vld [vmem:[#allocation2 + $0x1d8] sm:$0xff]
    %v1646 = vld [vmem:[#allocation2 + $0x1f0] sm:$0xff]
    %v1647 = vld [vmem:[#allocation2 + $0x1f8] sm:$0xff]
    %v1648 = vld [vmem:[#allocation2 + $0x210] sm:$0xff]
    %v1649 = vld [vmem:[#allocation2 + $0x218] sm:$0xff]
    %v1650 = vld [vmem:[#allocation2 + $0x230] sm:$0xff]
    %v1651 = vld [vmem:[#allocation2 + $0x238] sm:$0xff]
    %v1652 = vld [vmem:[#allocation2 + $0x250] sm:$0xff]
    %v1653 = vld [vmem:[#allocation2 + $0x258] sm:$0xff]
    %v1654 = vld [vmem:[#allocation2 + $0x270] sm:$0xff]
    %v1655 = vld [vmem:[#allocation2 + $0x278] sm:$0xff]
    %v1656 = vld [vmem:[#allocation2 + $0x290] sm:$0xff]
    %v1657 = vld [vmem:[#allocation2 + $0x298] sm:$0xff]
    %v1658 = vld [vmem:[#allocation2 + $0x2b0] sm:$0xff]
    %v1659 = vld [vmem:[#allocation2 + $0x2b8] sm:$0xff]
    %v1660 = vld [vmem:[#allocation2 + $0x2d0] sm:$0xff]
    %v1661 = vld [vmem:[#allocation2 + $0x2d8] sm:$0xff]
    %v1662 = vld [vmem:[#allocation2 + $0x2f0] sm:$0xff]
    %v1663 = vld [vmem:[#allocation2 + $0x2f8] sm:$0xff]
    %v1664 = vld [vmem:[#allocation2 + $0x310] sm:$0xff]
    %v1665 = vld [vmem:[#allocation2 + $0x318] sm:$0xff]
    %v1666 = vld [vmem:[#allocation2 + $0x330] sm:$0xff]
    %v1667 = vld [vmem:[#allocation2 + $0x338] sm:$0xff]
    %v1668 = vld [vmem:[#allocation2 + $0x350] sm:$0xff]
    %v1669 = vld [vmem:[#allocation2 + $0x358] sm:$0xff]
    %v1670 = vld [vmem:[#allocation2 + $0x370] sm:$0xff]
    %v1671 = vld [vmem:[#allocation2 + $0x378] sm:$0xff]
    %v1672 = vld [vmem:[#allocation2 + $0x390] sm:$0xff]
    %v1673 = vld [vmem:[#allocation2 + $0x398] sm:$0xff]
    %v1674 = vld [vmem:[#allocation2 + $0x3b0] sm:$0xff]
    %v1675 = vld [vmem:[#allocation2 + $0x3b8] sm:$0xff]
    %v1676 = vld [vmem:[#allocation2 + $0x3d0] sm:$0xff]
    %v1677 = vld [vmem:[#allocation2 + $0x3d8] sm:$0xff]
    %v1678 = vld [vmem:[#allocation2 + $0x3f0] sm:$0xff]
    %v1679 = vld [vmem:[#allocation2 + $0x3f8] sm:$0xff]
    %v1680 = vld [vmem:[#allocation2 + $0x410] sm:$0xff]
    %v1681 = vld [vmem:[#allocation2 + $0x418] sm:$0xff]
    %v1682 = vld [vmem:[#allocation2 + $0x430] sm:$0xff]
    %v1683 = vld [vmem:[#allocation2 + $0x438] sm:$0xff]
    %v1684 = vld [vmem:[#allocation2 + $0x450] sm:$0xff]
    %v1685 = vld [vmem:[#allocation2 + $0x458] sm:$0xff]
    %v1686 = vld [vmem:[#allocation2 + $0x470] sm:$0xff]
    %v1687 = vld [vmem:[#allocation2 + $0x478] sm:$0xff]
    %v1688 = vld [vmem:[#allocation2 + $0x490] sm:$0xff]
    %v1689 = vld [vmem:[#allocation2 + $0x498] sm:$0xff]
    %v1690 = vld [vmem:[#allocation2 + $0x4b0] sm:$0xff]
    %v1691 = vld [vmem:[#allocation2 + $0x4b8] sm:$0xff]
    %v1692 = vld [vmem:[#allocation2 + $0x4d0] sm:$0xff]
    %v1693 = vld [vmem:[#allocation2 + $0x4d8] sm:$0xff]
    %v1694 = vld [vmem:[#allocation2 + $0x4f0] sm:$0xff]
    %v1695 = vld [vmem:[#allocation2 + $0x4f8] sm:$0xff]
    %v1696 = vld [vmem:[#allocation2 + $0x510] sm:$0xff]
    %v1697 = vld [vmem:[#allocation2 + $0x518] sm:$0xff]
    %v1698 = vld [vmem:[#allocation2 + $0x530] sm:$0xff]
    %v1699 = vld [vmem:[#allocation2 + $0x538] sm:$0xff]
    %v1700 = vld [vmem:[#allocation2 + $0x550] sm:$0xff]
    %v1701 = vld [vmem:[#allocation2 + $0x558] sm:$0xff]
    %v1702 = vld [vmem:[#allocation2 + $0x570] sm:$0xff]
    %v1703 = vld [vmem:[#allocation2 + $0x578] sm:$0xff]
    %v1704 = vld [vmem:[#allocation2 + $0x590] sm:$0xff]
    %v1705 = vld [vmem:[#allocation2 + $0x598] sm:$0xff]
    %v1706 = vld [vmem:[#allocation2 + $0x5b0] sm:$0xff]
    %v1707 = vld [vmem:[#allocation2 + $0x5b8] sm:$0xff]
    %v1708 = vld [vmem:[#allocation2 + $0x5d0] sm:$0xff]
    %v1709 = vld [vmem:[#allocation2 + $0x5d8] sm:$0xff]
    %v1710 = vld [vmem:[#allocation2 + $0x5f0] sm:$0xff]
    %v1711 = vld [vmem:[#allocation2 + $0x5f8] sm:$0xff]
    %v1712 = vld [vmem:[#allocation2 + $0x610] sm:$0xff]
    %v1713 = vld [vmem:[#allocation2 + $0x618] sm:$0xff]
    %v1714 = vld [vmem:[#allocation2 + $0x630] sm:$0xff]
    %v1715 = vld [vmem:[#allocation2 + $0x638] sm:$0xff]
    %v1716 = vld [vmem:[#allocation2 + $0x650] sm:$0xff]
    %v1717 = vld [vmem:[#allocation2 + $0x658] sm:$0xff]
    %v1718 = vld [vmem:[#allocation2 + $0x670] sm:$0xff]
    %v1719 = vld [vmem:[#allocation2 + $0x678] sm:$0xff]
    %v1720 = vld [vmem:[#allocation2 + $0x690] sm:$0xff]
    %v1721 = vld [vmem:[#allocation2 + $0x698] sm:$0xff]
    %v1722 = vld [vmem:[#allocation2 + $0x6b0] sm:$0xff]
    %v1723 = vld [vmem:[#allocation2 + $0x6b8] sm:$0xff]
    %v1724 = vld [vmem:[#allocation2 + $0x6d0] sm:$0xff]
    %v1725 = vld [vmem:[#allocation2 + $0x6d8] sm:$0xff]
    %v1726 = vld [vmem:[#allocation2 + $0x6f0] sm:$0xff]
    %v1727 = vld [vmem:[#allocation2 + $0x6f8] sm:$0xff]
    %v1728 = vld [vmem:[#allocation2 + $0x710] sm:$0xff]
    %v1729 = vld [vmem:[#allocation2 + $0x718] sm:$0xff]
    %v1730 = vld [vmem:[#allocation2 + $0x730] sm:$0xff]
    %v1731 = vld [vmem:[#allocation2 + $0x738] sm:$0xff]
    %v1732 = vld [vmem:[#allocation2 + $0x750] sm:$0xff]
    %v1733 = vld [vmem:[#allocation2 + $0x758] sm:$0xff]
    %v1734 = vld [vmem:[#allocation2 + $0x770] sm:$0xff]
    %v1735 = vld [vmem:[#allocation2 + $0x778] sm:$0xff]
    %v1736 = vld [vmem:[#allocation2 + $0x790] sm:$0xff]
    %v1737 = vld [vmem:[#allocation2 + $0x798] sm:$0xff]
    %v1738 = vld [vmem:[#allocation2 + $0x7b0] sm:$0xff]
    %v1739 = vld [vmem:[#allocation2 + $0x7b8] sm:$0xff]
    %v1740 = vld [vmem:[#allocation2 + $0x7d0] sm:$0xff]
    %v1741 = vld [vmem:[#allocation2 + $0x7d8] sm:$0xff]
    %v1742 = vld [vmem:[#allocation2 + $0x7f0] sm:$0xff]
    %v1743 = vld [vmem:[#allocation2 + $0x7f8] sm:$0xff]
    %v1744 = vld [vmem:[#allocation2 + $0x810] sm:$0xff]
    %v1745 = vld [vmem:[#allocation2 + $0x818] sm:$0xff]
    %v1746 = vld [vmem:[#allocation2 + $0x830] sm:$0xff]
    %v1747 = vld [vmem:[#allocation2 + $0x838] sm:$0xff]
    %v1748 = vld [vmem:[#allocation2 + $0x850] sm:$0xff]
    %v1749 = vld [vmem:[#allocation2 + $0x858] sm:$0xff]
    %v1750 = vld [vmem:[#allocation2 + $0x870] sm:$0xff]
    %v1751 = vld [vmem:[#allocation2 + $0x878] sm:$0xff]
    %v1752 = vld [vmem:[#allocation2 + $0x890] sm:$0xff]
    %v1753 = vld [vmem:[#allocation2 + $0x898] sm:$0xff]
    %v1754 = vld [vmem:[#allocation2 + $0x8b0] sm:$0xff]
    %v1755 = vld [vmem:[#allocation2 + $0x8b8] sm:$0xff]
    %v1756 = vld [vmem:[#allocation2 + $0x8d0] sm:$0xff]
    %v1757 = vld [vmem:[#allocation2 + $0x8d8] sm:$0xff]
    %v1758 = vld [vmem:[#allocation2 + $0x8f0] sm:$0xff]
    %v1759 = vld [vmem:[#allocation2 + $0x8f8] sm:$0xff]
    %v1760 = vld [vmem:[#allocation2 + $0x910] sm:$0xff]
    %v1761 = vld [vmem:[#allocation2 + $0x918] sm:$0xff]
    %v1762 = vld [vmem:[#allocation2 + $0x930] sm:$0xff]
    %v1763 = vld [vmem:[#allocation2 + $0x938] sm:$0xff]
    %v1764 = vld [vmem:[#allocation2 + $0x950] sm:$0xff]
    %v1765 = vld [vmem:[#allocation2 + $0x958] sm:$0xff]
    %v1766 = vld [vmem:[#allocation2 + $0x970] sm:$0xff]
    %v1767 = vld [vmem:[#allocation2 + $0x978] sm:$0xff]
    %v1768 = vld [vmem:[#allocation2 + $0x990] sm:$0xff]
    %v1769 = vld [vmem:[#allocation2 + $0x998] sm:$0xff]
    %v1770 = vld [vmem:[#allocation2 + $0x9b0] sm:$0xff]
    %v1771 = vld [vmem:[#allocation2 + $0x9b8] sm:$0xff]
    %v1772 = vld [vmem:[#allocation2 + $0x9d0] sm:$0xff]
    %v1773 = vld [vmem:[#allocation2 + $0x9d8] sm:$0xff]
    %v1774 = vld [vmem:[#allocation2 + $0x9f0] sm:$0xff]
    %v1775 = vld [vmem:[#allocation2 + $0x9f8] sm:$0xff]
    %v1776 = vld [vmem:[#allocation2 + $0xa10] sm:$0xff]
    %v1777 = vld [vmem:[#allocation2 + $0xa18] sm:$0xff]
    %v1778 = vld [vmem:[#allocation2 + $0xa30] sm:$0xff]
    %v1779 = vld [vmem:[#allocation2 + $0xa38] sm:$0xff]
    %v1780 = vld [vmem:[#allocation2 + $0xa50] sm:$0xff]
    %v1781 = vld [vmem:[#allocation2 + $0xa58] sm:$0xff]
    %v1782 = vld [vmem:[#allocation2 + $0xa70] sm:$0xff]
    %v1783 = vld [vmem:[#allocation2 + $0xa78] sm:$0xff]
    %v1784 = vld [vmem:[#allocation2 + $0xa90] sm:$0xff]
    %v1785 = vld [vmem:[#allocation2 + $0xa98] sm:$0xff]
    %v1786 = vld [vmem:[#allocation2 + $0xab0] sm:$0xff]
    %v1787 = vld [vmem:[#allocation2 + $0xab8] sm:$0xff]
    %v1788 = vld [vmem:[#allocation2 + $0xad0] sm:$0xff]
    %v1789 = vld [vmem:[#allocation2 + $0xad8] sm:$0xff]
    %v1790 = vld [vmem:[#allocation2 + $0xaf0] sm:$0xff]
    %v1791 = vld [vmem:[#allocation2 + $0xaf8] sm:$0xff]
    %v1792 = vld [vmem:[#allocation2 + $0xb10] sm:$0xff]
    %v1793 = vld [vmem:[#allocation2 + $0xb18] sm:$0xff]
    %v1794 = vld [vmem:[#allocation2 + $0xb30] sm:$0xff]
    %v1795 = vld [vmem:[#allocation2 + $0xb38] sm:$0xff]
    %v1796 = vld [vmem:[#allocation2 + $0xb50] sm:$0xff]
    %v1797 = vld [vmem:[#allocation2 + $0xb58] sm:$0xff]
    %v1798 = vld [vmem:[#allocation2 + $0xb70] sm:$0xff]
    %v1799 = vld [vmem:[#allocation2 + $0xb78] sm:$0xff]
    %v1800 = vld [vmem:[#allocation2 + $0xb90] sm:$0xff]
    %v1801 = vld [vmem:[#allocation2 + $0xb98] sm:$0xff]
    %v1802 = vld [vmem:[#allocation2 + $0xbb0] sm:$0xff]
    %v1803 = vld [vmem:[#allocation2 + $0xbb8] sm:$0xff]
    %v1804 = vld [vmem:[#allocation2 + $0xbd0] sm:$0xff]
    %v1805 = vld [vmem:[#allocation2 + $0xbd8] sm:$0xff]
    %v1806 = vld [vmem:[#allocation2 + $0xbf0] sm:$0xff]
    %v1807 = vld [vmem:[#allocation2 + $0xbf8] sm:$0xff]
    %v1808 = vld [vmem:[#allocation2 + $0xc10] sm:$0xff]
    %v1809 = vld [vmem:[#allocation2 + $0xc18] sm:$0xff]
    %v1810 = vld [vmem:[#allocation2 + $0xc30] sm:$0xff]
    %v1811 = vld [vmem:[#allocation2 + $0xc38] sm:$0xff]
    %v1812 = vld [vmem:[#allocation4 + $0x4] sm:$0xf]
    %v1814 = vlaneseq
    %v1815 = vshrl.u32 %v1814, 7
    %v1816 = vsub.s32 0, %v1815
    %v1817 = vrot.slane %v1812, %v1816
    %v1818 = vlaneseq
    %v1819 = vshrl.u32 %v1818, 7
    %v1820 = vsub.s32 1, %v1819
    %v1821 = vrot.slane %v1812, %v1820
    %v1822 = vlaneseq
    %v1823 = vshrl.u32 %v1822, 7
    %v1824 = vsub.s32 2, %v1823
    %v1825 = vrot.slane %v1812, %v1824
    %v1826 = vlaneseq
    %v1827 = vshrl.u32 %v1826, 7
    %v1828 = vsub.s32 3, %v1827
    %v1829 = vrot.slane %v1812, %v1828
    %v2030 = vunpack.c.l.b16 %v1616
    %v2031 = vunpack.c.h.b16 %v1616
    %v2032 = vunpack.c.l.b16 %v1617
    %v2033 = vunpack.c.h.b16 %v1617
    %v2034 = vunpack.c.l.b16 %v1618
    %v2035 = vunpack.c.h.b16 %v1618
    %v2036 = vunpack.c.l.b16 %v1619
    %v2037 = vunpack.c.h.b16 %v1619
    %v2038 = vunpack.c.l.b16 %v1620
    %v2039 = vunpack.c.h.b16 %v1620
    %v2040 = vunpack.c.l.b16 %v1621
    %v2041 = vunpack.c.h.b16 %v1621
    %v2042 = vunpack.c.l.b16 %v1622
    %v2043 = vunpack.c.h.b16 %v1622
    %v2044 = vunpack.c.l.b16 %v1623
    %v2045 = vunpack.c.h.b16 %v1623
    %v2046 = vunpack.c.l.b16 %v1624
    %v2047 = vunpack.c.h.b16 %v1624
    %v2048 = vunpack.c.l.b16 %v1625
    %v2049 = vunpack.c.h.b16 %v1625
    %v2050 = vunpack.c.l.b16 %v1626
    %v2051 = vunpack.c.h.b16 %v1626
    %v2052 = vunpack.c.l.b16 %v1627
    %v2053 = vunpack.c.h.b16 %v1627
    %v2054 = vunpack.c.l.b16 %v1628
    %v2055 = vunpack.c.h.b16 %v1628
    %v2056 = vunpack.c.l.b16 %v1629
    %v2057 = vunpack.c.h.b16 %v1629
    %v2058 = vunpack.c.l.b16 %v1630
    %v2059 = vunpack.c.h.b16 %v1630
    %v2060 = vunpack.c.l.b16 %v1631
    %v2061 = vunpack.c.h.b16 %v1631
    %v2062 = vunpack.c.l.b16 %v1632
    %v2063 = vunpack.c.h.b16 %v1632
    %v2064 = vunpack.c.l.b16 %v1633
    %v2065 = vunpack.c.h.b16 %v1633
    %v2066 = vunpack.c.l.b16 %v1634
    %v2067 = vunpack.c.h.b16 %v1634
    %v2068 = vunpack.c.l.b16 %v1635
    %v2069 = vunpack.c.h.b16 %v1635
    %v2070 = vunpack.c.l.b16 %v1636
    %v2071 = vunpack.c.h.b16 %v1636
    %v2072 = vunpack.c.l.b16 %v1637
    %v2073 = vunpack.c.h.b16 %v1637
    %v2074 = vunpack.c.l.b16 %v1638
    %v2075 = vunpack.c.h.b16 %v1638
    %v2076 = vunpack.c.l.b16 %v1639
    %v2077 = vunpack.c.h.b16 %v1639
    %v2078 = vunpack.c.l.b16 %v1640
    %v2079 = vunpack.c.h.b16 %v1640
    %v2080 = vunpack.c.l.b16 %v1641
    %v2081 = vunpack.c.h.b16 %v1641
    %v2082 = vunpack.c.l.b16 %v1642
    %v2083 = vunpack.c.h.b16 %v1642
    %v2084 = vunpack.c.l.b16 %v1643
    %v2085 = vunpack.c.h.b16 %v1643
    %v2086 = vunpack.c.l.b16 %v1644
    %v2087 = vunpack.c.h.b16 %v1644
    %v2088 = vunpack.c.l.b16 %v1645
    %v2089 = vunpack.c.h.b16 %v1645
    %v2090 = vunpack.c.l.b16 %v1646
    %v2091 = vunpack.c.h.b16 %v1646
    %v2092 = vunpack.c.l.b16 %v1647
    %v2093 = vunpack.c.h.b16 %v1647
    %v2094 = vunpack.c.l.b16 %v1648
    %v2095 = vunpack.c.h.b16 %v1648
    %v2096 = vunpack.c.l.b16 %v1649
    %v2097 = vunpack.c.h.b16 %v1649
    %v2098 = vunpack.c.l.b16 %v1650
    %v2099 = vunpack.c.h.b16 %v1650
    %v2100 = vunpack.c.l.b16 %v1651
    %v2101 = vunpack.c.h.b16 %v1651
    %v2102 = vunpack.c.l.b16 %v1652
    %v2103 = vunpack.c.h.b16 %v1652
    %v2104 = vunpack.c.l.b16 %v1653
    %v2105 = vunpack.c.h.b16 %v1653
    %v2106 = vunpack.c.l.b16 %v1654
    %v2107 = vunpack.c.h.b16 %v1654
    %v2108 = vunpack.c.l.b16 %v1655
    %v2109 = vunpack.c.h.b16 %v1655
    %v2110 = vunpack.c.l.b16 %v1656
    %v2111 = vunpack.c.h.b16 %v1656
    %v2112 = vunpack.c.l.b16 %v1657
    %v2113 = vunpack.c.h.b16 %v1657
    %v2114 = vunpack.c.l.b16 %v1658
    %v2115 = vunpack.c.h.b16 %v1658
    %v2116 = vunpack.c.l.b16 %v1659
    %v2117 = vunpack.c.h.b16 %v1659
    %v2118 = vunpack.c.l.b16 %v1660
    %v2119 = vunpack.c.h.b16 %v1660
    %v2120 = vunpack.c.l.b16 %v1661
    %v2121 = vunpack.c.h.b16 %v1661
    %v2122 = vunpack.c.l.b16 %v1662
    %v2123 = vunpack.c.h.b16 %v1662
    %v2124 = vunpack.c.l.b16 %v1663
    %v2125 = vunpack.c.h.b16 %v1663
    %v2126 = vunpack.c.l.b16 %v1664
    %v2127 = vunpack.c.h.b16 %v1664
    %v2128 = vunpack.c.l.b16 %v1665
    %v2129 = vunpack.c.h.b16 %v1665
    %v2130 = vunpack.c.l.b16 %v1666
    %v2131 = vunpack.c.h.b16 %v1666
    %v2132 = vunpack.c.l.b16 %v1667
    %v2133 = vunpack.c.h.b16 %v1667
    %v2134 = vunpack.c.l.b16 %v1668
    %v2135 = vunpack.c.h.b16 %v1668
    %v2136 = vunpack.c.l.b16 %v1669
    %v2137 = vunpack.c.h.b16 %v1669
    %v2138 = vunpack.c.l.b16 %v1670
    %v2139 = vunpack.c.h.b16 %v1670
    %v2140 = vunpack.c.l.b16 %v1671
    %v2141 = vunpack.c.h.b16 %v1671
    %v2142 = vunpack.c.l.b16 %v1672
    %v2143 = vunpack.c.h.b16 %v1672
    %v2144 = vunpack.c.l.b16 %v1673
    %v2145 = vunpack.c.h.b16 %v1673
    %v2146 = vunpack.c.l.b16 %v1674
    %v2147 = vunpack.c.h.b16 %v1674
    %v2148 = vunpack.c.l.b16 %v1675
    %v2149 = vunpack.c.h.b16 %v1675
    %v2150 = vunpack.c.l.b16 %v1676
    %v2151 = vunpack.c.h.b16 %v1676
    %v2152 = vunpack.c.l.b16 %v1677
    %v2153 = vunpack.c.h.b16 %v1677
    %v2154 = vunpack.c.l.b16 %v1678
    %v2155 = vunpack.c.h.b16 %v1678
    %v2156 = vunpack.c.l.b16 %v1679
    %v2157 = vunpack.c.h.b16 %v1679
    %v2158 = vunpack.c.l.b16 %v1680
    %v2159 = vunpack.c.h.b16 %v1680
    %v2160 = vunpack.c.l.b16 %v1681
    %v2161 = vunpack.c.h.b16 %v1681
    %v2162 = vunpack.c.l.b16 %v1682
    %v2163 = vunpack.c.h.b16 %v1682
    %v2164 = vunpack.c.l.b16 %v1683
    %v2165 = vunpack.c.h.b16 %v1683
    %v2166 = vunpack.c.l.b16 %v1684
    %v2167 = vunpack.c.h.b16 %v1684
    %v2168 = vunpack.c.l.b16 %v1685
    %v2169 = vunpack.c.h.b16 %v1685
    %v2170 = vunpack.c.l.b16 %v1686
    %v2171 = vunpack.c.h.b16 %v1686
    %v2172 = vunpack.c.l.b16 %v1687
    %v2173 = vunpack.c.h.b16 %v1687
    %v2174 = vunpack.c.l.b16 %v1688
    %v2175 = vunpack.c.h.b16 %v1688
    %v2176 = vunpack.c.l.b16 %v1689
    %v2177 = vunpack.c.h.b16 %v1689
    %v2178 = vunpack.c.l.b16 %v1690
    %v2179 = vunpack.c.h.b16 %v1690
    %v2180 = vunpack.c.l.b16 %v1691
    %v2181 = vunpack.c.h.b16 %v1691
    %v2182 = vunpack.c.l.b16 %v1692
    %v2183 = vunpack.c.h.b16 %v1692
    %v2184 = vunpack.c.l.b16 %v1693
    %v2185 = vunpack.c.h.b16 %v1693
    %v2186 = vunpack.c.l.b16 %v1694
    %v2187 = vunpack.c.h.b16 %v1694
    %v2188 = vunpack.c.l.b16 %v1695
    %v2189 = vunpack.c.h.b16 %v1695
    %v2190 = vunpack.c.l.b16 %v1696
    %v2191 = vunpack.c.h.b16 %v1696
    %v2192 = vunpack.c.l.b16 %v1697
    %v2193 = vunpack.c.h.b16 %v1697
    %v2194 = vunpack.c.l.b16 %v1698
    %v2195 = vunpack.c.h.b16 %v1698
    %v2196 = vunpack.c.l.b16 %v1699
    %v2197 = vunpack.c.h.b16 %v1699
    %v2198 = vunpack.c.l.b16 %v1700
    %v2199 = vunpack.c.h.b16 %v1700
    %v2200 = vunpack.c.l.b16 %v1701
    %v2201 = vunpack.c.h.b16 %v1701
    %v2202 = vunpack.c.l.b16 %v1702
    %v2203 = vunpack.c.h.b16 %v1702
    %v2204 = vunpack.c.l.b16 %v1703
    %v2205 = vunpack.c.h.b16 %v1703
    %v2206 = vunpack.c.l.b16 %v1704
    %v2207 = vunpack.c.h.b16 %v1704
    %v2208 = vunpack.c.l.b16 %v1705
    %v2209 = vunpack.c.h.b16 %v1705
    %v2210 = vunpack.c.l.b16 %v1706
    %v2211 = vunpack.c.h.b16 %v1706
    %v2212 = vunpack.c.l.b16 %v1707
    %v2213 = vunpack.c.h.b16 %v1707
    %v2214 = vunpack.c.l.b16 %v1708
    %v2215 = vunpack.c.h.b16 %v1708
    %v2216 = vunpack.c.l.b16 %v1709
    %v2217 = vunpack.c.h.b16 %v1709
    %v2218 = vunpack.c.l.b16 %v1710
    %v2219 = vunpack.c.h.b16 %v1710
    %v2220 = vunpack.c.l.b16 %v1711
    %v2221 = vunpack.c.h.b16 %v1711
    %v2222 = vunpack.c.l.b16 %v1712
    %v2223 = vunpack.c.h.b16 %v1712
    %v2224 = vunpack.c.l.b16 %v1713
    %v2225 = vunpack.c.h.b16 %v1713
    %v2226 = vunpack.c.l.b16 %v1714
    %v2227 = vunpack.c.h.b16 %v1714
    %v2228 = vunpack.c.l.b16 %v1715
    %v2229 = vunpack.c.h.b16 %v1715
    %v2230 = vunpack.c.l.b16 %v1716
    %v2231 = vunpack.c.h.b16 %v1716
    %v2232 = vunpack.c.l.b16 %v1717
    %v2233 = vunpack.c.h.b16 %v1717
    %v2234 = vunpack.c.l.b16 %v1718
    %v2235 = vunpack.c.h.b16 %v1718
    %v2236 = vunpack.c.l.b16 %v1719
    %v2237 = vunpack.c.h.b16 %v1719
    %v2238 = vunpack.c.l.b16 %v1720
    %v2239 = vunpack.c.h.b16 %v1720
    %v2240 = vunpack.c.l.b16 %v1721
    %v2241 = vunpack.c.h.b16 %v1721
    %v2242 = vunpack.c.l.b16 %v1722
    %v2243 = vunpack.c.h.b16 %v1722
    %v2244 = vunpack.c.l.b16 %v1723
    %v2245 = vunpack.c.h.b16 %v1723
    %v2246 = vunpack.c.l.b16 %v1724
    %v2247 = vunpack.c.h.b16 %v1724
    %v2248 = vunpack.c.l.b16 %v1725
    %v2249 = vunpack.c.h.b16 %v1725
    %v2250 = vunpack.c.l.b16 %v1726
    %v2251 = vunpack.c.h.b16 %v1726
    %v2252 = vunpack.c.l.b16 %v1727
    %v2253 = vunpack.c.h.b16 %v1727
    %v2254 = vunpack.c.l.b16 %v1728
    %v2255 = vunpack.c.h.b16 %v1728
    %v2256 = vunpack.c.l.b16 %v1729
    %v2257 = vunpack.c.h.b16 %v1729
    %v2258 = vunpack.c.l.b16 %v1730
    %v2259 = vunpack.c.h.b16 %v1730
    %v2260 = vunpack.c.l.b16 %v1731
    %v2261 = vunpack.c.h.b16 %v1731
    %v2262 = vunpack.c.l.b16 %v1732
    %v2263 = vunpack.c.h.b16 %v1732
    %v2264 = vunpack.c.l.b16 %v1733
    %v2265 = vunpack.c.h.b16 %v1733
    %v2266 = vunpack.c.l.b16 %v1734
    %v2267 = vunpack.c.h.b16 %v1734
    %v2268 = vunpack.c.l.b16 %v1735
    %v2269 = vunpack.c.h.b16 %v1735
    %v2270 = vunpack.c.l.b16 %v1736
    %v2271 = vunpack.c.h.b16 %v1736
    %v2272 = vunpack.c.l.b16 %v1737
    %v2273 = vunpack.c.h.b16 %v1737
    %v2274 = vunpack.c.l.b16 %v1738
    %v2275 = vunpack.c.h.b16 %v1738
    %v2276 = vunpack.c.l.b16 %v1739
    %v2277 = vunpack.c.h.b16 %v1739
    %v2278 = vunpack.c.l.b16 %v1740
    %v2279 = vunpack.c.h.b16 %v1740
    %v2280 = vunpack.c.l.b16 %v1741
    %v2281 = vunpack.c.h.b16 %v1741
    %v2282 = vunpack.c.l.b16 %v1742
    %v2283 = vunpack.c.h.b16 %v1742
    %v2284 = vunpack.c.l.b16 %v1743
    %v2285 = vunpack.c.h.b16 %v1743
    %v2286 = vunpack.c.l.b16 %v1744
    %v2287 = vunpack.c.h.b16 %v1744
    %v2288 = vunpack.c.l.b16 %v1745
    %v2289 = vunpack.c.h.b16 %v1745
    %v2290 = vunpack.c.l.b16 %v1746
    %v2291 = vunpack.c.h.b16 %v1746
    %v2292 = vunpack.c.l.b16 %v1747
    %v2293 = vunpack.c.h.b16 %v1747
    %v2294 = vunpack.c.l.b16 %v1748
    %v2295 = vunpack.c.h.b16 %v1748
    %v2296 = vunpack.c.l.b16 %v1749
    %v2297 = vunpack.c.h.b16 %v1749
    %v2298 = vunpack.c.l.b16 %v1750
    %v2299 = vunpack.c.h.b16 %v1750
    %v2300 = vunpack.c.l.b16 %v1751
    %v2301 = vunpack.c.h.b16 %v1751
    %v2302 = vunpack.c.l.b16 %v1752
    %v2303 = vunpack.c.h.b16 %v1752
    %v2304 = vunpack.c.l.b16 %v1753
    %v2305 = vunpack.c.h.b16 %v1753
    %v2306 = vunpack.c.l.b16 %v1754
    %v2307 = vunpack.c.h.b16 %v1754
    %v2308 = vunpack.c.l.b16 %v1755
    %v2309 = vunpack.c.h.b16 %v1755
    %v2310 = vunpack.c.l.b16 %v1756
    %v2311 = vunpack.c.h.b16 %v1756
    %v2312 = vunpack.c.l.b16 %v1757
    %v2313 = vunpack.c.h.b16 %v1757
    %v2314 = vunpack.c.l.b16 %v1758
    %v2315 = vunpack.c.h.b16 %v1758
    %v2316 = vunpack.c.l.b16 %v1759
    %v2317 = vunpack.c.h.b16 %v1759
    %v2318 = vunpack.c.l.b16 %v1760
    %v2319 = vunpack.c.h.b16 %v1760
    %v2320 = vunpack.c.l.b16 %v1761
    %v2321 = vunpack.c.h.b16 %v1761
    %v2322 = vunpack.c.l.b16 %v1762
    %v2323 = vunpack.c.h.b16 %v1762
    %v2324 = vunpack.c.l.b16 %v1763
    %v2325 = vunpack.c.h.b16 %v1763
    %v2326 = vunpack.c.l.b16 %v1764
    %v2327 = vunpack.c.h.b16 %v1764
    %v2328 = vunpack.c.l.b16 %v1765
    %v2329 = vunpack.c.h.b16 %v1765
    %v2330 = vunpack.c.l.b16 %v1766
    %v2331 = vunpack.c.h.b16 %v1766
    %v2332 = vunpack.c.l.b16 %v1767
    %v2333 = vunpack.c.h.b16 %v1767
    %v2334 = vunpack.c.l.b16 %v1768
    %v2335 = vunpack.c.h.b16 %v1768
    %v2336 = vunpack.c.l.b16 %v1769
    %v2337 = vunpack.c.h.b16 %v1769
    %v2338 = vunpack.c.l.b16 %v1770
    %v2339 = vunpack.c.h.b16 %v1770
    %v2340 = vunpack.c.l.b16 %v1771
    %v2341 = vunpack.c.h.b16 %v1771
    %v2342 = vunpack.c.l.b16 %v1772
    %v2343 = vunpack.c.h.b16 %v1772
    %v2344 = vunpack.c.l.b16 %v1773
    %v2345 = vunpack.c.h.b16 %v1773
    %v2346 = vunpack.c.l.b16 %v1774
    %v2347 = vunpack.c.h.b16 %v1774
    %v2348 = vunpack.c.l.b16 %v1775
    %v2349 = vunpack.c.h.b16 %v1775
    %v2350 = vunpack.c.l.b16 %v1776
    %v2351 = vunpack.c.h.b16 %v1776
    %v2352 = vunpack.c.l.b16 %v1777
    %v2353 = vunpack.c.h.b16 %v1777
    %v2354 = vunpack.c.l.b16 %v1778
    %v2355 = vunpack.c.h.b16 %v1778
    %v2356 = vunpack.c.l.b16 %v1779
    %v2357 = vunpack.c.h.b16 %v1779
    %v2358 = vunpack.c.l.b16 %v1780
    %v2359 = vunpack.c.h.b16 %v1780
    %v2360 = vunpack.c.l.b16 %v1781
    %v2361 = vunpack.c.h.b16 %v1781
    %v2362 = vunpack.c.l.b16 %v1782
    %v2363 = vunpack.c.h.b16 %v1782
    %v2364 = vunpack.c.l.b16 %v1783
    %v2365 = vunpack.c.h.b16 %v1783
    %v2366 = vunpack.c.l.b16 %v1784
    %v2367 = vunpack.c.h.b16 %v1784
    %v2368 = vunpack.c.l.b16 %v1785
    %v2369 = vunpack.c.h.b16 %v1785
    %v2370 = vunpack.c.l.b16 %v1786
    %v2371 = vunpack.c.h.b16 %v1786
    %v2372 = vunpack.c.l.b16 %v1787
    %v2373 = vunpack.c.h.b16 %v1787
    %v2374 = vunpack.c.l.b16 %v1788
    %v2375 = vunpack.c.h.b16 %v1788
    %v2376 = vunpack.c.l.b16 %v1789
    %v2377 = vunpack.c.h.b16 %v1789
    %v2378 = vunpack.c.l.b16 %v1790
    %v2379 = vunpack.c.h.b16 %v1790
    %v2380 = vunpack.c.l.b16 %v1791
    %v2381 = vunpack.c.h.b16 %v1791
    %v2382 = vunpack.c.l.b16 %v1792
    %v2383 = vunpack.c.h.b16 %v1792
    %v2384 = vunpack.c.l.b16 %v1793
    %v2385 = vunpack.c.h.b16 %v1793
    %v2386 = vunpack.c.l.b16 %v1794
    %v2387 = vunpack.c.h.b16 %v1794
    %v2388 = vunpack.c.l.b16 %v1795
    %v2389 = vunpack.c.h.b16 %v1795
    %v2390 = vunpack.c.l.b16 %v1796
    %v2391 = vunpack.c.h.b16 %v1796
    %v2392 = vunpack.c.l.b16 %v1797
    %v2393 = vunpack.c.h.b16 %v1797
    %v2394 = vunpack.c.l.b16 %v1798
    %v2395 = vunpack.c.h.b16 %v1798
    %v2396 = vunpack.c.l.b16 %v1799
    %v2397 = vunpack.c.h.b16 %v1799
    %v2398 = vunpack.c.l.b16 %v1800
    %v2399 = vunpack.c.h.b16 %v1800
    %v2400 = vunpack.c.l.b16 %v1801
    %v2401 = vunpack.c.h.b16 %v1801
    %v2402 = vunpack.c.l.b16 %v1802
    %v2403 = vunpack.c.h.b16 %v1802
    %v2404 = vunpack.c.l.b16 %v1803
    %v2405 = vunpack.c.h.b16 %v1803
    %v2406 = vunpack.c.l.b16 %v1804
    %v2407 = vunpack.c.h.b16 %v1804
    %v2408 = vunpack.c.l.b16 %v1805
    %v2409 = vunpack.c.h.b16 %v1805
    %v2410 = vunpack.c.l.b16 %v1806
    %v2411 = vunpack.c.h.b16 %v1806
    %v2412 = vunpack.c.l.b16 %v1807
    %v2413 = vunpack.c.h.b16 %v1807
    %v2414 = vunpack.c.l.b16 %v1808
    %v2415 = vunpack.c.h.b16 %v1808
    %v2416 = vunpack.c.l.b16 %v1809
    %v2417 = vunpack.c.h.b16 %v1809
    %v2418 = vunpack.c.l.b16 %v1810
    %v2419 = vunpack.c.h.b16 %v1810
    %v2420 = vunpack.c.l.b16 %v1811
    %v2421 = vunpack.c.h.b16 %v1811
    %v2422 = vpack.c.b16 %v2034, %v2030
    %v2423 = vpack.c.b16 %v2035, %v2031
    %v2424 = vpack.c.b16 %v2036, %v2032
    %v2425 = vpack.c.b16 %v2037, %v2033
    %v2426 = vpack.c.b16 %v2042, %v2038
    %v2427 = vpack.c.b16 %v2043, %v2039
    %v2428 = vpack.c.b16 %v2044, %v2040
    %v2429 = vpack.c.b16 %v2045, %v2041
    %v2430 = vpack.c.b16 %v2050, %v2046
    %v2431 = vpack.c.b16 %v2051, %v2047
    %v2432 = vpack.c.b16 %v2052, %v2048
    %v2433 = vpack.c.b16 %v2053, %v2049
    %v2434 = vpack.c.b16 %v2058, %v2054
    %v2435 = vpack.c.b16 %v2059, %v2055
    %v2436 = vpack.c.b16 %v2060, %v2056
    %v2437 = vpack.c.b16 %v2061, %v2057
    %v2438 = vpack.c.b16 %v2066, %v2062
    %v2439 = vpack.c.b16 %v2067, %v2063
    %v2440 = vpack.c.b16 %v2068, %v2064
    %v2441 = vpack.c.b16 %v2069, %v2065
    %v2442 = vpack.c.b16 %v2074, %v2070
    %v2443 = vpack.c.b16 %v2075, %v2071
    %v2444 = vpack.c.b16 %v2076, %v2072
    %v2445 = vpack.c.b16 %v2077, %v2073
    %v2446 = vpack.c.b16 %v2082, %v2078
    %v2447 = vpack.c.b16 %v2083, %v2079
    %v2448 = vpack.c.b16 %v2084, %v2080
    %v2449 = vpack.c.b16 %v2085, %v2081
    %v2450 = vpack.c.b16 %v2090, %v2086
    %v2451 = vpack.c.b16 %v2091, %v2087
    %v2452 = vpack.c.b16 %v2092, %v2088
    %v2453 = vpack.c.b16 %v2093, %v2089
    %v2454 = vpack.c.b16 %v2098, %v2094
    %v2455 = vpack.c.b16 %v2099, %v2095
    %v2456 = vpack.c.b16 %v2100, %v2096
    %v2457 = vpack.c.b16 %v2101, %v2097
    %v2458 = vpack.c.b16 %v2106, %v2102
    %v2459 = vpack.c.b16 %v2107, %v2103
    %v2460 = vpack.c.b16 %v2108, %v2104
    %v2461 = vpack.c.b16 %v2109, %v2105
    %v2462 = vpack.c.b16 %v2114, %v2110
    %v2463 = vpack.c.b16 %v2115, %v2111
    %v2464 = vpack.c.b16 %v2116, %v2112
    %v2465 = vpack.c.b16 %v2117, %v2113
    %v2466 = vpack.c.b16 %v2122, %v2118
    %v2467 = vpack.c.b16 %v2123, %v2119
    %v2468 = vpack.c.b16 %v2124, %v2120
    %v2469 = vpack.c.b16 %v2125, %v2121
    %v2470 = vpack.c.b16 %v2130, %v2126
    %v2471 = vpack.c.b16 %v2131, %v2127
    %v2472 = vpack.c.b16 %v2132, %v2128
    %v2473 = vpack.c.b16 %v2133, %v2129
    %v2474 = vpack.c.b16 %v2138, %v2134
    %v2475 = vpack.c.b16 %v2139, %v2135
    %v2476 = vpack.c.b16 %v2140, %v2136
    %v2477 = vpack.c.b16 %v2141, %v2137
    %v2478 = vpack.c.b16 %v2146, %v2142
    %v2479 = vpack.c.b16 %v2147, %v2143
    %v2480 = vpack.c.b16 %v2148, %v2144
    %v2481 = vpack.c.b16 %v2149, %v2145
    %v2482 = vpack.c.b16 %v2154, %v2150
    %v2483 = vpack.c.b16 %v2155, %v2151
    %v2484 = vpack.c.b16 %v2156, %v2152
    %v2485 = vpack.c.b16 %v2157, %v2153
    %v2486 = vpack.c.b16 %v2162, %v2158
    %v2487 = vpack.c.b16 %v2163, %v2159
    %v2488 = vpack.c.b16 %v2164, %v2160
    %v2489 = vpack.c.b16 %v2165, %v2161
    %v2490 = vpack.c.b16 %v2170, %v2166
    %v2491 = vpack.c.b16 %v2171, %v2167
    %v2492 = vpack.c.b16 %v2172, %v2168
    %v2493 = vpack.c.b16 %v2173, %v2169
    %v2494 = vpack.c.b16 %v2178, %v2174
    %v2495 = vpack.c.b16 %v2179, %v2175
    %v2496 = vpack.c.b16 %v2180, %v2176
    %v2497 = vpack.c.b16 %v2181, %v2177
    %v2498 = vpack.c.b16 %v2186, %v2182
    %v2499 = vpack.c.b16 %v2187, %v2183
    %v2500 = vpack.c.b16 %v2188, %v2184
    %v2501 = vpack.c.b16 %v2189, %v2185
    %v2502 = vpack.c.b16 %v2194, %v2190
    %v2503 = vpack.c.b16 %v2195, %v2191
    %v2504 = vpack.c.b16 %v2196, %v2192
    %v2505 = vpack.c.b16 %v2197, %v2193
    %v2506 = vpack.c.b16 %v2202, %v2198
    %v2507 = vpack.c.b16 %v2203, %v2199
    %v2508 = vpack.c.b16 %v2204, %v2200
    %v2509 = vpack.c.b16 %v2205, %v2201
    %v2510 = vpack.c.b16 %v2210, %v2206
    %v2511 = vpack.c.b16 %v2211, %v2207
    %v2512 = vpack.c.b16 %v2212, %v2208
    %v2513 = vpack.c.b16 %v2213, %v2209
    %v2514 = vpack.c.b16 %v2218, %v2214
    %v2515 = vpack.c.b16 %v2219, %v2215
    %v2516 = vpack.c.b16 %v2220, %v2216
    %v2517 = vpack.c.b16 %v2221, %v2217
    %v2518 = vpack.c.b16 %v2226, %v2222
    %v2519 = vpack.c.b16 %v2227, %v2223
    %v2520 = vpack.c.b16 %v2228, %v2224
    %v2521 = vpack.c.b16 %v2229, %v2225
    %v2522 = vpack.c.b16 %v2234, %v2230
    %v2523 = vpack.c.b16 %v2235, %v2231
    %v2524 = vpack.c.b16 %v2236, %v2232
    %v2525 = vpack.c.b16 %v2237, %v2233
    %v2526 = vpack.c.b16 %v2242, %v2238
    %v2527 = vpack.c.b16 %v2243, %v2239
    %v2528 = vpack.c.b16 %v2244, %v2240
    %v2529 = vpack.c.b16 %v2245, %v2241
    %v2530 = vpack.c.b16 %v2250, %v2246
    %v2531 = vpack.c.b16 %v2251, %v2247
    %v2532 = vpack.c.b16 %v2252, %v2248
    %v2533 = vpack.c.b16 %v2253, %v2249
    %v2534 = vpack.c.b16 %v2258, %v2254
    %v2535 = vpack.c.b16 %v2259, %v2255
    %v2536 = vpack.c.b16 %v2260, %v2256
    %v2537 = vpack.c.b16 %v2261, %v2257
    %v2538 = vpack.c.b16 %v2266, %v2262
    %v2539 = vpack.c.b16 %v2267, %v2263
    %v2540 = vpack.c.b16 %v2268, %v2264
    %v2541 = vpack.c.b16 %v2269, %v2265
    %v2542 = vpack.c.b16 %v2274, %v2270
    %v2543 = vpack.c.b16 %v2275, %v2271
    %v2544 = vpack.c.b16 %v2276, %v2272
    %v2545 = vpack.c.b16 %v2277, %v2273
    %v2546 = vpack.c.b16 %v2282, %v2278
    %v2547 = vpack.c.b16 %v2283, %v2279
    %v2548 = vpack.c.b16 %v2284, %v2280
    %v2549 = vpack.c.b16 %v2285, %v2281
    %v2550 = vpack.c.b16 %v2290, %v2286
    %v2551 = vpack.c.b16 %v2291, %v2287
    %v2552 = vpack.c.b16 %v2292, %v2288
    %v2553 = vpack.c.b16 %v2293, %v2289
    %v2554 = vpack.c.b16 %v2298, %v2294
    %v2555 = vpack.c.b16 %v2299, %v2295
    %v2556 = vpack.c.b16 %v2300, %v2296
    %v2557 = vpack.c.b16 %v2301, %v2297
    %v2558 = vpack.c.b16 %v2306, %v2302
    %v2559 = vpack.c.b16 %v2307, %v2303
    %v2560 = vpack.c.b16 %v2308, %v2304
    %v2561 = vpack.c.b16 %v2309, %v2305
    %v2562 = vpack.c.b16 %v2314, %v2310
    %v2563 = vpack.c.b16 %v2315, %v2311
    %v2564 = vpack.c.b16 %v2316, %v2312
    %v2565 = vpack.c.b16 %v2317, %v2313
    %v2566 = vpack.c.b16 %v2322, %v2318
    %v2567 = vpack.c.b16 %v2323, %v2319
    %v2568 = vpack.c.b16 %v2324, %v2320
    %v2569 = vpack.c.b16 %v2325, %v2321
    %v2570 = vpack.c.b16 %v2330, %v2326
    %v2571 = vpack.c.b16 %v2331, %v2327
    %v2572 = vpack.c.b16 %v2332, %v2328
    %v2573 = vpack.c.b16 %v2333, %v2329
    %v2574 = vpack.c.b16 %v2338, %v2334
    %v2575 = vpack.c.b16 %v2339, %v2335
    %v2576 = vpack.c.b16 %v2340, %v2336
    %v2577 = vpack.c.b16 %v2341, %v2337
    %v2578 = vpack.c.b16 %v2346, %v2342
    %v2579 = vpack.c.b16 %v2347, %v2343
    %v2580 = vpack.c.b16 %v2348, %v2344
    %v2581 = vpack.c.b16 %v2349, %v2345
    %v2582 = vpack.c.b16 %v2354, %v2350
    %v2583 = vpack.c.b16 %v2355, %v2351
    %v2584 = vpack.c.b16 %v2356, %v2352
    %v2585 = vpack.c.b16 %v2357, %v2353
    %v2586 = vpack.c.b16 %v2362, %v2358
    %v2587 = vpack.c.b16 %v2363, %v2359
    %v2588 = vpack.c.b16 %v2364, %v2360
    %v2589 = vpack.c.b16 %v2365, %v2361
    %v2590 = vpack.c.b16 %v2370, %v2366
    %v2591 = vpack.c.b16 %v2371, %v2367
    %v2592 = vpack.c.b16 %v2372, %v2368
    %v2593 = vpack.c.b16 %v2373, %v2369
    %v2594 = vpack.c.b16 %v2378, %v2374
    %v2595 = vpack.c.b16 %v2379, %v2375
    %v2596 = vpack.c.b16 %v2380, %v2376
    %v2597 = vpack.c.b16 %v2381, %v2377
    %v2598 = vpack.c.b16 %v2386, %v2382
    %v2599 = vpack.c.b16 %v2387, %v2383
    %v2600 = vpack.c.b16 %v2388, %v2384
    %v2601 = vpack.c.b16 %v2389, %v2385
    %v2602 = vpack.c.b16 %v2394, %v2390
    %v2603 = vpack.c.b16 %v2395, %v2391
    %v2604 = vpack.c.b16 %v2396, %v2392
    %v2605 = vpack.c.b16 %v2397, %v2393
    %v2606 = vpack.c.b16 %v2402, %v2398
    %v2607 = vpack.c.b16 %v2403, %v2399
    %v2608 = vpack.c.b16 %v2404, %v2400
    %v2609 = vpack.c.b16 %v2405, %v2401
    %v2610 = vpack.c.b16 %v2410, %v2406
    %v2611 = vpack.c.b16 %v2411, %v2407
    %v2612 = vpack.c.b16 %v2412, %v2408
    %v2613 = vpack.c.b16 %v2413, %v2409
    %v2614 = vpack.c.b16 %v2418, %v2414
    %v2615 = vpack.c.b16 %v2419, %v2415
    %v2616 = vpack.c.b16 %v2420, %v2416
    %v2617 = vpack.c.b16 %v2421, %v2417
    %2814 = vmatprep.subr.bf16.mxu0 %v2423
    %2815 = vmatpush1.bf16.msra.mxu0 %v2422
    %2816 = vmatprep.subr.bf16.mxu0 %v2427
    %2817 = vmatpush1.bf16.msra.mxu0 %v2426
    %2818 = vmatprep.subr.bf16.mxu0 %v2431
    %2819 = vmatpush1.bf16.msra.mxu0 %v2430
    %2820 = vmatprep.subr.bf16.mxu0 %v2435
    %2821 = vmatpush1.bf16.msra.mxu0 %v2434
    %2822 = vmatprep.subr.bf16.mxu0 %v2439
    %2823 = vmatpush1.bf16.msra.mxu0 %v2438
    %2824 = vmatprep.subr.bf16.mxu0 %v2443
    %2825 = vmatpush1.bf16.msra.mxu0 %v2442
    %2826 = vmatprep.subr.bf16.mxu0 %v2447
    %2827 = vmatpush1.bf16.msra.mxu0 %v2446
    %2828 = vmatprep.subr.bf16.mxu0 %v2451
    %2829 = vmatpush1.bf16.msra.mxu0 %v2450
    %2830 = vmatprep.subr.bf16.mxu0 %v2455
    %2831 = vmatpush1.bf16.msra.mxu0 %v2454
    %2832 = vmatprep.subr.bf16.mxu0 %v2459
    %2833 = vmatpush1.bf16.msra.mxu0 %v2458
    %2834 = vmatprep.subr.bf16.mxu0 %v2463
    %2835 = vmatpush1.bf16.msra.mxu0 %v2462
    %2836 = vmatprep.subr.bf16.mxu0 %v2467
    %2837 = vmatpush1.bf16.msra.mxu0 %v2466
    %2838 = vmatprep.subr.bf16.mxu0 %v2471
    %2839 = vmatpush1.bf16.msra.mxu0 %v2470
    %2840 = vmatprep.subr.bf16.mxu0 %v2475
    %2841 = vmatpush1.bf16.msra.mxu0 %v2474
    %2842 = vmatprep.subr.bf16.mxu0 %v2479
    %2843 = vmatpush1.bf16.msra.mxu0 %v2478
    %2844 = vmatprep.subr.bf16.mxu0 %v2483
    %2845 = vmatpush1.bf16.msra.mxu0 %v2482
    %2846 = vmatprep.mubr.bf16.mxu0 %v80
    %2847 = vmatmul.mubr.bf16.gmra.mrb[0].mxu0 %v79
    %v2848 = vpop.f32.mrb[0].mxu0
    %v2849 = vadd.f32 %v1817, %v2848
    %v2850 = vpop.f32.mrb[0].mxu0
    %v2851 = vadd.f32 %v1821, %v2850
    %v2852 = vpop.f32.mrb[0].mxu0
    %v2853 = vpop.f32.mrb[0].mxu0
    %2854 = vdwg.mxu0
    %2855 = vmatprep.subr.bf16.mxu0 %v2487
    %2856 = vmatpush1.bf16.msra.mxu0 %v2486
    %2857 = vmatprep.subr.bf16.mxu0 %v2491
    %2858 = vmatpush1.bf16.msra.mxu0 %v2490
    %2859 = vmatprep.subr.bf16.mxu0 %v2495
    %2860 = vmatpush1.bf16.msra.mxu0 %v2494
    %2861 = vmatprep.subr.bf16.mxu0 %v2499
    %2862 = vmatpush1.bf16.msra.mxu0 %v2498
    %2863 = vmatprep.subr.bf16.mxu0 %v2503
    %2864 = vmatpush1.bf16.msra.mxu0 %v2502
    %2865 = vmatprep.subr.bf16.mxu0 %v2507
    %2866 = vmatpush1.bf16.msra.mxu0 %v2506
    %2867 = vmatprep.subr.bf16.mxu0 %v2511
    %2868 = vmatpush1.bf16.msra.mxu0 %v2510
    %2869 = vmatprep.subr.bf16.mxu0 %v2515
    %2870 = vmatpush1.bf16.msra.mxu0 %v2514
    %2871 = vmatprep.subr.bf16.mxu0 %v2519
    %2872 = vmatpush1.bf16.msra.mxu0 %v2518
    %2873 = vmatprep.subr.bf16.mxu0 %v2523
    %2874 = vmatpush1.bf16.msra.mxu0 %v2522
    %2875 = vmatprep.subr.bf16.mxu0 %v2527
    %2876 = vmatpush1.bf16.msra.mxu0 %v2526
    %2877 = vmatprep.subr.bf16.mxu0 %v2531
    %2878 = vmatpush1.bf16.msra.mxu0 %v2530
    %2879 = vmatprep.subr.bf16.mxu0 %v2535
    %2880 = vmatpush1.bf16.msra.mxu0 %v2534
    %2881 = vmatprep.subr.bf16.mxu0 %v2539
    %2882 = vmatpush1.bf16.msra.mxu0 %v2538
    %2883 = vmatprep.subr.bf16.mxu0 %v2543
    %2884 = vmatpush1.bf16.msra.mxu0 %v2542
    %2885 = vmatprep.subr.bf16.mxu0 %v2547
    %2886 = vmatpush1.bf16.msra.mxu0 %v2546
    %2887 = vmatprep.mubr.bf16.mxu0 %v82
    %2888 = vmatmul.mubr.bf16.gmra.mrb[0].mxu0 %v81
    %v2889 = vpop.f32.mrb[0].mxu0
    %v2890 = vadd.f32 %v2849, %v2889
    %v2891 = vpop.f32.mrb[0].mxu0
    %v2892 = vadd.f32 %v2851, %v2891
    %v2893 = vpop.f32.mrb[0].mxu0
    %v2894 = vpop.f32.mrb[0].mxu0
    %2895 = vdwg.mxu0
    %2896 = vmatprep.subr.bf16.mxu0 %v2551
    %2897 = vmatpush1.bf16.msra.mxu0 %v2550
    %2898 = vmatprep.subr.bf16.mxu0 %v2555
    %2899 = vmatpush1.bf16.msra.mxu0 %v2554
    %2900 = vmatprep.subr.bf16.mxu0 %v2559
    %2901 = vmatpush1.bf16.msra.mxu0 %v2558
    %2902 = vmatprep.subr.bf16.mxu0 %v2563
    %2903 = vmatpush1.bf16.msra.mxu0 %v2562
    %2904 = vmatprep.subr.bf16.mxu0 %v2567
    %2905 = vmatpush1.bf16.msra.mxu0 %v2566
    %2906 = vmatprep.subr.bf16.mxu0 %v2571
    %2907 = vmatpush1.bf16.msra.mxu0 %v2570
    %2908 = vmatprep.subr.bf16.mxu0 %v2575
    %2909 = vmatpush1.bf16.msra.mxu0 %v2574
    %2910 = vmatprep.subr.bf16.mxu0 %v2579
    %2911 = vmatpush1.bf16.msra.mxu0 %v2578
    %2912 = vmatprep.subr.bf16.mxu0 %v2583
    %2913 = vmatpush1.bf16.msra.mxu0 %v2582
    %2914 = vmatprep.subr.bf16.mxu0 %v2587
    %2915 = vmatpush1.bf16.msra.mxu0 %v2586
    %2916 = vmatprep.subr.bf16.mxu0 %v2591
    %2917 = vmatpush1.bf16.msra.mxu0 %v2590
    %2918 = vmatprep.subr.bf16.mxu0 %v2595
    %2919 = vmatpush1.bf16.msra.mxu0 %v2594
    %2920 = vmatprep.subr.bf16.mxu0 %v2599
    %2921 = vmatpush1.bf16.msra.mxu0 %v2598
    %2922 = vmatprep.subr.bf16.mxu0 %v2603
    %2923 = vmatpush1.bf16.msra.mxu0 %v2602
    %2924 = vmatprep.subr.bf16.mxu0 %v2607
    %2925 = vmatpush1.bf16.msra.mxu0 %v2606
    %2926 = vmatprep.subr.bf16.mxu0 %v2611
    %2927 = vmatpush1.bf16.msra.mxu0 %v2610
    %2928 = vmatprep.mubr.bf16.mxu0 %v84
    %2929 = vmatmul.mubr.bf16.gmra.mrb[0].mxu0 %v83
    %v2930 = vpop.f32.mrb[0].mxu0
    %v2931 = vadd.f32 %v2890, %v2930
    %v2932 = vpop.f32.mrb[0].mxu0
    %v2933 = vadd.f32 %v2892, %v2932
    %v2934 = vpop.f32.mrb[0].mxu0
    %v2935 = vpop.f32.mrb[0].mxu0
    %2936 = vdwg.mxu0
    %2937 = vmatprep.subr.bf16.mxu0 %v2615
    %2938 = vmatpush1.bf16.msra.mxu0 %v2614
    %2939 = vmatprep.subr.bf16.mxu0 0
    %2940 = vmatpush1.bf16.msra.mxu0 0
    %2941 = vmatprep.subr.bf16.mxu0 0
    %2942 = vmatpush1.bf16.msra.mxu0 0
    %2943 = vmatprep.subr.bf16.mxu0 0
    %2944 = vmatpush1.bf16.msra.mxu0 0
    %2945 = vmatprep.subr.bf16.mxu0 0
    %2946 = vmatpush1.bf16.msra.mxu0 0
    %2947 = vmatprep.subr.bf16.mxu0 0
    %2948 = vmatpush1.bf16.msra.mxu0 0
    %2949 = vmatprep.subr.bf16.mxu0 0
    %2950 = vmatpush1.bf16.msra.mxu0 0
    %2951 = vmatprep.subr.bf16.mxu0 0
    %2952 = vmatpush1.bf16.msra.mxu0 0
    %2953 = vmatprep.subr.bf16.mxu0 0
    %2954 = vmatpush1.bf16.msra.mxu0 0
    %2955 = vmatprep.subr.bf16.mxu0 0
    %2956 = vmatpush1.bf16.msra.mxu0 0
    %2957 = vmatprep.subr.bf16.mxu0 0
    %2958 = vmatpush1.bf16.msra.mxu0 0
    %2959 = vmatprep.subr.bf16.mxu0 0
    %2960 = vmatpush1.bf16.msra.mxu0 0
    %2961 = vmatprep.subr.bf16.mxu0 0
    %2962 = vmatpush1.bf16.msra.mxu0 0
    %2963 = vmatprep.subr.bf16.mxu0 0
    %2964 = vmatpush1.bf16.msra.mxu0 0
    %2965 = vmatprep.subr.bf16.mxu0 0
    %2966 = vmatpush1.bf16.msra.mxu0 0
    %2967 = vmatprep.subr.bf16.mxu0 0
    %2968 = vmatpush1.bf16.msra.mxu0 0
    %2969 = vmatprep.mubr.bf16.mxu0 0
    %2970 = vmatmul.mubr.bf16.gmra.mrb[0].mxu0 %v1286
    %v2971 = vpop.f32.mrb[0].mxu0
    %v2972 = vadd.f32 %v2931, %v2971
    %v2973 = vpop.f32.mrb[0].mxu0
    %v2974 = vadd.f32 %v2933, %v2973
    %v2975 = vpop.f32.mrb[0].mxu0
    %v2976 = vpop.f32.mrb[0].mxu0
    %2977 = vdwg.mxu0
    %2978 = vmatprep.subr.bf16.mxu0 %v2425
    %2979 = vmatpush1.bf16.msra.mxu0 %v2424
    %2980 = vmatprep.subr.bf16.mxu0 %v2429
    %2981 = vmatpush1.bf16.msra.mxu0 %v2428
    %2982 = vmatprep.subr.bf16.mxu0 %v2433
    %2983 = vmatpush1.bf16.msra.mxu0 %v2432
    %2984 = vmatprep.subr.bf16.mxu0 %v2437
    %2985 = vmatpush1.bf16.msra.mxu0 %v2436
    %2986 = vmatprep.subr.bf16.mxu0 %v2441
    %2987 = vmatpush1.bf16.msra.mxu0 %v2440
    %2988 = vmatprep.subr.bf16.mxu0 %v2445
    %2989 = vmatpush1.bf16.msra.mxu0 %v2444
    %2990 = vmatprep.subr.bf16.mxu0 %v2449
    %2991 = vmatpush1.bf16.msra.mxu0 %v2448
    %2992 = vmatprep.subr.bf16.mxu0 %v2453
    %2993 = vmatpush1.bf16.msra.mxu0 %v2452
    %2994 = vmatprep.subr.bf16.mxu0 %v2457
    %2995 = vmatpush1.bf16.msra.mxu0 %v2456
    %2996 = vmatprep.subr.bf16.mxu0 %v2461
    %2997 = vmatpush1.bf16.msra.mxu0 %v2460
    %2998 = vmatprep.subr.bf16.mxu0 %v2465
    %2999 = vmatpush1.bf16.msra.mxu0 %v2464
    %3000 = vmatprep.subr.bf16.mxu0 %v2469
    %3001 = vmatpush1.bf16.msra.mxu0 %v2468
    %3002 = vmatprep.subr.bf16.mxu0 %v2473
    %3003 = vmatpush1.bf16.msra.mxu0 %v2472
    %3004 = vmatprep.subr.bf16.mxu0 %v2477
    %3005 = vmatpush1.bf16.msra.mxu0 %v2476
    %3006 = vmatprep.subr.bf16.mxu0 %v2481
    %3007 = vmatpush1.bf16.msra.mxu0 %v2480
    %3008 = vmatprep.subr.bf16.mxu0 %v2485
    %3009 = vmatpush1.bf16.msra.mxu0 %v2484
    %3010 = vmatprep.mubr.bf16.mxu0 %v80
    %3011 = vmatmul.mubr.bf16.gmra.mrb[0].mxu0 %v79
    %v3012 = vpop.f32.mrb[0].mxu0
    %v3013 = vadd.f32 %v1825, %v3012
    %v3014 = vpop.f32.mrb[0].mxu0
    %v3015 = vadd.f32 %v1829, %v3014
    %v3016 = vpop.f32.mrb[0].mxu0
    %v3017 = vpop.f32.mrb[0].mxu0
    %3018 = vdwg.mxu0
    %3019 = vmatprep.subr.bf16.mxu0 %v2489
    %3020 = vmatpush1.bf16.msra.mxu0 %v2488
    %3021 = vmatprep.subr.bf16.mxu0 %v2493
    %3022 = vmatpush1.bf16.msra.mxu0 %v2492
    %3023 = vmatprep.subr.bf16.mxu0 %v2497
    %3024 = vmatpush1.bf16.msra.mxu0 %v2496
    %3025 = vmatprep.subr.bf16.mxu0 %v2501
    %3026 = vmatpush1.bf16.msra.mxu0 %v2500
    %3027 = vmatprep.subr.bf16.mxu0 %v2505
    %3028 = vmatpush1.bf16.msra.mxu0 %v2504
    %3029 = vmatprep.subr.bf16.mxu0 %v2509
    %3030 = vmatpush1.bf16.msra.mxu0 %v2508
    %3031 = vmatprep.subr.bf16.mxu0 %v2513
    %3032 = vmatpush1.bf16.msra.mxu0 %v2512
    %3033 = vmatprep.subr.bf16.mxu0 %v2517
    %3034 = vmatpush1.bf16.msra.mxu0 %v2516
    %3035 = vmatprep.subr.bf16.mxu0 %v2521
    %3036 = vmatpush1.bf16.msra.mxu0 %v2520
    %3037 = vmatprep.subr.bf16.mxu0 %v2525
    %3038 = vmatpush1.bf16.msra.mxu0 %v2524
    %3039 = vmatprep.subr.bf16.mxu0 %v2529
    %3040 = vmatpush1.bf16.msra.mxu0 %v2528
    %3041 = vmatprep.subr.bf16.mxu0 %v2533
    %3042 = vmatpush1.bf16.msra.mxu0 %v2532
    %3043 = vmatprep.subr.bf16.mxu0 %v2537
    %3044 = vmatpush1.bf16.msra.mxu0 %v2536
    %3045 = vmatprep.subr.bf16.mxu0 %v2541
    %3046 = vmatpush1.bf16.msra.mxu0 %v2540
    %3047 = vmatprep.subr.bf16.mxu0 %v2545
    %3048 = vmatpush1.bf16.msra.mxu0 %v2544
    %3049 = vmatprep.subr.bf16.mxu0 %v2549
    %3050 = vmatpush1.bf16.msra.mxu0 %v2548
    %3051 = vmatprep.mubr.bf16.mxu0 %v82
    %3052 = vmatmul.mubr.bf16.gmra.mrb[0].mxu0 %v81
    %v3053 = vpop.f32.mrb[0].mxu0
    %v3054 = vadd.f32 %v3013, %v3053
    %v3055 = vpop.f32.mrb[0].mxu0
    %v3056 = vadd.f32 %v3015, %v3055
    %v3057 = vpop.f32.mrb[0].mxu0
    %v3058 = vpop.f32.mrb[0].mxu0
    %3059 = vdwg.mxu0
    %3060 = vmatprep.subr.bf16.mxu0 %v2553
    %3061 = vmatpush1.bf16.msra.mxu0 %v2552
    %3062 = vmatprep.subr.bf16.mxu0 %v2557
    %3063 = vmatpush1.bf16.msra.mxu0 %v2556
    %3064 = vmatprep.subr.bf16.mxu0 %v2561
    %3065 = vmatpush1.bf16.msra.mxu0 %v2560
    %3066 = vmatprep.subr.bf16.mxu0 %v2565
    %3067 = vmatpush1.bf16.msra.mxu0 %v2564
    %3068 = vmatprep.subr.bf16.mxu0 %v2569
    %3069 = vmatpush1.bf16.msra.mxu0 %v2568
    %3070 = vmatprep.subr.bf16.mxu0 %v2573
    %3071 = vmatpush1.bf16.msra.mxu0 %v2572
    %3072 = vmatprep.subr.bf16.mxu0 %v2577
    %3073 = vmatpush1.bf16.msra.mxu0 %v2576
    %3074 = vmatprep.subr.bf16.mxu0 %v2581
    %3075 = vmatpush1.bf16.msra.mxu0 %v2580
    %3076 = vmatprep.subr.bf16.mxu0 %v2585
    %3077 = vmatpush1.bf16.msra.mxu0 %v2584
    %3078 = vmatprep.subr.bf16.mxu0 %v2589
    %3079 = vmatpush1.bf16.msra.mxu0 %v2588
    %3080 = vmatprep.subr.bf16.mxu0 %v2593
    %3081 = vmatpush1.bf16.msra.mxu0 %v2592
    %3082 = vmatprep.subr.bf16.mxu0 %v2597
    %3083 = vmatpush1.bf16.msra.mxu0 %v2596
    %3084 = vmatprep.subr.bf16.mxu0 %v2601
    %3085 = vmatpush1.bf16.msra.mxu0 %v2600
    %3086 = vmatprep.subr.bf16.mxu0 %v2605
    %3087 = vmatpush1.bf16.msra.mxu0 %v2604
    %3088 = vmatprep.subr.bf16.mxu0 %v2609
    %3089 = vmatpush1.bf16.msra.mxu0 %v2608
    %3090 = vmatprep.subr.bf16.mxu0 %v2613
    %3091 = vmatpush1.bf16.msra.mxu0 %v2612
    %3092 = vmatprep.mubr.bf16.mxu0 %v84
    %3093 = vmatmul.mubr.bf16.gmra.mrb[0].mxu0 %v83
    %v3094 = vpop.f32.mrb[0].mxu0
    %v3095 = vadd.f32 %v3054, %v3094
    %v3096 = vpop.f32.mrb[0].mxu0
    %v3097 = vadd.f32 %v3056, %v3096
    %v3098 = vpop.f32.mrb[0].mxu0
    %v3099 = vpop.f32.mrb[0].mxu0
    %3100 = vdwg.mxu0
    %3101 = vmatprep.subr.bf16.mxu0 %v2617
    %3102 = vmatpush1.bf16.msra.mxu0 %v2616
    %3103 = vmatprep.subr.bf16.mxu0 0
    %3104 = vmatpush1.bf16.msra.mxu0 0
    %3105 = vmatprep.subr.bf16.mxu0 0
    %3106 = vmatpush1.bf16.msra.mxu0 0
    %3107 = vmatprep.subr.bf16.mxu0 0
    %3108 = vmatpush1.bf16.msra.mxu0 0
    %3109 = vmatprep.subr.bf16.mxu0 0
    %3110 = vmatpush1.bf16.msra.mxu0 0
    %3111 = vmatprep.subr.bf16.mxu0 0
    %3112 = vmatpush1.bf16.msra.mxu0 0
    %3113 = vmatprep.subr.bf16.mxu0 0
    %3114 = vmatpush1.bf16.msra.mxu0 0
    %3115 = vmatprep.subr.bf16.mxu0 0
    %3116 = vmatpush1.bf16.msra.mxu0 0
    %3117 = vmatprep.subr.bf16.mxu0 0
    %3118 = vmatpush1.bf16.msra.mxu0 0
    %3119 = vmatprep.subr.bf16.mxu0 0
    %3120 = vmatpush1.bf16.msra.mxu0 0
    %3121 = vmatprep.subr.bf16.mxu0 0
    %3122 = vmatpush1.bf16.msra.mxu0 0
    %3123 = vmatprep.subr.bf16.mxu0 0
    %3124 = vmatpush1.bf16.msra.mxu0 0
    %3125 = vmatprep.subr.bf16.mxu0 0
    %3126 = vmatpush1.bf16.msra.mxu0 0
    %3127 = vmatprep.subr.bf16.mxu0 0
    %3128 = vmatpush1.bf16.msra.mxu0 0
    %3129 = vmatprep.subr.bf16.mxu0 0
    %3130 = vmatpush1.bf16.msra.mxu0 0
    %3131 = vmatprep.subr.bf16.mxu0 0
    %3132 = vmatpush1.bf16.msra.mxu0 0
    %3133 = vmatprep.mubr.bf16.mxu0 0
    %3134 = vmatmul.mubr.bf16.gmra.mrb[0].mxu0 %v1286
    %v3135 = vpop.f32.mrb[0].mxu0
    %v3136 = vadd.f32 %v3095, %v3135
    %v3137 = vpop.f32.mrb[0].mxu0
    %v3138 = vadd.f32 %v3097, %v3137
    %v3139 = vpop.f32.mrb[0].mxu0
    %v3140 = vpop.f32.mrb[0].mxu0
    %3141 = vdwg.mxu0
    %v3142 = vsub.f32 0.0, %v1446
    %v3143 = vsub.f32 0.0, %v1448
    %v3144 = vsub.f32 0.0, %v1610
    %v3145 = vsub.f32 0.0, %v1612
    %v3146 = vmul.f32 %v3142, 1.442695
    %v3147 = vpow.pop %v3146
    %v3148 = vmul.f32 %v3143, 1.442695
    %v3149 = vpow.pop %v3148
    %v3150 = vmul.f32 %v3144, 1.442695
    %v3151 = vpow.pop %v3150
    %v3152 = vmul.f32 %v3145, 1.442695
    %v3153 = vpow.pop %v3152
    %v3154 = vadd.f32 %v3147, 1.0
    %v3155 = vadd.f32 %v3149, 1.0
    %v3156 = vadd.f32 %v3151, 1.0
    %v3157 = vadd.f32 %v3153, 1.0
    %v3158 = vrcp.pop %v3154
    %v3159 = vrcp.pop %v3155
    %v3160 = vrcp.pop %v3156
    %v3161 = vrcp.pop %v3157
    %v3162 = vsub.f32 0.0, %v2972
    %v3163 = vsub.f32 0.0, %v2974
    %v3164 = vsub.f32 0.0, %v3136
    %v3165 = vsub.f32 0.0, %v3138
    %v3166 = vmul.f32 %v3162, 1.442695
    %v3167 = vpow.pop %v3166
    %v3168 = vmul.f32 %v3163, 1.442695
    %v3169 = vpow.pop %v3168
    %v3170 = vmul.f32 %v3164, 1.442695
    %v3171 = vpow.pop %v3170
    %v3172 = vmul.f32 %v3165, 1.442695
    %v3173 = vpow.pop %v3172
    %v3174 = vadd.f32 %v3167, 1.0
    %v3175 = vadd.f32 %v3169, 1.0
    %v3176 = vadd.f32 %v3171, 1.0
    %v3177 = vadd.f32 %v3173, 1.0
    %v3178 = vrcp.pop %v3174
    %v3179 = vrcp.pop %v3175
    %v3180 = vrcp.pop %v3176
    %v3181 = vrcp.pop %v3177
    %v3182 = vpack.c.bf16 %v3158, %v3158
    %v3183 = vpack.c.bf16 %v3159, %v3159
    %v3184 = vpack.c.bf16 %v3160, %v3160
    %v3185 = vpack.c.bf16 %v3161, %v3161
    %v3186 = vld [vmem:[#allocation6] sm:$0xf]
    %v3187 = vld [vmem:[#allocation6 + $0x4] sm:$0xf]
    %v3188 = vld [vmem:[#allocation6 + $0x8] sm:$0xf]
    %v3189 = vld [vmem:[#allocation6 + $0xc] sm:$0xf]
    %v3190 = vld [vmem:[#allocation6 + $0x10] sm:$0xf]
    %v3191 = vld [vmem:[#allocation6 + $0x14] sm:$0xf]
    %v3192 = vld [vmem:[#allocation6 + $0x18] sm:$0xf]
    %v3193 = vld [vmem:[#allocation6 + $0x1c] sm:$0xf]
    %v3194 = vld [vmem:[#allocation6 + $0x20] sm:$0xf]
    %v3195 = vld [vmem:[#allocation6 + $0x24] sm:$0xf]
    %v3196 = vld [vmem:[#allocation6 + $0x28] sm:$0xf]
    %v3197 = vld [vmem:[#allocation6 + $0x2c] sm:$0xf]
    %v3198 = vld [vmem:[#allocation6 + $0x30] sm:$0xf]
    %v3199 = vld [vmem:[#allocation6 + $0x34] sm:$0xf]
    %v3200 = vld [vmem:[#allocation6 + $0x38] sm:$0xf]
    %v3201 = vld [vmem:[#allocation6 + $0x3c] sm:$0xf]
    %v3202 = vld [vmem:[#allocation6 + $0x40] sm:$0xf]
    %v3203 = vld [vmem:[#allocation6 + $0x44] sm:$0xf]
    %v3204 = vld [vmem:[#allocation6 + $0x48] sm:$0xf]
    %v3205 = vld [vmem:[#allocation6 + $0x4c] sm:$0xf]
    %v3206 = vld [vmem:[#allocation6 + $0x50] sm:$0xf]
    %v3207 = vld [vmem:[#allocation6 + $0x54] sm:$0xf]
    %v3208 = vld [vmem:[#allocation6 + $0x58] sm:$0xf]
    %v3209 = vld [vmem:[#allocation6 + $0x5c] sm:$0xf]
    %v3210 = vld [vmem:[#allocation6 + $0x60] sm:$0xf]
    %v3211 = vld [vmem:[#allocation6 + $0x64] sm:$0xf]
    %v3212 = vld [vmem:[#allocation6 + $0x68] sm:$0xf]
    %v3213 = vld [vmem:[#allocation6 + $0x6c] sm:$0xf]
    %v3214 = vld [vmem:[#allocation6 + $0x70] sm:$0xf]
    %v3215 = vld [vmem:[#allocation6 + $0x74] sm:$0xf]
    %v3216 = vld [vmem:[#allocation6 + $0x78] sm:$0xf]
    %v3217 = vld [vmem:[#allocation6 + $0x7c] sm:$0xf]
    %v3218 = vld [vmem:[#allocation6 + $0x80] sm:$0xf]
    %v3219 = vld [vmem:[#allocation6 + $0x84] sm:$0xf]
    %v3220 = vld [vmem:[#allocation6 + $0x88] sm:$0xf]
    %v3221 = vld [vmem:[#allocation6 + $0x8c] sm:$0xf]
    %v3222 = vld [vmem:[#allocation6 + $0x90] sm:$0xf]
    %v3223 = vld [vmem:[#allocation6 + $0x94] sm:$0xf]
    %v3224 = vld [vmem:[#allocation6 + $0x98] sm:$0xf]
    %v3225 = vld [vmem:[#allocation6 + $0x9c] sm:$0xf]
    %v3226 = vld [vmem:[#allocation6 + $0xa0] sm:$0xf]
    %v3227 = vld [vmem:[#allocation6 + $0xa4] sm:$0xf]
    %v3228 = vld [vmem:[#allocation6 + $0xa8] sm:$0xf]
    %v3229 = vld [vmem:[#allocation6 + $0xac] sm:$0xf]
    %v3230 = vld [vmem:[#allocation6 + $0xb0] sm:$0xf]
    %v3231 = vld [vmem:[#allocation6 + $0xb4] sm:$0xf]
    %v3232 = vld [vmem:[#allocation6 + $0xb8] sm:$0xf]
    %v3233 = vld [vmem:[#allocation6 + $0xbc] sm:$0xf]
    %v3234 = vld [vmem:[#allocation6 + $0xc0] sm:$0xf]
    %v3235 = vld [vmem:[#allocation6 + $0xc4] sm:$0xf]
    %v3236 = vld [vmem:[#allocation6 + $0xc8] sm:$0xf]
    %v3237 = vld [vmem:[#allocation6 + $0xcc] sm:$0xf]
    %v3238 = vld [vmem:[#allocation6 + $0xd0] sm:$0xf]
    %v3239 = vld [vmem:[#allocation6 + $0xd4] sm:$0xf]
    %v3240 = vld [vmem:[#allocation6 + $0xd8] sm:$0xf]
    %v3241 = vld [vmem:[#allocation6 + $0xdc] sm:$0xf]
    %v3242 = vld [vmem:[#allocation6 + $0xe0] sm:$0xf]
    %v3243 = vld [vmem:[#allocation6 + $0xe4] sm:$0xf]
    %v3244 = vld [vmem:[#allocation6 + $0xe8] sm:$0xf]
    %v3245 = vld [vmem:[#allocation6 + $0xec] sm:$0xf]
    %v3246 = vld [vmem:[#allocation6 + $0xf0] sm:$0xf]
    %v3247 = vld [vmem:[#allocation6 + $0xf4] sm:$0xf]
    %v3248 = vld [vmem:[#allocation6 + $0xf8] sm:$0xf]
    %v3249 = vld [vmem:[#allocation6 + $0xfc] sm:$0xf]
    %v3250 = vpack.c.bf16 %v3178, %v3178
    %v3251 = vpack.c.bf16 %v3179, %v3179
    %v3252 = vpack.c.bf16 %v3180, %v3180
    %v3253 = vpack.c.bf16 %v3181, %v3181
    %v3254 = vld [vmem:[#allocation6 + $0x100] sm:$0xf]
    %v3255 = vld [vmem:[#allocation6 + $0x104] sm:$0xf]
    %v3256 = vld [vmem:[#allocation6 + $0x108] sm:$0xf]
    %v3257 = vld [vmem:[#allocation6 + $0x10c] sm:$0xf]
    %v3258 = vld [vmem:[#allocation6 + $0x110] sm:$0xf]
    %v3259 = vld [vmem:[#allocation6 + $0x114] sm:$0xf]
    %v3260 = vld [vmem:[#allocation6 + $0x118] sm:$0xf]
    %v3261 = vld [vmem:[#allocation6 + $0x11c] sm:$0xf]
    %v3262 = vld [vmem:[#allocation6 + $0x120] sm:$0xf]
    %v3263 = vld [vmem:[#allocation6 + $0x124] sm:$0xf]
    %v3264 = vld [vmem:[#allocation6 + $0x128] sm:$0xf]
    %v3265 = vld [vmem:[#allocation6 + $0x12c] sm:$0xf]
    %v3266 = vld [vmem:[#allocation6 + $0x130] sm:$0xf]
    %v3267 = vld [vmem:[#allocation6 + $0x134] sm:$0xf]
    %v3268 = vld [vmem:[#allocation6 + $0x138] sm:$0xf]
    %v3269 = vld [vmem:[#allocation6 + $0x13c] sm:$0xf]
    %v3270 = vld [vmem:[#allocation6 + $0x140] sm:$0xf]
    %v3271 = vld [vmem:[#allocation6 + $0x144] sm:$0xf]
    %v3272 = vld [vmem:[#allocation6 + $0x148] sm:$0xf]
    %v3273 = vld [vmem:[#allocation6 + $0x14c] sm:$0xf]
    %v3274 = vld [vmem:[#allocation6 + $0x150] sm:$0xf]
    %v3275 = vld [vmem:[#allocation6 + $0x154] sm:$0xf]
    %v3276 = vld [vmem:[#allocation6 + $0x158] sm:$0xf]
    %v3277 = vld [vmem:[#allocation6 + $0x15c] sm:$0xf]
    %v3278 = vld [vmem:[#allocation6 + $0x160] sm:$0xf]
    %v3279 = vld [vmem:[#allocation6 + $0x164] sm:$0xf]
    %v3280 = vld [vmem:[#allocation6 + $0x168] sm:$0xf]
    %v3281 = vld [vmem:[#allocation6 + $0x16c] sm:$0xf]
    %v3282 = vld [vmem:[#allocation6 + $0x170] sm:$0xf]
    %v3283 = vld [vmem:[#allocation6 + $0x174] sm:$0xf]
    %v3284 = vld [vmem:[#allocation6 + $0x178] sm:$0xf]
    %v3285 = vld [vmem:[#allocation6 + $0x17c] sm:$0xf]
    %v3286 = vld [vmem:[#allocation6 + $0x180] sm:$0xf]
    %v3287 = vld [vmem:[#allocation6 + $0x184] sm:$0xf]
    %v3288 = vld [vmem:[#allocation6 + $0x188] sm:$0xf]
    %v3289 = vld [vmem:[#allocation6 + $0x18c] sm:$0xf]
    %v3290 = vld [vmem:[#allocation6 + $0x190] sm:$0xf]
    %v3291 = vld [vmem:[#allocation6 + $0x194] sm:$0xf]
    %v3292 = vld [vmem:[#allocation6 + $0x198] sm:$0xf]
    %v3293 = vld [vmem:[#allocation6 + $0x19c] sm:$0xf]
    %v3294 = vld [vmem:[#allocation6 + $0x1a0] sm:$0xf]
    %v3295 = vld [vmem:[#allocation6 + $0x1a4] sm:$0xf]
    %v3296 = vld [vmem:[#allocation6 + $0x1a8] sm:$0xf]
    %v3297 = vld [vmem:[#allocation6 + $0x1ac] sm:$0xf]
    %v3298 = vld [vmem:[#allocation6 + $0x1b0] sm:$0xf]
    %v3299 = vld [vmem:[#allocation6 + $0x1b4] sm:$0xf]
    %v3300 = vld [vmem:[#allocation6 + $0x1b8] sm:$0xf]
    %v3301 = vld [vmem:[#allocation6 + $0x1bc] sm:$0xf]
    %v3302 = vld [vmem:[#allocation6 + $0x1c0] sm:$0xf]
    %v3303 = vld [vmem:[#allocation6 + $0x1c4] sm:$0xf]
    %v3304 = vld [vmem:[#allocation6 + $0x1c8] sm:$0xf]
    %v3305 = vld [vmem:[#allocation6 + $0x1cc] sm:$0xf]
    %v3306 = vld [vmem:[#allocation6 + $0x1d0] sm:$0xf]
    %v3307 = vld [vmem:[#allocation6 + $0x1d4] sm:$0xf]
    %v3308 = vld [vmem:[#allocation6 + $0x1d8] sm:$0xf]
    %v3309 = vld [vmem:[#allocation6 + $0x1dc] sm:$0xf]
    %v3310 = vld [vmem:[#allocation6 + $0x1e0] sm:$0xf]
    %v3311 = vld [vmem:[#allocation6 + $0x1e4] sm:$0xf]
    %v3312 = vld [vmem:[#allocation6 + $0x1e8] sm:$0xf]
    %v3313 = vld [vmem:[#allocation6 + $0x1ec] sm:$0xf]
    %v3314 = vld [vmem:[#allocation6 + $0x1f0] sm:$0xf]
    %v3315 = vld [vmem:[#allocation6 + $0x1f4] sm:$0xf]
    %v3316 = vld [vmem:[#allocation6 + $0x1f8] sm:$0xf]
    %v3317 = vld [vmem:[#allocation6 + $0x1fc] sm:$0xf]
    %v3382 = vunpack.c.l.b16 %v3254
    %v3383 = vunpack.c.l.b16 %v3255
    %v3384 = vunpack.c.l.b16 %v3256
    %v3385 = vunpack.c.l.b16 %v3257
    %v3386 = vunpack.c.l.b16 %v3258
    %v3387 = vunpack.c.l.b16 %v3259
    %v3388 = vunpack.c.l.b16 %v3260
    %v3389 = vunpack.c.l.b16 %v3261
    %v3390 = vunpack.c.l.b16 %v3262
    %v3391 = vunpack.c.l.b16 %v3263
    %v3392 = vunpack.c.l.b16 %v3264
    %v3393 = vunpack.c.l.b16 %v3265
    %v3394 = vunpack.c.l.b16 %v3266
    %v3395 = vunpack.c.l.b16 %v3267
    %v3396 = vunpack.c.l.b16 %v3268
    %v3397 = vunpack.c.l.b16 %v3269
    %v3398 = vunpack.c.l.b16 %v3270
    %v3399 = vunpack.c.l.b16 %v3271
    %v3400 = vunpack.c.l.b16 %v3272
    %v3401 = vunpack.c.l.b16 %v3273
    %v3402 = vunpack.c.l.b16 %v3274
    %v3403 = vunpack.c.l.b16 %v3275
    %v3404 = vunpack.c.l.b16 %v3276
    %v3405 = vunpack.c.l.b16 %v3277
    %v3406 = vunpack.c.l.b16 %v3278
    %v3407 = vunpack.c.l.b16 %v3279
    %v3408 = vunpack.c.l.b16 %v3280
    %v3409 = vunpack.c.l.b16 %v3281
    %v3410 = vunpack.c.l.b16 %v3282
    %v3411 = vunpack.c.l.b16 %v3283
    %v3412 = vunpack.c.l.b16 %v3284
    %v3413 = vunpack.c.l.b16 %v3285
    %v3414 = vunpack.c.l.b16 %v3286
    %v3415 = vunpack.c.l.b16 %v3287
    %v3416 = vunpack.c.l.b16 %v3288
    %v3417 = vunpack.c.l.b16 %v3289
    %v3418 = vunpack.c.l.b16 %v3290
    %v3419 = vunpack.c.l.b16 %v3291
    %v3420 = vunpack.c.l.b16 %v3292
    %v3421 = vunpack.c.l.b16 %v3293
    %v3422 = vunpack.c.l.b16 %v3294
    %v3423 = vunpack.c.l.b16 %v3295
    %v3424 = vunpack.c.l.b16 %v3296
    %v3425 = vunpack.c.l.b16 %v3297
    %v3426 = vunpack.c.l.b16 %v3298
    %v3427 = vunpack.c.l.b16 %v3299
    %v3428 = vunpack.c.l.b16 %v3300
    %v3429 = vunpack.c.l.b16 %v3301
    %v3430 = vunpack.c.l.b16 %v3302
    %v3431 = vunpack.c.l.b16 %v3303
    %v3432 = vunpack.c.l.b16 %v3304
    %v3433 = vunpack.c.l.b16 %v3305
    %v3434 = vunpack.c.l.b16 %v3306
    %v3435 = vunpack.c.l.b16 %v3307
    %v3436 = vunpack.c.l.b16 %v3308
    %v3437 = vunpack.c.l.b16 %v3309
    %v3438 = vunpack.c.l.b16 %v3310
    %v3439 = vunpack.c.l.b16 %v3311
    %v3440 = vunpack.c.l.b16 %v3312
    %v3441 = vunpack.c.l.b16 %v3313
    %v3442 = vunpack.c.l.b16 %v3314
    %v3443 = vunpack.c.l.b16 %v3315
    %v3444 = vunpack.c.l.b16 %v3316
    %v3445 = vunpack.c.l.b16 %v3317
    %v3446 = vpack.c.b16 %v3383, %v3382
    %v3447 = vpack.c.b16 %v3385, %v3384
    %v3448 = vpack.c.b16 %v3387, %v3386
    %v3449 = vpack.c.b16 %v3389, %v3388
    %v3450 = vpack.c.b16 %v3391, %v3390
    %v3451 = vpack.c.b16 %v3393, %v3392
    %v3452 = vpack.c.b16 %v3395, %v3394
    %v3453 = vpack.c.b16 %v3397, %v3396
    %v3454 = vpack.c.b16 %v3399, %v3398
    %v3455 = vpack.c.b16 %v3401, %v3400
    %v3456 = vpack.c.b16 %v3403, %v3402
    %v3457 = vpack.c.b16 %v3405, %v3404
    %v3458 = vpack.c.b16 %v3407, %v3406
    %v3459 = vpack.c.b16 %v3409, %v3408
    %v3460 = vpack.c.b16 %v3411, %v3410
    %v3461 = vpack.c.b16 %v3413, %v3412
    %v3462 = vpack.c.b16 %v3415, %v3414
    %v3463 = vpack.c.b16 %v3417, %v3416
    %v3464 = vpack.c.b16 %v3419, %v3418
    %v3465 = vpack.c.b16 %v3421, %v3420
    %v3466 = vpack.c.b16 %v3423, %v3422
    %v3467 = vpack.c.b16 %v3425, %v3424
    %v3468 = vpack.c.b16 %v3427, %v3426
    %v3469 = vpack.c.b16 %v3429, %v3428
    %v3470 = vpack.c.b16 %v3431, %v3430
    %v3471 = vpack.c.b16 %v3433, %v3432
    %v3472 = vpack.c.b16 %v3435, %v3434
    %v3473 = vpack.c.b16 %v3437, %v3436
    %v3474 = vpack.c.b16 %v3439, %v3438
    %v3475 = vpack.c.b16 %v3441, %v3440
    %v3476 = vpack.c.b16 %v3443, %v3442
    %v3477 = vpack.c.b16 %v3445, %v3444
    %3510 = vmatprep.subr.bf16.mxu0 0
    %3511 = vmatpush1.bf16.msra.mxu0 %v3446
    %3512 = vmatprep.subr.bf16.mxu0 0
    %3513 = vmatpush1.bf16.msra.mxu0 %v3447
    %3514 = vmatprep.subr.bf16.mxu0 0
    %3515 = vmatpush1.bf16.msra.mxu0 %v3448
    %3516 = vmatprep.subr.bf16.mxu0 0
    %3517 = vmatpush1.bf16.msra.mxu0 %v3449
    %3518 = vmatprep.subr.bf16.mxu0 0
    %3519 = vmatpush1.bf16.msra.mxu0 %v3450
    %3520 = vmatprep.subr.bf16.mxu0 0
    %3521 = vmatpush1.bf16.msra.mxu0 %v3451
    %3522 = vmatprep.subr.bf16.mxu0 0
    %3523 = vmatpush1.bf16.msra.mxu0 %v3452
    %3524 = vmatprep.subr.bf16.mxu0 0
    %3525 = vmatpush1.bf16.msra.mxu0 %v3453
    %3526 = vmatprep.subr.bf16.mxu0 0
    %3527 = vmatpush1.bf16.msra.mxu0 %v3454
    %3528 = vmatprep.subr.bf16.mxu0 0
    %3529 = vmatpush1.bf16.msra.mxu0 %v3455
    %3530 = vmatprep.subr.bf16.mxu0 0
    %3531 = vmatpush1.bf16.msra.mxu0 %v3456
    %3532 = vmatprep.subr.bf16.mxu0 0
    %3533 = vmatpush1.bf16.msra.mxu0 %v3457
    %3534 = vmatprep.subr.bf16.mxu0 0
    %3535 = vmatpush1.bf16.msra.mxu0 %v3458
    %3536 = vmatprep.subr.bf16.mxu0 0
    %3537 = vmatpush1.bf16.msra.mxu0 %v3459
    %3538 = vmatprep.subr.bf16.mxu0 0
    %3539 = vmatpush1.bf16.msra.mxu0 %v3460
    %3540 = vmatprep.subr.bf16.mxu0 0
    %3541 = vmatpush1.bf16.msra.mxu0 %v3461
    %3542 = vmatprep.mubr.bf16.mxu0 %v3251
    %3543 = vmatmul.mubr.bf16.gmra.mrb[0].mxu0 %v3250
    %v3544 = vpop.f32.mrb[0].mxu0
    %v3545 = vadd.f32 0.0, %v3544
    %v3546 = vpop.f32.mrb[0].mxu0
    %v3547 = vpop.f32.mrb[0].mxu0
    %v3548 = vpop.f32.mrb[0].mxu0
    %3549 = vdwg.mxu0
    %3550 = vmatprep.subr.bf16.mxu0 0
    %3551 = vmatpush1.bf16.msra.mxu0 %v3462
    %3552 = vmatprep.subr.bf16.mxu0 0
    %3553 = vmatpush1.bf16.msra.mxu0 %v3463
    %3554 = vmatprep.subr.bf16.mxu0 0
    %3555 = vmatpush1.bf16.msra.mxu0 %v3464
    %3556 = vmatprep.subr.bf16.mxu0 0
    %3557 = vmatpush1.bf16.msra.mxu0 %v3465
    %3558 = vmatprep.subr.bf16.mxu0 0
    %3559 = vmatpush1.bf16.msra.mxu0 %v3466
    %3560 = vmatprep.subr.bf16.mxu0 0
    %3561 = vmatpush1.bf16.msra.mxu0 %v3467
    %3562 = vmatprep.subr.bf16.mxu0 0
    %3563 = vmatpush1.bf16.msra.mxu0 %v3468
    %3564 = vmatprep.subr.bf16.mxu0 0
    %3565 = vmatpush1.bf16.msra.mxu0 %v3469
    %3566 = vmatprep.subr.bf16.mxu0 0
    %3567 = vmatpush1.bf16.msra.mxu0 %v3470
    %3568 = vmatprep.subr.bf16.mxu0 0
    %3569 = vmatpush1.bf16.msra.mxu0 %v3471
    %3570 = vmatprep.subr.bf16.mxu0 0
    %3571 = vmatpush1.bf16.msra.mxu0 %v3472
    %3572 = vmatprep.subr.bf16.mxu0 0
    %3573 = vmatpush1.bf16.msra.mxu0 %v3473
    %3574 = vmatprep.subr.bf16.mxu0 0
    %3575 = vmatpush1.bf16.msra.mxu0 %v3474
    %3576 = vmatprep.subr.bf16.mxu0 0
    %3577 = vmatpush1.bf16.msra.mxu0 %v3475
    %3578 = vmatprep.subr.bf16.mxu0 0
    %3579 = vmatpush1.bf16.msra.mxu0 %v3476
    %3580 = vmatprep.subr.bf16.mxu0 0
    %3581 = vmatpush1.bf16.msra.mxu0 %v3477
    %3582 = vmatprep.mubr.bf16.mxu0 %v3253
    %3583 = vmatmul.mubr.bf16.gmra.mrb[0].mxu0 %v3252
    %v3584 = vpop.f32.mrb[0].mxu0
    %v3585 = vadd.f32 %v3545, %v3584
    %v3586 = vpop.f32.mrb[0].mxu0
    %v3587 = vpop.f32.mrb[0].mxu0
    %v3588 = vpop.f32.mrb[0].mxu0
    %3589 = vdwg.mxu0
    %v3654 = vunpack.c.l.b16 %v3186
    %v3655 = vunpack.c.l.b16 %v3187
    %v3656 = vunpack.c.l.b16 %v3188
    %v3657 = vunpack.c.l.b16 %v3189
    %v3658 = vunpack.c.l.b16 %v3190
    %v3659 = vunpack.c.l.b16 %v3191
    %v3660 = vunpack.c.l.b16 %v3192
    %v3661 = vunpack.c.l.b16 %v3193
    %v3662 = vunpack.c.l.b16 %v3194
    %v3663 = vunpack.c.l.b16 %v3195
    %v3664 = vunpack.c.l.b16 %v3196
    %v3665 = vunpack.c.l.b16 %v3197
    %v3666 = vunpack.c.l.b16 %v3198
    %v3667 = vunpack.c.l.b16 %v3199
    %v3668 = vunpack.c.l.b16 %v3200
    %v3669 = vunpack.c.l.b16 %v3201
    %v3670 = vunpack.c.l.b16 %v3202
    %v3671 = vunpack.c.l.b16 %v3203
    %v3672 = vunpack.c.l.b16 %v3204
    %v3673 = vunpack.c.l.b16 %v3205
    %v3674 = vunpack.c.l.b16 %v3206
    %v3675 = vunpack.c.l.b16 %v3207
    %v3676 = vunpack.c.l.b16 %v3208
    %v3677 = vunpack.c.l.b16 %v3209
    %v3678 = vunpack.c.l.b16 %v3210
    %v3679 = vunpack.c.l.b16 %v3211
    %v3680 = vunpack.c.l.b16 %v3212
    %v3681 = vunpack.c.l.b16 %v3213
    %v3682 = vunpack.c.l.b16 %v3214
    %v3683 = vunpack.c.l.b16 %v3215
    %v3684 = vunpack.c.l.b16 %v3216
    %v3685 = vunpack.c.l.b16 %v3217
    %v3686 = vunpack.c.l.b16 %v3218
    %v3687 = vunpack.c.l.b16 %v3219
    %v3688 = vunpack.c.l.b16 %v3220
    %v3689 = vunpack.c.l.b16 %v3221
    %v3690 = vunpack.c.l.b16 %v3222
    %v3691 = vunpack.c.l.b16 %v3223
    %v3692 = vunpack.c.l.b16 %v3224
    %v3693 = vunpack.c.l.b16 %v3225
    %v3694 = vunpack.c.l.b16 %v3226
    %v3695 = vunpack.c.l.b16 %v3227
    %v3696 = vunpack.c.l.b16 %v3228
    %v3697 = vunpack.c.l.b16 %v3229
    %v3698 = vunpack.c.l.b16 %v3230
    %v3699 = vunpack.c.l.b16 %v3231
    %v3700 = vunpack.c.l.b16 %v3232
    %v3701 = vunpack.c.l.b16 %v3233
    %v3702 = vunpack.c.l.b16 %v3234
    %v3703 = vunpack.c.l.b16 %v3235
    %v3704 = vunpack.c.l.b16 %v3236
    %v3705 = vunpack.c.l.b16 %v3237
    %v3706 = vunpack.c.l.b16 %v3238
    %v3707 = vunpack.c.l.b16 %v3239
    %v3708 = vunpack.c.l.b16 %v3240
    %v3709 = vunpack.c.l.b16 %v3241
    %v3710 = vunpack.c.l.b16 %v3242
    %v3711 = vunpack.c.l.b16 %v3243
    %v3712 = vunpack.c.l.b16 %v3244
    %v3713 = vunpack.c.l.b16 %v3245
    %v3714 = vunpack.c.l.b16 %v3246
    %v3715 = vunpack.c.l.b16 %v3247
    %v3716 = vunpack.c.l.b16 %v3248
    %v3717 = vunpack.c.l.b16 %v3249
    %v3718 = vpack.c.b16 %v3655, %v3654
    %v3719 = vpack.c.b16 %v3657, %v3656
    %v3720 = vpack.c.b16 %v3659, %v3658
    %v3721 = vpack.c.b16 %v3661, %v3660
    %v3722 = vpack.c.b16 %v3663, %v3662
    %v3723 = vpack.c.b16 %v3665, %v3664
    %v3724 = vpack.c.b16 %v3667, %v3666
    %v3725 = vpack.c.b16 %v3669, %v3668
    %v3726 = vpack.c.b16 %v3671, %v3670
    %v3727 = vpack.c.b16 %v3673, %v3672
    %v3728 = vpack.c.b16 %v3675, %v3674
    %v3729 = vpack.c.b16 %v3677, %v3676
    %v3730 = vpack.c.b16 %v3679, %v3678
    %v3731 = vpack.c.b16 %v3681, %v3680
    %v3732 = vpack.c.b16 %v3683, %v3682
    %v3733 = vpack.c.b16 %v3685, %v3684
    %v3734 = vpack.c.b16 %v3687, %v3686
    %v3735 = vpack.c.b16 %v3689, %v3688
    %v3736 = vpack.c.b16 %v3691, %v3690
    %v3737 = vpack.c.b16 %v3693, %v3692
    %v3738 = vpack.c.b16 %v3695, %v3694
    %v3739 = vpack.c.b16 %v3697, %v3696
    %v3740 = vpack.c.b16 %v3699, %v3698
    %v3741 = vpack.c.b16 %v3701, %v3700
    %v3742 = vpack.c.b16 %v3703, %v3702
    %v3743 = vpack.c.b16 %v3705, %v3704
    %v3744 = vpack.c.b16 %v3707, %v3706
    %v3745 = vpack.c.b16 %v3709, %v3708
    %v3746 = vpack.c.b16 %v3711, %v3710
    %v3747 = vpack.c.b16 %v3713, %v3712
    %v3748 = vpack.c.b16 %v3715, %v3714
    %v3749 = vpack.c.b16 %v3717, %v3716
    %3782 = vmatprep.subr.bf16.mxu0 0
    %3783 = vmatpush1.bf16.msra.mxu0 %v3718
    %3784 = vmatprep.subr.bf16.mxu0 0
    %3785 = vmatpush1.bf16.msra.mxu0 %v3719
    %3786 = vmatprep.subr.bf16.mxu0 0
    %3787 = vmatpush1.bf16.msra.mxu0 %v3720
    %3788 = vmatprep.subr.bf16.mxu0 0
    %3789 = vmatpush1.bf16.msra.mxu0 %v3721
    %3790 = vmatprep.subr.bf16.mxu0 0
    %3791 = vmatpush1.bf16.msra.mxu0 %v3722
    %3792 = vmatprep.subr.bf16.mxu0 0
    %3793 = vmatpush1.bf16.msra.mxu0 %v3723
    %3794 = vmatprep.subr.bf16.mxu0 0
    %3795 = vmatpush1.bf16.msra.mxu0 %v3724
    %3796 = vmatprep.subr.bf16.mxu0 0
    %3797 = vmatpush1.bf16.msra.mxu0 %v3725
    %3798 = vmatprep.subr.bf16.mxu0 0
    %3799 = vmatpush1.bf16.msra.mxu0 %v3726
    %3800 = vmatprep.subr.bf16.mxu0 0
    %3801 = vmatpush1.bf16.msra.mxu0 %v3727
    %3802 = vmatprep.subr.bf16.mxu0 0
    %3803 = vmatpush1.bf16.msra.mxu0 %v3728
    %3804 = vmatprep.subr.bf16.mxu0 0
    %3805 = vmatpush1.bf16.msra.mxu0 %v3729
    %3806 = vmatprep.subr.bf16.mxu0 0
    %3807 = vmatpush1.bf16.msra.mxu0 %v3730
    %3808 = vmatprep.subr.bf16.mxu0 0
    %3809 = vmatpush1.bf16.msra.mxu0 %v3731
    %3810 = vmatprep.subr.bf16.mxu0 0
    %3811 = vmatpush1.bf16.msra.mxu0 %v3732
    %3812 = vmatprep.subr.bf16.mxu0 0
    %3813 = vmatpush1.bf16.msra.mxu0 %v3733
    %3814 = vmatprep.mubr.bf16.mxu0 %v3183
    %3815 = vmatmul.mubr.bf16.gmra.mrb[0].mxu0 %v3182
    %v3816 = vpop.f32.mrb[0].mxu0
    %v3817 = vadd.f32 %v3585, %v3816
    %v3818 = vpop.f32.mrb[0].mxu0
    %v3819 = vpop.f32.mrb[0].mxu0
    %v3820 = vpop.f32.mrb[0].mxu0
    %3821 = vdwg.mxu0
    %3822 = vmatprep.subr.bf16.mxu0 0
    %3823 = vmatpush1.bf16.msra.mxu0 %v3734
    %3824 = vmatprep.subr.bf16.mxu0 0
    %3825 = vmatpush1.bf16.msra.mxu0 %v3735
    %3826 = vmatprep.subr.bf16.mxu0 0
    %3827 = vmatpush1.bf16.msra.mxu0 %v3736
    %3828 = vmatprep.subr.bf16.mxu0 0
    %3829 = vmatpush1.bf16.msra.mxu0 %v3737
    %3830 = vmatprep.subr.bf16.mxu0 0
    %3831 = vmatpush1.bf16.msra.mxu0 %v3738
    %3832 = vmatprep.subr.bf16.mxu0 0
    %3833 = vmatpush1.bf16.msra.mxu0 %v3739
    %3834 = vmatprep.subr.bf16.mxu0 0
    %3835 = vmatpush1.bf16.msra.mxu0 %v3740
    %3836 = vmatprep.subr.bf16.mxu0 0
    %3837 = vmatpush1.bf16.msra.mxu0 %v3741
    %3838 = vmatprep.subr.bf16.mxu0 0
    %3839 = vmatpush1.bf16.msra.mxu0 %v3742
    %3840 = vmatprep.subr.bf16.mxu0 0
    %3841 = vmatpush1.bf16.msra.mxu0 %v3743
    %3842 = vmatprep.subr.bf16.mxu0 0
    %3843 = vmatpush1.bf16.msra.mxu0 %v3744
    %3844 = vmatprep.subr.bf16.mxu0 0
    %3845 = vmatpush1.bf16.msra.mxu0 %v3745
    %3846 = vmatprep.subr.bf16.mxu0 0
    %3847 = vmatpush1.bf16.msra.mxu0 %v3746
    %3848 = vmatprep.subr.bf16.mxu0 0
    %3849 = vmatpush1.bf16.msra.mxu0 %v3747
    %3850 = vmatprep.subr.bf16.mxu0 0
    %3851 = vmatpush1.bf16.msra.mxu0 %v3748
    %3852 = vmatprep.subr.bf16.mxu0 0
    %3853 = vmatpush1.bf16.msra.mxu0 %v3749
    %3854 = vmatprep.mubr.bf16.mxu0 %v3185
    %3855 = vmatmul.mubr.bf16.gmra.mrb[0].mxu0 %v3184
    %v3856 = vpop.f32.mrb[0].mxu0
    %v3857 = vadd.f32 %v3817, %v3856
    %v3858 = vpop.f32.mrb[0].mxu0
    %v3859 = vpop.f32.mrb[0].mxu0
    %v3860 = vpop.f32.mrb[0].mxu0
    %3861 = vdwg.mxu0
    %v3862 = vld [vmem:[#allocation7] sm:$0x1]
    %v3864 = vlaneseq
    %v3865 = vshrl.u32 %v3864, 7
    %v3866 = vsub.s32 0, %v3865
    %v3867 = vrot.slane %v3862, %v3866
    %v3869 = vadd.f32 %v3857, %v3867
    %3870 = vst [vmem:[%s5] sm:$0xff] %v3869
    // Predicated region
    $region38: #{mlp_forward.1} parent=1 // pred_check
      _
    $region39: #{mlp_forward.1} parent=1 // pred_check_branch
      %3872 = sbr.rel (0) target = $region41
    $region40: #{mlp_forward.1} parent=1 // pred_region
      _
    $region41: #{mlp_forward.1} parent=1 // pred_fallthru
      _
    // Predicated region
    $region42: #{mlp_forward.1} parent=1 // pred_check
      _
    $region43: #{mlp_forward.1} parent=1 // pred_check_branch
      %3874 = sbr.rel (0) target = $region45
    $region44: #{mlp_forward.1} parent=1 // pred_region
      _
    $region45: #{mlp_forward.1} parent=1 // pred_fallthru
      _
    %3875 = vsyncpa [#allocation3], 1
    %3876 = vsyncpa [#allocation5], 1
    %3877 = vsyncpa [#allocation8], 1

</llo_original>
